<compile_context>
chip_gen: v5e
topology: v5e:2x2
jax: 0.10.0
libtpu: 0.0.40
codegen_flags: <defaults>
</compile_context>

<pallas_src>
import jax
import jax.numpy as jnp
from jax.experimental import pallas as pl
from jax.experimental.pallas import tpu as pltpu

HIDDEN = 512
OUT_DIM = 784          # 28 * 28


def _round_up(n, m):
    return ((n + m - 1) // m) * m


def _pick_tb(B):
    """Batch tile: tiny batches pad to 8 rows; otherwise aim for >=2 grid
    steps (v7x megacore) with at most 512 rows per tile."""
    if B <= 8:
        return 8
    half = _round_up((B + 1) // 2, 8)
    return min(512, half)


def image_decoder_kernel(
    z_ref,    # (TB, n_latents)   bf16
    w1_ref,   # (n_latents, 512)  bf16
    b1_ref,   # (1, 512)          f32
    w2_ref,   # (512, 512)        bf16
    b2_ref,   # (1, 512)          f32
    w3_ref,   # (512, 512)        bf16
    b3_ref,   # (1, 512)          f32
    w4_ref,   # (512, 784)        bf16
    b4_ref,   # (1, 784)          f32
    out_ref,  # (TB, 784)         f32
):
    def swish(h):
        # x * sigmoid(x) == 0.5 * x * (1 + tanh(0.5 * x))
        # -> one EUP op (tanh) per vreg; bounded, no overflow edge cases.
        return 0.5 * h * (1.0 + jnp.tanh(0.5 * h))

    z = z_ref[...]  # bf16

    h = jnp.dot(z, w1_ref[...], preferred_element_type=jnp.float32) + b1_ref[...]
    h = swish(h)

    h = jnp.dot(h.astype(jnp.bfloat16), w2_ref[...],
                preferred_element_type=jnp.float32) + b2_ref[...]
    h = swish(h)

    h = jnp.dot(h.astype(jnp.bfloat16), w3_ref[...],
                preferred_element_type=jnp.float32) + b3_ref[...]
    h = swish(h)

    out = jnp.dot(h.astype(jnp.bfloat16), w4_ref[...],
                  preferred_element_type=jnp.float32) + b4_ref[...]
    out_ref[...] = out.astype(out_ref.dtype)


def image_decoder(z, params, *, tb=None):
    """z: (..., n_latents) float32. Returns logits of shape (B, 784) f32."""
    n_latents = params["w1"].shape[0]
    z2d = z.reshape(-1, n_latents).astype(jnp.float32)
    B = z2d.shape[0]

    if tb is None:
        tb = _pick_tb(B)
    Bp = _round_up(B, tb)

    # --- pack params (bf16 weights for the MXU, f32 biases) ---
    zp = z2d.astype(jnp.bfloat16)
    if Bp > B:
        zp = jnp.pad(zp, ((0, Bp - B), (0, 0)))  # padded rows sliced off below

    w1 = params["w1"].astype(jnp.bfloat16)
    w2 = params["w2"].astype(jnp.bfloat16)
    w3 = params["w3"].astype(jnp.bfloat16)
    w4 = params["w4"].astype(jnp.bfloat16)
    b1 = params["b1"].astype(jnp.float32)
    b2 = params["b2"].astype(jnp.float32)
    b3 = params["b3"].astype(jnp.float32)
    b4 = params["b4"].astype(jnp.float32)

    grid = (Bp // tb,)

    flops = 2 * Bp * (n_latents * HIDDEN + 2 * HIDDEN * HIDDEN + HIDDEN * OUT_DIM)
    weight_bytes = 2 * (n_latents * HIDDEN + 2 * HIDDEN * HIDDEN + HIDDEN * OUT_DIM) \
        + 4 * (3 * HIDDEN + OUT_DIM)
    bytes_accessed = weight_bytes + Bp * n_latents * 2 + Bp * OUT_DIM * 4

    out = pl.pallas_call(
        image_decoder_kernel,
        out_shape=jax.ShapeDtypeStruct((Bp, OUT_DIM), jnp.float32),
        grid=grid,
        in_specs=[
            pl.BlockSpec((tb, n_latents), lambda i: (i, 0)),   # z tile (pipelined)
            pl.BlockSpec((n_latents, HIDDEN), lambda i: (0, 0)),  # w1 (resident)
            pl.BlockSpec((1, HIDDEN), lambda i: (0, 0)),          # b1
            pl.BlockSpec((HIDDEN, HIDDEN), lambda i: (0, 0)),     # w2
            pl.BlockSpec((1, HIDDEN), lambda i: (0, 0)),          # b2
            pl.BlockSpec((HIDDEN, HIDDEN), lambda i: (0, 0)),     # w3
            pl.BlockSpec((1, HIDDEN), lambda i: (0, 0)),          # b3
            pl.BlockSpec((HIDDEN, OUT_DIM), lambda i: (0, 0)),    # w4
            pl.BlockSpec((1, OUT_DIM), lambda i: (0, 0)),         # b4
        ],
        out_specs=pl.BlockSpec((tb, OUT_DIM), lambda i: (i, 0)),
        compiler_params=pltpu.CompilerParams(
            dimension_semantics=("parallel",),
            vmem_limit_bytes=32 * 1024 * 1024,
        ),
        cost_estimate=pl.CostEstimate(
            flops=flops,
            transcendentals=3 * Bp * HIDDEN,
            bytes_accessed=bytes_accessed,
        ),
    )(zp, w1, b1, w2, b2, w3, b3, w4, b4)

    if Bp > B:
        out = out[:B]
    return out


def init_params(key, n_latents):
    """Deterministic init matching the PyTorch layer shapes.

    PyTorch Linear(in, out) weight is (out, in); we store the transpose
    (in, out) so the kernel does x @ W. Uniform(-1/sqrt(in), 1/sqrt(in)),
    same distribution as PyTorch's default Linear init.
    """
    ks = jax.random.split(key, 8)

    def lin(kw, kb, fan_in, fan_out):
        bound = 1.0 / jnp.sqrt(fan_in)
        w = jax.random.uniform(kw, (fan_in, fan_out), jnp.float32, -bound, bound)
        b = jax.random.uniform(kb, (1, fan_out), jnp.float32, -bound, bound)
        return w, b

    w1, b1 = lin(ks[0], ks[1], n_latents, HIDDEN)
    w2, b2 = lin(ks[2], ks[3], HIDDEN, HIDDEN)
    w3, b3 = lin(ks[4], ks[5], HIDDEN, HIDDEN)
    w4, b4 = lin(ks[6], ks[7], HIDDEN, OUT_DIM)
    return dict(w1=w1, b1=b1, w2=w2, b2=b2, w3=w3, b3=b3, w4=w4, b4=b4)


def reference(z, params):
    """Pure-JAX f32 reference of the PyTorch ImageDecoder forward."""
    n_latents = params["w1"].shape[0]
    z2d = z.reshape(-1, n_latents).astype(jnp.float32)
    h = z2d @ params["w1"] + params["b1"]
    h = h * jax.nn.sigmoid(h)
    h = h @ params["w2"] + params["b2"]
    h = h * jax.nn.sigmoid(h)
    h = h @ params["w3"] + params["b3"]
    h = h * jax.nn.sigmoid(h)
    return h @ params["w4"] + params["b4"]


if __name__ == "__main__":
    key = jax.random.PRNGKey(0)
    k_param, k_z = jax.random.split(key)

    n_latents = 16
    batch = 2
    z = jax.random.uniform(k_z, (batch, n_latents), jnp.float32)

    params = init_params(k_param, n_latents)

    out = image_decoder(z, params)
    out = jax.block_until_ready(out)

    out_ref = reference(z, params)
    assert out.shape == (batch, OUT_DIM)
    # bf16 MXU inputs => compare against the f32 reference with a tolerance
    # that covers bf16 rounding through 4 layers.
    assert jnp.allclose(out, out_ref, atol=2e-2, rtol=2e-2), (
        float(jnp.max(jnp.abs(out - out_ref))))

    print("KERNEL_OK")
</pallas_src>

<mosaic_0001>
module attributes {stable_mosaic.version = 11 : i64} {
  func.func @image_decoder_kernel(%arg0: i32, %arg1: memref<8x16xbf16, #tpu.memory_space<vmem>>, %arg2: memref<16x512xbf16, #tpu.memory_space<vmem>>, %arg3: memref<1x512xf32, #tpu.memory_space<vmem>>, %arg4: memref<512x512xbf16, #tpu.memory_space<vmem>>, %arg5: memref<1x512xf32, #tpu.memory_space<vmem>>, %arg6: memref<512x512xbf16, #tpu.memory_space<vmem>>, %arg7: memref<1x512xf32, #tpu.memory_space<vmem>>, %arg8: memref<512x784xbf16, #tpu.memory_space<vmem>>, %arg9: memref<1x784xf32, #tpu.memory_space<vmem>>, %arg10: memref<8x784xf32, #tpu.memory_space<vmem>>) attributes {dimension_semantics = [#tpu.dimension_semantics<parallel>], iteration_bounds = array<i64: 1>, scalar_prefetch = 0 : i64, scratch_operands = 0 : i64, tpu.core_type = #tpu.core_type<tc>, window_params = [{transform_indices = @transform_0, window_bounds = array<i64: 8, 16>}, {pipeline_mode = #tpu.pipeline_mode<synchronous>, transform_indices = @transform_1, window_bounds = array<i64: 16, 512>}, {pipeline_mode = #tpu.pipeline_mode<synchronous>, transform_indices = @transform_2, window_bounds = array<i64: 1, 512>}, {pipeline_mode = #tpu.pipeline_mode<synchronous>, transform_indices = @transform_3, window_bounds = array<i64: 512, 512>}, {pipeline_mode = #tpu.pipeline_mode<synchronous>, transform_indices = @transform_4, window_bounds = array<i64: 1, 512>}, {pipeline_mode = #tpu.pipeline_mode<synchronous>, transform_indices = @transform_5, window_bounds = array<i64: 512, 512>}, {pipeline_mode = #tpu.pipeline_mode<synchronous>, transform_indices = @transform_6, window_bounds = array<i64: 1, 512>}, {pipeline_mode = #tpu.pipeline_mode<synchronous>, transform_indices = @transform_7, window_bounds = array<i64: 512, 784>}, {pipeline_mode = #tpu.pipeline_mode<synchronous>, transform_indices = @transform_8, window_bounds = array<i64: 1, 784>}, {transform_indices = @transform_9, window_bounds = array<i64: 8, 784>}]} {
    %c0 = arith.constant 0 : index
    %c0_0 = arith.constant 0 : index
    %0 = vector.load %arg1[%c0, %c0_0] : memref<8x16xbf16, #tpu.memory_space<vmem>>, vector<8x16xbf16>
    %c0_1 = arith.constant 0 : index
    %c0_2 = arith.constant 0 : index
    %1 = vector.load %arg2[%c0_1, %c0_2] : memref<16x512xbf16, #tpu.memory_space<vmem>>, vector<16x512xbf16>
    %cst = arith.constant dense<0.000000e+00> : vector<8x512xf32>
    %2 = tpu.matmul %0, %1, %cst {dimension_numbers = #tpu.dot_dimension_numbers<[1], [0], [0], [1], [0, 0, 1, 1], [], []>} : vector<8x16xbf16>, vector<16x512xbf16>, vector<8x512xf32> -> vector<8x512xf32>
    %c0_3 = arith.constant 0 : index
    %c0_4 = arith.constant 0 : index
    %3 = vector.load %arg3[%c0_3, %c0_4] : memref<1x512xf32, #tpu.memory_space<vmem>>, vector<1x512xf32>
    %4 = vector.broadcast %3 : vector<1x512xf32> to vector<8x512xf32>
    %5 = arith.addf %2, %4 : vector<8x512xf32>
    %cst_5 = arith.constant 5.000000e-01 : f32
    %6 = vector.broadcast %cst_5 : f32 to vector<8x512xf32>
    %7 = arith.mulf %6, %5 : vector<8x512xf32>
    %cst_6 = arith.constant 5.000000e-01 : f32
    %8 = vector.broadcast %cst_6 : f32 to vector<8x512xf32>
    %9 = arith.mulf %8, %5 : vector<8x512xf32>
    %10 = math.tanh %9 : vector<8x512xf32>
    %cst_7 = arith.constant 1.000000e+00 : f32
    %11 = vector.broadcast %cst_7 : f32 to vector<8x512xf32>
    %12 = arith.addf %11, %10 : vector<8x512xf32>
    %13 = arith.mulf %7, %12 : vector<8x512xf32>
    %14 = arith.truncf %13 : vector<8x512xf32> to vector<8x512xbf16>
    %c0_8 = arith.constant 0 : index
    %c0_9 = arith.constant 0 : index
    %15 = vector.load %arg4[%c0_8, %c0_9] : memref<512x512xbf16, #tpu.memory_space<vmem>>, vector<512x512xbf16>
    %cst_10 = arith.constant dense<0.000000e+00> : vector<8x512xf32>
    %16 = tpu.matmul %14, %15, %cst_10 {dimension_numbers = #tpu.dot_dimension_numbers<[1], [0], [0], [1], [0, 0, 1, 1], [], []>} : vector<8x512xbf16>, vector<512x512xbf16>, vector<8x512xf32> -> vector<8x512xf32>
    %c0_11 = arith.constant 0 : index
    %c0_12 = arith.constant 0 : index
    %17 = vector.load %arg5[%c0_11, %c0_12] : memref<1x512xf32, #tpu.memory_space<vmem>>, vector<1x512xf32>
    %18 = vector.broadcast %17 : vector<1x512xf32> to vector<8x512xf32>
    %19 = arith.addf %16, %18 : vector<8x512xf32>
    %cst_13 = arith.constant 5.000000e-01 : f32
    %20 = vector.broadcast %cst_13 : f32 to vector<8x512xf32>
    %21 = arith.mulf %20, %19 : vector<8x512xf32>
    %cst_14 = arith.constant 5.000000e-01 : f32
    %22 = vector.broadcast %cst_14 : f32 to vector<8x512xf32>
    %23 = arith.mulf %22, %19 : vector<8x512xf32>
    %24 = math.tanh %23 : vector<8x512xf32>
    %cst_15 = arith.constant 1.000000e+00 : f32
    %25 = vector.broadcast %cst_15 : f32 to vector<8x512xf32>
    %26 = arith.addf %25, %24 : vector<8x512xf32>
    %27 = arith.mulf %21, %26 : vector<8x512xf32>
    %28 = arith.truncf %27 : vector<8x512xf32> to vector<8x512xbf16>
    %c0_16 = arith.constant 0 : index
    %c0_17 = arith.constant 0 : index
    %29 = vector.load %arg6[%c0_16, %c0_17] : memref<512x512xbf16, #tpu.memory_space<vmem>>, vector<512x512xbf16>
    %cst_18 = arith.constant dense<0.000000e+00> : vector<8x512xf32>
    %30 = tpu.matmul %28, %29, %cst_18 {dimension_numbers = #tpu.dot_dimension_numbers<[1], [0], [0], [1], [0, 0, 1, 1], [], []>} : vector<8x512xbf16>, vector<512x512xbf16>, vector<8x512xf32> -> vector<8x512xf32>
    %c0_19 = arith.constant 0 : index
    %c0_20 = arith.constant 0 : index
    %31 = vector.load %arg7[%c0_19, %c0_20] : memref<1x512xf32, #tpu.memory_space<vmem>>, vector<1x512xf32>
    %32 = vector.broadcast %31 : vector<1x512xf32> to vector<8x512xf32>
    %33 = arith.addf %30, %32 : vector<8x512xf32>
    %cst_21 = arith.constant 5.000000e-01 : f32
    %34 = vector.broadcast %cst_21 : f32 to vector<8x512xf32>
    %35 = arith.mulf %34, %33 : vector<8x512xf32>
    %cst_22 = arith.constant 5.000000e-01 : f32
    %36 = vector.broadcast %cst_22 : f32 to vector<8x512xf32>
    %37 = arith.mulf %36, %33 : vector<8x512xf32>
    %38 = math.tanh %37 : vector<8x512xf32>
    %cst_23 = arith.constant 1.000000e+00 : f32
    %39 = vector.broadcast %cst_23 : f32 to vector<8x512xf32>
    %40 = arith.addf %39, %38 : vector<8x512xf32>
    %41 = arith.mulf %35, %40 : vector<8x512xf32>
    %42 = arith.truncf %41 : vector<8x512xf32> to vector<8x512xbf16>
    %c0_24 = arith.constant 0 : index
    %c0_25 = arith.constant 0 : index
    %43 = vector.load %arg8[%c0_24, %c0_25] : memref<512x784xbf16, #tpu.memory_space<vmem>>, vector<512x784xbf16>
    %cst_26 = arith.constant dense<0.000000e+00> : vector<8x784xf32>
    %44 = tpu.matmul %42, %43, %cst_26 {dimension_numbers = #tpu.dot_dimension_numbers<[1], [0], [0], [1], [0, 0, 1, 1], [], []>} : vector<8x512xbf16>, vector<512x784xbf16>, vector<8x784xf32> -> vector<8x784xf32>
    %c0_27 = arith.constant 0 : index
    %c0_28 = arith.constant 0 : index
    %45 = vector.load %arg9[%c0_27, %c0_28] : memref<1x784xf32, #tpu.memory_space<vmem>>, vector<1x784xf32>
    %46 = vector.broadcast %45 : vector<1x784xf32> to vector<8x784xf32>
    %47 = arith.addf %44, %46 : vector<8x784xf32>
    %c0_29 = arith.constant 0 : index
    %c0_30 = arith.constant 0 : index
    %48 = vector.load %arg10[%c0_29, %c0_30] : memref<8x784xf32, #tpu.memory_space<vmem>>, vector<8x784xf32>
    tpu.vector_store %arg10[%c0_29, %c0_30], %47 {strides = array<i32>} : memref<8x784xf32, #tpu.memory_space<vmem>>, vector<8x784xf32>,
    return
  }
  func.func @transform_0(%arg0: i32) -> (i32, i32) {
    %c0_i32 = arith.constant 0 : i32
    %c0_i32_0 = arith.constant 0 : i32
    return %arg0, %c0_i32 : i32, i32
  }
  func.func @transform_1(%arg0: i32) -> (i32, i32) {
    %c0_i32 = arith.constant 0 : i32
    %c0_i32_0 = arith.constant 0 : i32
    %c0_i32_1 = arith.constant 0 : i32
    return %c0_i32, %c0_i32_0 : i32, i32
  }
  func.func @transform_2(%arg0: i32) -> (i32, i32) {
    %c0_i32 = arith.constant 0 : i32
    %c0_i32_0 = arith.constant 0 : i32
    %c0_i32_1 = arith.constant 0 : i32
    return %c0_i32, %c0_i32_0 : i32, i32
  }
  func.func @transform_3(%arg0: i32) -> (i32, i32) {
    %c0_i32 = arith.constant 0 : i32
    %c0_i32_0 = arith.constant 0 : i32
    %c0_i32_1 = arith.constant 0 : i32
    return %c0_i32, %c0_i32_0 : i32, i32
  }
  func.func @transform_4(%arg0: i32) -> (i32, i32) {
    %c0_i32 = arith.constant 0 : i32
    %c0_i32_0 = arith.constant 0 : i32
    %c0_i32_1 = arith.constant 0 : i32
    return %c0_i32, %c0_i32_0 : i32, i32
  }
  func.func @transform_5(%arg0: i32) -> (i32, i32) {
    %c0_i32 = arith.constant 0 : i32
    %c0_i32_0 = arith.constant 0 : i32
    %c0_i32_1 = arith.constant 0 : i32
    return %c0_i32, %c0_i32_0 : i32, i32
  }
  func.func @transform_6(%arg0: i32) -> (i32, i32) {
    %c0_i32 = arith.constant 0 : i32
    %c0_i32_0 = arith.constant 0 : i32
    %c0_i32_1 = arith.constant 0 : i32
    return %c0_i32, %c0_i32_0 : i32, i32
  }
  func.func @transform_7(%arg0: i32) -> (i32, i32) {
    %c0_i32 = arith.constant 0 : i32
    %c0_i32_0 = arith.constant 0 : i32
    %c0_i32_1 = arith.constant 0 : i32
    return %c0_i32, %c0_i32_0 : i32, i32
  }
  func.func @transform_8(%arg0: i32) -> (i32, i32) {
    %c0_i32 = arith.constant 0 : i32
    %c0_i32_0 = arith.constant 0 : i32
    %c0_i32_1 = arith.constant 0 : i32
    return %c0_i32, %c0_i32_0 : i32, i32
  }
  func.func @transform_9(%arg0: i32) -> (i32, i32) {
    %c0_i32 = arith.constant 0 : i32
    %c0_i32_0 = arith.constant 0 : i32
    return %arg0, %c0_i32 : i32, i32
  }
}

</mosaic_0001>

<llo_original>
// kernel: tpu_custom_call.1
$region0: #{tpu_custom_call.1}
  #allocation0 [shape = 'u32[]', space=smem, size = 0x4, offset = 0x4, fixed_abs, tag = 'smem constant byte address 0x4 - core index']
  #allocation1 [shape = 'u32[72,128]{1,0:T(1,128)}', space=vmem, size = 0x9000, scoped, tag = 'internal scratch']
  %s0 = inlined_call_operand.vmem [shape: bf16[8,16], index: 0, kind: input, shape index: {}]
  %s1 = inlined_call_operand.vmem [shape: bf16[16,512], index: 1, kind: input, shape index: {}]
  %s2 = inlined_call_operand.vmem [shape: f32[1,512], index: 2, kind: input, shape index: {}]
  %s3 = inlined_call_operand.vmem [shape: bf16[512,512], index: 3, kind: input, shape index: {}]
  %s4 = inlined_call_operand.vmem [shape: f32[1,512], index: 4, kind: input, shape index: {}]
  %s5 = inlined_call_operand.vmem [shape: bf16[512,512], index: 5, kind: input, shape index: {}]
  %s6 = inlined_call_operand.vmem [shape: f32[1,512], index: 6, kind: input, shape index: {}]
  %s7 = inlined_call_operand.vmem [shape: bf16[512,784], index: 7, kind: input, shape index: {}]
  %s8 = inlined_call_operand.vmem [shape: f32[1,784], index: 8, kind: input, shape index: {}]
  %s9 = inlined_call_operand.hbm [shape: f32[8,784], index: 9, kind: output, shape index: {}]
  %s10 = sld [smem:[#allocation0]]
  $region46: #{tpu_custom_call.1} parent=0
    _
  %s12 = ssub.s32 1, %s10
  %s13 = scalar_select 0, %s12, %s10
  $region1: #{tpu_custom_call.1} parent=0
    #allocation2 [shape = 'u8[28672]{0}', space=vmem, size = 0x7000, scoped, tag = 'output window, operand 0, single buffered']
    #allocation3 [shape = 's32[1]{0}', space=sflag, size = 0x4, scoped, tag = 'scoped memory for tpu_custom_call.1']
    %14 = vsyncpa [#allocation3], 0
    // Predicated region
    $region2: #{tpu_custom_call.1} parent=1 // pred_check
      _
    $region3: #{tpu_custom_call.1} parent=1 // pred_check_branch
      %16 = sbr.rel (0) target = $region5
    $region4: #{tpu_custom_call.1} parent=1 // pred_region
      _
    $region5: #{tpu_custom_call.1} parent=1 // pred_fallthru
      _
    // Predicated region
    $region6: #{tpu_custom_call.1} parent=1 // pred_check
      _
    $region7: #{tpu_custom_call.1} parent=1 // pred_check_branch
      %18 = sbr.rel (0) target = $region9
    $region8: #{tpu_custom_call.1} parent=1 // pred_region
      _
    $region9: #{tpu_custom_call.1} parent=1 // pred_fallthru
      _
    // Predicated region
    $region10: #{tpu_custom_call.1} parent=1 // pred_check
      _
    $region11: #{tpu_custom_call.1} parent=1 // pred_check_branch
      %20 = sbr.rel (0) target = $region13
    $region12: #{tpu_custom_call.1} parent=1 // pred_region
      _
    $region13: #{tpu_custom_call.1} parent=1 // pred_fallthru
      _
    // Predicated region
    $region14: #{tpu_custom_call.1} parent=1 // pred_check
      _
    $region15: #{tpu_custom_call.1} parent=1 // pred_check_branch
      %22 = sbr.rel (0) target = $region17
    $region16: #{tpu_custom_call.1} parent=1 // pred_region
      _
    $region17: #{tpu_custom_call.1} parent=1 // pred_fallthru
      _
    // Predicated region
    $region18: #{tpu_custom_call.1} parent=1 // pred_check
      _
    $region19: #{tpu_custom_call.1} parent=1 // pred_check_branch
      %24 = sbr.rel (0) target = $region21
    $region20: #{tpu_custom_call.1} parent=1 // pred_region
      _
    $region21: #{tpu_custom_call.1} parent=1 // pred_fallthru
      _
    // Predicated region
    $region22: #{tpu_custom_call.1} parent=1 // pred_check
      _
    $region23: #{tpu_custom_call.1} parent=1 // pred_check_branch
      %26 = sbr.rel (0) target = $region25
    $region24: #{tpu_custom_call.1} parent=1 // pred_region
      _
    $region25: #{tpu_custom_call.1} parent=1 // pred_fallthru
      _
    // Predicated region
    $region26: #{tpu_custom_call.1} parent=1 // pred_check
      _
    $region27: #{tpu_custom_call.1} parent=1 // pred_check_branch
      %28 = sbr.rel (0) target = $region29
    $region28: #{tpu_custom_call.1} parent=1 // pred_region
      _
    $region29: #{tpu_custom_call.1} parent=1 // pred_fallthru
      _
    // Predicated region
    $region30: #{tpu_custom_call.1} parent=1 // pred_check
      _
    $region31: #{tpu_custom_call.1} parent=1 // pred_check_branch
      %30 = sbr.rel (0) target = $region33
    $region32: #{tpu_custom_call.1} parent=1 // pred_region
      _
    $region33: #{tpu_custom_call.1} parent=1 // pred_fallthru
      _
    // Predicated region
    $region34: #{tpu_custom_call.1} parent=1 // pred_check
      _
    $region35: #{tpu_custom_call.1} parent=1 // pred_check_branch
      %32 = sbr.rel (0) target = $region37
    $region36: #{tpu_custom_call.1} parent=1 // pred_region
      _
    $region37: #{tpu_custom_call.1} parent=1 // pred_fallthru
      _
    %v34 = vld [vmem:[%s0] sm:$0xf]
    %v35 = vld [vmem:[%s1] sm:$0xff]
    %v36 = vld [vmem:[%s1 + $0x8] sm:$0xff]
    %v37 = vld [vmem:[%s1 + $0x10] sm:$0xff]
    %v38 = vld [vmem:[%s1 + $0x18] sm:$0xff]
    %v39 = vld [vmem:[%s2] sm:$0xf]
    %v41 = vperm.slane %v39, 0
    %v42 = vperm.slane %v39, 1
    %v43 = vperm.slane %v39, 2
    %v44 = vperm.slane %v39, 3
    %v53 = vunpack.c.l.b16 %v35
    %v54 = vunpack.c.h.b16 %v35
    %v55 = vunpack.c.l.b16 %v36
    %v56 = vunpack.c.h.b16 %v36
    %v57 = vunpack.c.l.b16 %v37
    %v58 = vunpack.c.h.b16 %v37
    %v59 = vunpack.c.l.b16 %v38
    %v60 = vunpack.c.h.b16 %v38
    %v61 = vpack.c.b16 %v57, %v53
    %v62 = vpack.c.b16 %v58, %v54
    %v63 = vpack.c.b16 %v59, %v55
    %v64 = vpack.c.b16 %v60, %v56
    %vm69 = vcmask 130048
    %v71 = vsel %vm69, %v34, 0
    %73 = vmatpush.bf16.msra.mxu0 0
    %74 = vmatpush.bf16.msra.mxu0 0
    %75 = vmatpush.bf16.msra.mxu0 0
    %76 = vmatpush.bf16.msra.mxu0 0
    %77 = vmatpush.bf16.msra.mxu0 0
    %78 = vmatpush.bf16.msra.mxu0 0
    %79 = vmatpush.bf16.msra.mxu0 0
    %80 = vmatpush.bf16.msra.mxu0 %v61
    %81 = vmatmul.bf16.gmra.mxu0 %v71
    %v82 = vpop.f32.mrf.mxu0
    %v83 = vadd.f32 %v41, %v82
    %v84 = vpop.f32.mrf.mxu0
    %85 = vdwg.mxu0
    %86 = vmatpush.bf16.msra.mxu0 0
    %87 = vmatpush.bf16.msra.mxu0 0
    %88 = vmatpush.bf16.msra.mxu0 0
    %89 = vmatpush.bf16.msra.mxu0 0
    %90 = vmatpush.bf16.msra.mxu0 0
    %91 = vmatpush.bf16.msra.mxu0 0
    %92 = vmatpush.bf16.msra.mxu0 0
    %93 = vmatpush.bf16.msra.mxu0 %v62
    %94 = vmatmul.bf16.gmra.mxu0 %v71
    %v95 = vpop.f32.mrf.mxu0
    %v96 = vadd.f32 %v42, %v95
    %v97 = vpop.f32.mrf.mxu0
    %98 = vdwg.mxu0
    %99 = vmatpush.bf16.msra.mxu0 0
    %100 = vmatpush.bf16.msra.mxu0 0
    %101 = vmatpush.bf16.msra.mxu0 0
    %102 = vmatpush.bf16.msra.mxu0 0
    %103 = vmatpush.bf16.msra.mxu0 0
    %104 = vmatpush.bf16.msra.mxu0 0
    %105 = vmatpush.bf16.msra.mxu0 0
    %106 = vmatpush.bf16.msra.mxu0 %v63
    %107 = vmatmul.bf16.gmra.mxu0 %v71
    %v108 = vpop.f32.mrf.mxu0
    %v109 = vadd.f32 %v43, %v108
    %v110 = vpop.f32.mrf.mxu0
    %111 = vdwg.mxu0
    %112 = vmatpush.bf16.msra.mxu0 0
    %113 = vmatpush.bf16.msra.mxu0 0
    %114 = vmatpush.bf16.msra.mxu0 0
    %115 = vmatpush.bf16.msra.mxu0 0
    %116 = vmatpush.bf16.msra.mxu0 0
    %117 = vmatpush.bf16.msra.mxu0 0
    %118 = vmatpush.bf16.msra.mxu0 0
    %119 = vmatpush.bf16.msra.mxu0 %v64
    %120 = vmatmul.bf16.gmra.mxu0 %v71
    %v121 = vpop.f32.mrf.mxu0
    %v122 = vadd.f32 %v44, %v121
    %v123 = vpop.f32.mrf.mxu0
    %124 = vdwg.mxu0
    %v125 = vmul.f32 %v83, 0.5
    %v126 = vmul.f32 %v96, 0.5
    %v127 = vmul.f32 %v109, 0.5
    %v128 = vmul.f32 %v122, 0.5
    %v129 = vtanh.pop %v125
    %v130 = vtanh.pop %v126
    %v131 = vtanh.pop %v127
    %v132 = vtanh.pop %v128
    %v133 = vadd.f32 %v129, 1.0
    %v134 = vadd.f32 %v130, 1.0
    %v135 = vadd.f32 %v131, 1.0
    %v136 = vadd.f32 %v132, 1.0
    %v137 = vmul.f32 %v125, %v133
    %v138 = vmul.f32 %v126, %v134
    %v139 = vmul.f32 %v127, %v135
    %v140 = vmul.f32 %v128, %v136
    %v141 = vpack.c.bf16 %v137, %v137
    %v142 = vpack.c.bf16 %v138, %v138
    %v143 = vpack.c.bf16 %v139, %v139
    %v144 = vpack.c.bf16 %v140, %v140
    %v145 = vld [vmem:[%s3] sm:$0xff]
    %v146 = vld [vmem:[%s3 + $0x8] sm:$0xff]
    %v147 = vld [vmem:[%s3 + $0x10] sm:$0xff]
    %v148 = vld [vmem:[%s3 + $0x18] sm:$0xff]
    %v149 = vld [vmem:[%s3 + $0x20] sm:$0xff]
    %v150 = vld [vmem:[%s3 + $0x28] sm:$0xff]
    %v151 = vld [vmem:[%s3 + $0x30] sm:$0xff]
    %v152 = vld [vmem:[%s3 + $0x38] sm:$0xff]
    %v153 = vld [vmem:[%s3 + $0x40] sm:$0xff]
    %v154 = vld [vmem:[%s3 + $0x48] sm:$0xff]
    %v155 = vld [vmem:[%s3 + $0x50] sm:$0xff]
    %v156 = vld [vmem:[%s3 + $0x58] sm:$0xff]
    %v157 = vld [vmem:[%s3 + $0x60] sm:$0xff]
    %v158 = vld [vmem:[%s3 + $0x68] sm:$0xff]
    %v159 = vld [vmem:[%s3 + $0x70] sm:$0xff]
    %v160 = vld [vmem:[%s3 + $0x78] sm:$0xff]
    %v161 = vld [vmem:[%s3 + $0x80] sm:$0xff]
    %v162 = vld [vmem:[%s3 + $0x88] sm:$0xff]
    %v163 = vld [vmem:[%s3 + $0x90] sm:$0xff]
    %v164 = vld [vmem:[%s3 + $0x98] sm:$0xff]
    %v165 = vld [vmem:[%s3 + $0xa0] sm:$0xff]
    %v166 = vld [vmem:[%s3 + $0xa8] sm:$0xff]
    %v167 = vld [vmem:[%s3 + $0xb0] sm:$0xff]
    %v168 = vld [vmem:[%s3 + $0xb8] sm:$0xff]
    %v169 = vld [vmem:[%s3 + $0xc0] sm:$0xff]
    %v170 = vld [vmem:[%s3 + $0xc8] sm:$0xff]
    %v171 = vld [vmem:[%s3 + $0xd0] sm:$0xff]
    %v172 = vld [vmem:[%s3 + $0xd8] sm:$0xff]
    %v173 = vld [vmem:[%s3 + $0xe0] sm:$0xff]
    %v174 = vld [vmem:[%s3 + $0xe8] sm:$0xff]
    %v175 = vld [vmem:[%s3 + $0xf0] sm:$0xff]
    %v176 = vld [vmem:[%s3 + $0xf8] sm:$0xff]
    %v177 = vld [vmem:[%s3 + $0x100] sm:$0xff]
    %v178 = vld [vmem:[%s3 + $0x108] sm:$0xff]
    %v179 = vld [vmem:[%s3 + $0x110] sm:$0xff]
    %v180 = vld [vmem:[%s3 + $0x118] sm:$0xff]
    %v181 = vld [vmem:[%s3 + $0x120] sm:$0xff]
    %v182 = vld [vmem:[%s3 + $0x128] sm:$0xff]
    %v183 = vld [vmem:[%s3 + $0x130] sm:$0xff]
    %v184 = vld [vmem:[%s3 + $0x138] sm:$0xff]
    %v185 = vld [vmem:[%s3 + $0x140] sm:$0xff]
    %v186 = vld [vmem:[%s3 + $0x148] sm:$0xff]
    %v187 = vld [vmem:[%s3 + $0x150] sm:$0xff]
    %v188 = vld [vmem:[%s3 + $0x158] sm:$0xff]
    %v189 = vld [vmem:[%s3 + $0x160] sm:$0xff]
    %v190 = vld [vmem:[%s3 + $0x168] sm:$0xff]
    %v191 = vld [vmem:[%s3 + $0x170] sm:$0xff]
    %v192 = vld [vmem:[%s3 + $0x178] sm:$0xff]
    %v193 = vld [vmem:[%s3 + $0x180] sm:$0xff]
    %v194 = vld [vmem:[%s3 + $0x188] sm:$0xff]
    %v195 = vld [vmem:[%s3 + $0x190] sm:$0xff]
    %v196 = vld [vmem:[%s3 + $0x198] sm:$0xff]
    %v197 = vld [vmem:[%s3 + $0x1a0] sm:$0xff]
    %v198 = vld [vmem:[%s3 + $0x1a8] sm:$0xff]
    %v199 = vld [vmem:[%s3 + $0x1b0] sm:$0xff]
    %v200 = vld [vmem:[%s3 + $0x1b8] sm:$0xff]
    %v201 = vld [vmem:[%s3 + $0x1c0] sm:$0xff]
    %v202 = vld [vmem:[%s3 + $0x1c8] sm:$0xff]
    %v203 = vld [vmem:[%s3 + $0x1d0] sm:$0xff]
    %v204 = vld [vmem:[%s3 + $0x1d8] sm:$0xff]
    %v205 = vld [vmem:[%s3 + $0x1e0] sm:$0xff]
    %v206 = vld [vmem:[%s3 + $0x1e8] sm:$0xff]
    %v207 = vld [vmem:[%s3 + $0x1f0] sm:$0xff]
    %v208 = vld [vmem:[%s3 + $0x1f8] sm:$0xff]
    %v209 = vld [vmem:[%s3 + $0x200] sm:$0xff]
    %v210 = vld [vmem:[%s3 + $0x208] sm:$0xff]
    %v211 = vld [vmem:[%s3 + $0x210] sm:$0xff]
    %v212 = vld [vmem:[%s3 + $0x218] sm:$0xff]
    %v213 = vld [vmem:[%s3 + $0x220] sm:$0xff]
    %v214 = vld [vmem:[%s3 + $0x228] sm:$0xff]
    %v215 = vld [vmem:[%s3 + $0x230] sm:$0xff]
    %v216 = vld [vmem:[%s3 + $0x238] sm:$0xff]
    %v217 = vld [vmem:[%s3 + $0x240] sm:$0xff]
    %v218 = vld [vmem:[%s3 + $0x248] sm:$0xff]
    %v219 = vld [vmem:[%s3 + $0x250] sm:$0xff]
    %v220 = vld [vmem:[%s3 + $0x258] sm:$0xff]
    %v221 = vld [vmem:[%s3 + $0x260] sm:$0xff]
    %v222 = vld [vmem:[%s3 + $0x268] sm:$0xff]
    %v223 = vld [vmem:[%s3 + $0x270] sm:$0xff]
    %v224 = vld [vmem:[%s3 + $0x278] sm:$0xff]
    %v225 = vld [vmem:[%s3 + $0x280] sm:$0xff]
    %v226 = vld [vmem:[%s3 + $0x288] sm:$0xff]
    %v227 = vld [vmem:[%s3 + $0x290] sm:$0xff]
    %v228 = vld [vmem:[%s3 + $0x298] sm:$0xff]
    %v229 = vld [vmem:[%s3 + $0x2a0] sm:$0xff]
    %v230 = vld [vmem:[%s3 + $0x2a8] sm:$0xff]
    %v231 = vld [vmem:[%s3 + $0x2b0] sm:$0xff]
    %v232 = vld [vmem:[%s3 + $0x2b8] sm:$0xff]
    %v233 = vld [vmem:[%s3 + $0x2c0] sm:$0xff]
    %v234 = vld [vmem:[%s3 + $0x2c8] sm:$0xff]
    %v235 = vld [vmem:[%s3 + $0x2d0] sm:$0xff]
    %v236 = vld [vmem:[%s3 + $0x2d8] sm:$0xff]
    %v237 = vld [vmem:[%s3 + $0x2e0] sm:$0xff]
    %v238 = vld [vmem:[%s3 + $0x2e8] sm:$0xff]
    %v239 = vld [vmem:[%s3 + $0x2f0] sm:$0xff]
    %v240 = vld [vmem:[%s3 + $0x2f8] sm:$0xff]
    %v241 = vld [vmem:[%s3 + $0x300] sm:$0xff]
    %v242 = vld [vmem:[%s3 + $0x308] sm:$0xff]
    %v243 = vld [vmem:[%s3 + $0x310] sm:$0xff]
    %v244 = vld [vmem:[%s3 + $0x318] sm:$0xff]
    %v245 = vld [vmem:[%s3 + $0x320] sm:$0xff]
    %v246 = vld [vmem:[%s3 + $0x328] sm:$0xff]
    %v247 = vld [vmem:[%s3 + $0x330] sm:$0xff]
    %v248 = vld [vmem:[%s3 + $0x338] sm:$0xff]
    %v249 = vld [vmem:[%s3 + $0x340] sm:$0xff]
    %v250 = vld [vmem:[%s3 + $0x348] sm:$0xff]
    %v251 = vld [vmem:[%s3 + $0x350] sm:$0xff]
    %v252 = vld [vmem:[%s3 + $0x358] sm:$0xff]
    %v253 = vld [vmem:[%s3 + $0x360] sm:$0xff]
    %v254 = vld [vmem:[%s3 + $0x368] sm:$0xff]
    %v255 = vld [vmem:[%s3 + $0x370] sm:$0xff]
    %v256 = vld [vmem:[%s3 + $0x378] sm:$0xff]
    %v257 = vld [vmem:[%s3 + $0x380] sm:$0xff]
    %v258 = vld [vmem:[%s3 + $0x388] sm:$0xff]
    %v259 = vld [vmem:[%s3 + $0x390] sm:$0xff]
    %v260 = vld [vmem:[%s3 + $0x398] sm:$0xff]
    %v261 = vld [vmem:[%s3 + $0x3a0] sm:$0xff]
    %v262 = vld [vmem:[%s3 + $0x3a8] sm:$0xff]
    %v263 = vld [vmem:[%s3 + $0x3b0] sm:$0xff]
    %v264 = vld [vmem:[%s3 + $0x3b8] sm:$0xff]
    %v265 = vld [vmem:[%s3 + $0x3c0] sm:$0xff]
    %v266 = vld [vmem:[%s3 + $0x3c8] sm:$0xff]
    %v267 = vld [vmem:[%s3 + $0x3d0] sm:$0xff]
    %v268 = vld [vmem:[%s3 + $0x3d8] sm:$0xff]
    %v269 = vld [vmem:[%s3 + $0x3e0] sm:$0xff]
    %v270 = vld [vmem:[%s3 + $0x3e8] sm:$0xff]
    %v271 = vld [vmem:[%s3 + $0x3f0] sm:$0xff]
    %v272 = vld [vmem:[%s3 + $0x3f8] sm:$0xff]
    %v273 = vld [vmem:[%s4] sm:$0xf]
    %v275 = vperm.slane %v273, 0
    %v276 = vperm.slane %v273, 1
    %v277 = vperm.slane %v273, 2
    %v278 = vperm.slane %v273, 3
    %v411 = vunpack.c.l.b16 %v145
    %v412 = vunpack.c.h.b16 %v145
    %v413 = vunpack.c.l.b16 %v146
    %v414 = vunpack.c.h.b16 %v146
    %v415 = vunpack.c.l.b16 %v147
    %v416 = vunpack.c.h.b16 %v147
    %v417 = vunpack.c.l.b16 %v148
    %v418 = vunpack.c.h.b16 %v148
    %v419 = vunpack.c.l.b16 %v149
    %v420 = vunpack.c.h.b16 %v149
    %v421 = vunpack.c.l.b16 %v150
    %v422 = vunpack.c.h.b16 %v150
    %v423 = vunpack.c.l.b16 %v151
    %v424 = vunpack.c.h.b16 %v151
    %v425 = vunpack.c.l.b16 %v152
    %v426 = vunpack.c.h.b16 %v152
    %v427 = vunpack.c.l.b16 %v153
    %v428 = vunpack.c.h.b16 %v153
    %v429 = vunpack.c.l.b16 %v154
    %v430 = vunpack.c.h.b16 %v154
    %v431 = vunpack.c.l.b16 %v155
    %v432 = vunpack.c.h.b16 %v155
    %v433 = vunpack.c.l.b16 %v156
    %v434 = vunpack.c.h.b16 %v156
    %v435 = vunpack.c.l.b16 %v157
    %v436 = vunpack.c.h.b16 %v157
    %v437 = vunpack.c.l.b16 %v158
    %v438 = vunpack.c.h.b16 %v158
    %v439 = vunpack.c.l.b16 %v159
    %v440 = vunpack.c.h.b16 %v159
    %v441 = vunpack.c.l.b16 %v160
    %v442 = vunpack.c.h.b16 %v160
    %v443 = vunpack.c.l.b16 %v161
    %v444 = vunpack.c.h.b16 %v161
    %v445 = vunpack.c.l.b16 %v162
    %v446 = vunpack.c.h.b16 %v162
    %v447 = vunpack.c.l.b16 %v163
    %v448 = vunpack.c.h.b16 %v163
    %v449 = vunpack.c.l.b16 %v164
    %v450 = vunpack.c.h.b16 %v164
    %v451 = vunpack.c.l.b16 %v165
    %v452 = vunpack.c.h.b16 %v165
    %v453 = vunpack.c.l.b16 %v166
    %v454 = vunpack.c.h.b16 %v166
    %v455 = vunpack.c.l.b16 %v167
    %v456 = vunpack.c.h.b16 %v167
    %v457 = vunpack.c.l.b16 %v168
    %v458 = vunpack.c.h.b16 %v168
    %v459 = vunpack.c.l.b16 %v169
    %v460 = vunpack.c.h.b16 %v169
    %v461 = vunpack.c.l.b16 %v170
    %v462 = vunpack.c.h.b16 %v170
    %v463 = vunpack.c.l.b16 %v171
    %v464 = vunpack.c.h.b16 %v171
    %v465 = vunpack.c.l.b16 %v172
    %v466 = vunpack.c.h.b16 %v172
    %v467 = vunpack.c.l.b16 %v173
    %v468 = vunpack.c.h.b16 %v173
    %v469 = vunpack.c.l.b16 %v174
    %v470 = vunpack.c.h.b16 %v174
    %v471 = vunpack.c.l.b16 %v175
    %v472 = vunpack.c.h.b16 %v175
    %v473 = vunpack.c.l.b16 %v176
    %v474 = vunpack.c.h.b16 %v176
    %v475 = vunpack.c.l.b16 %v177
    %v476 = vunpack.c.h.b16 %v177
    %v477 = vunpack.c.l.b16 %v178
    %v478 = vunpack.c.h.b16 %v178
    %v479 = vunpack.c.l.b16 %v179
    %v480 = vunpack.c.h.b16 %v179
    %v481 = vunpack.c.l.b16 %v180
    %v482 = vunpack.c.h.b16 %v180
    %v483 = vunpack.c.l.b16 %v181
    %v484 = vunpack.c.h.b16 %v181
    %v485 = vunpack.c.l.b16 %v182
    %v486 = vunpack.c.h.b16 %v182
    %v487 = vunpack.c.l.b16 %v183
    %v488 = vunpack.c.h.b16 %v183
    %v489 = vunpack.c.l.b16 %v184
    %v490 = vunpack.c.h.b16 %v184
    %v491 = vunpack.c.l.b16 %v185
    %v492 = vunpack.c.h.b16 %v185
    %v493 = vunpack.c.l.b16 %v186
    %v494 = vunpack.c.h.b16 %v186
    %v495 = vunpack.c.l.b16 %v187
    %v496 = vunpack.c.h.b16 %v187
    %v497 = vunpack.c.l.b16 %v188
    %v498 = vunpack.c.h.b16 %v188
    %v499 = vunpack.c.l.b16 %v189
    %v500 = vunpack.c.h.b16 %v189
    %v501 = vunpack.c.l.b16 %v190
    %v502 = vunpack.c.h.b16 %v190
    %v503 = vunpack.c.l.b16 %v191
    %v504 = vunpack.c.h.b16 %v191
    %v505 = vunpack.c.l.b16 %v192
    %v506 = vunpack.c.h.b16 %v192
    %v507 = vunpack.c.l.b16 %v193
    %v508 = vunpack.c.h.b16 %v193
    %v509 = vunpack.c.l.b16 %v194
    %v510 = vunpack.c.h.b16 %v194
    %v511 = vunpack.c.l.b16 %v195
    %v512 = vunpack.c.h.b16 %v195
    %v513 = vunpack.c.l.b16 %v196
    %v514 = vunpack.c.h.b16 %v196
    %v515 = vunpack.c.l.b16 %v197
    %v516 = vunpack.c.h.b16 %v197
    %v517 = vunpack.c.l.b16 %v198
    %v518 = vunpack.c.h.b16 %v198
    %v519 = vunpack.c.l.b16 %v199
    %v520 = vunpack.c.h.b16 %v199
    %v521 = vunpack.c.l.b16 %v200
    %v522 = vunpack.c.h.b16 %v200
    %v523 = vunpack.c.l.b16 %v201
    %v524 = vunpack.c.h.b16 %v201
    %v525 = vunpack.c.l.b16 %v202
    %v526 = vunpack.c.h.b16 %v202
    %v527 = vunpack.c.l.b16 %v203
    %v528 = vunpack.c.h.b16 %v203
    %v529 = vunpack.c.l.b16 %v204
    %v530 = vunpack.c.h.b16 %v204
    %v531 = vunpack.c.l.b16 %v205
    %v532 = vunpack.c.h.b16 %v205
    %v533 = vunpack.c.l.b16 %v206
    %v534 = vunpack.c.h.b16 %v206
    %v535 = vunpack.c.l.b16 %v207
    %v536 = vunpack.c.h.b16 %v207
    %v537 = vunpack.c.l.b16 %v208
    %v538 = vunpack.c.h.b16 %v208
    %v539 = vunpack.c.l.b16 %v209
    %v540 = vunpack.c.h.b16 %v209
    %v541 = vunpack.c.l.b16 %v210
    %v542 = vunpack.c.h.b16 %v210
    %v543 = vunpack.c.l.b16 %v211
    %v544 = vunpack.c.h.b16 %v211
    %v545 = vunpack.c.l.b16 %v212
    %v546 = vunpack.c.h.b16 %v212
    %v547 = vunpack.c.l.b16 %v213
    %v548 = vunpack.c.h.b16 %v213
    %v549 = vunpack.c.l.b16 %v214
    %v550 = vunpack.c.h.b16 %v214
    %v551 = vunpack.c.l.b16 %v215
    %v552 = vunpack.c.h.b16 %v215
    %v553 = vunpack.c.l.b16 %v216
    %v554 = vunpack.c.h.b16 %v216
    %v555 = vunpack.c.l.b16 %v217
    %v556 = vunpack.c.h.b16 %v217
    %v557 = vunpack.c.l.b16 %v218
    %v558 = vunpack.c.h.b16 %v218
    %v559 = vunpack.c.l.b16 %v219
    %v560 = vunpack.c.h.b16 %v219
    %v561 = vunpack.c.l.b16 %v220
    %v562 = vunpack.c.h.b16 %v220
    %v563 = vunpack.c.l.b16 %v221
    %v564 = vunpack.c.h.b16 %v221
    %v565 = vunpack.c.l.b16 %v222
    %v566 = vunpack.c.h.b16 %v222
    %v567 = vunpack.c.l.b16 %v223
    %v568 = vunpack.c.h.b16 %v223
    %v569 = vunpack.c.l.b16 %v224
    %v570 = vunpack.c.h.b16 %v224
    %v571 = vunpack.c.l.b16 %v225
    %v572 = vunpack.c.h.b16 %v225
    %v573 = vunpack.c.l.b16 %v226
    %v574 = vunpack.c.h.b16 %v226
    %v575 = vunpack.c.l.b16 %v227
    %v576 = vunpack.c.h.b16 %v227
    %v577 = vunpack.c.l.b16 %v228
    %v578 = vunpack.c.h.b16 %v228
    %v579 = vunpack.c.l.b16 %v229
    %v580 = vunpack.c.h.b16 %v229
    %v581 = vunpack.c.l.b16 %v230
    %v582 = vunpack.c.h.b16 %v230
    %v583 = vunpack.c.l.b16 %v231
    %v584 = vunpack.c.h.b16 %v231
    %v585 = vunpack.c.l.b16 %v232
    %v586 = vunpack.c.h.b16 %v232
    %v587 = vunpack.c.l.b16 %v233
    %v588 = vunpack.c.h.b16 %v233
    %v589 = vunpack.c.l.b16 %v234
    %v590 = vunpack.c.h.b16 %v234
    %v591 = vunpack.c.l.b16 %v235
    %v592 = vunpack.c.h.b16 %v235
    %v593 = vunpack.c.l.b16 %v236
    %v594 = vunpack.c.h.b16 %v236
    %v595 = vunpack.c.l.b16 %v237
    %v596 = vunpack.c.h.b16 %v237
    %v597 = vunpack.c.l.b16 %v238
    %v598 = vunpack.c.h.b16 %v238
    %v599 = vunpack.c.l.b16 %v239
    %v600 = vunpack.c.h.b16 %v239
    %v601 = vunpack.c.l.b16 %v240
    %v602 = vunpack.c.h.b16 %v240
    %v603 = vunpack.c.l.b16 %v241
    %v604 = vunpack.c.h.b16 %v241
    %v605 = vunpack.c.l.b16 %v242
    %v606 = vunpack.c.h.b16 %v242
    %v607 = vunpack.c.l.b16 %v243
    %v608 = vunpack.c.h.b16 %v243
    %v609 = vunpack.c.l.b16 %v244
    %v610 = vunpack.c.h.b16 %v244
    %v611 = vunpack.c.l.b16 %v245
    %v612 = vunpack.c.h.b16 %v245
    %v613 = vunpack.c.l.b16 %v246
    %v614 = vunpack.c.h.b16 %v246
    %v615 = vunpack.c.l.b16 %v247
    %v616 = vunpack.c.h.b16 %v247
    %v617 = vunpack.c.l.b16 %v248
    %v618 = vunpack.c.h.b16 %v248
    %v619 = vunpack.c.l.b16 %v249
    %v620 = vunpack.c.h.b16 %v249
    %v621 = vunpack.c.l.b16 %v250
    %v622 = vunpack.c.h.b16 %v250
    %v623 = vunpack.c.l.b16 %v251
    %v624 = vunpack.c.h.b16 %v251
    %v625 = vunpack.c.l.b16 %v252
    %v626 = vunpack.c.h.b16 %v252
    %v627 = vunpack.c.l.b16 %v253
    %v628 = vunpack.c.h.b16 %v253
    %v629 = vunpack.c.l.b16 %v254
    %v630 = vunpack.c.h.b16 %v254
    %v631 = vunpack.c.l.b16 %v255
    %v632 = vunpack.c.h.b16 %v255
    %v633 = vunpack.c.l.b16 %v256
    %v634 = vunpack.c.h.b16 %v256
    %v635 = vunpack.c.l.b16 %v257
    %v636 = vunpack.c.h.b16 %v257
    %v637 = vunpack.c.l.b16 %v258
    %v638 = vunpack.c.h.b16 %v258
    %v639 = vunpack.c.l.b16 %v259
    %v640 = vunpack.c.h.b16 %v259
    %v641 = vunpack.c.l.b16 %v260
    %v642 = vunpack.c.h.b16 %v260
    %v643 = vunpack.c.l.b16 %v261
    %v644 = vunpack.c.h.b16 %v261
    %v645 = vunpack.c.l.b16 %v262
    %v646 = vunpack.c.h.b16 %v262
    %v647 = vunpack.c.l.b16 %v263
    %v648 = vunpack.c.h.b16 %v263
    %v649 = vunpack.c.l.b16 %v264
    %v650 = vunpack.c.h.b16 %v264
    %v651 = vunpack.c.l.b16 %v265
    %v652 = vunpack.c.h.b16 %v265
    %v653 = vunpack.c.l.b16 %v266
    %v654 = vunpack.c.h.b16 %v266
    %v655 = vunpack.c.l.b16 %v267
    %v656 = vunpack.c.h.b16 %v267
    %v657 = vunpack.c.l.b16 %v268
    %v658 = vunpack.c.h.b16 %v268
    %v659 = vunpack.c.l.b16 %v269
    %v660 = vunpack.c.h.b16 %v269
    %v661 = vunpack.c.l.b16 %v270
    %v662 = vunpack.c.h.b16 %v270
    %v663 = vunpack.c.l.b16 %v271
    %v664 = vunpack.c.h.b16 %v271
    %v665 = vunpack.c.l.b16 %v272
    %v666 = vunpack.c.h.b16 %v272
    %v667 = vpack.c.b16 %v415, %v411
    %v668 = vpack.c.b16 %v416, %v412
    %v669 = vpack.c.b16 %v417, %v413
    %v670 = vpack.c.b16 %v418, %v414
    %v671 = vpack.c.b16 %v423, %v419
    %v672 = vpack.c.b16 %v424, %v420
    %v673 = vpack.c.b16 %v425, %v421
    %v674 = vpack.c.b16 %v426, %v422
    %v675 = vpack.c.b16 %v431, %v427
    %v676 = vpack.c.b16 %v432, %v428
    %v677 = vpack.c.b16 %v433, %v429
    %v678 = vpack.c.b16 %v434, %v430
    %v679 = vpack.c.b16 %v439, %v435
    %v680 = vpack.c.b16 %v440, %v436
    %v681 = vpack.c.b16 %v441, %v437
    %v682 = vpack.c.b16 %v442, %v438
    %v683 = vpack.c.b16 %v447, %v443
    %v684 = vpack.c.b16 %v448, %v444
    %v685 = vpack.c.b16 %v449, %v445
    %v686 = vpack.c.b16 %v450, %v446
    %v687 = vpack.c.b16 %v455, %v451
    %v688 = vpack.c.b16 %v456, %v452
    %v689 = vpack.c.b16 %v457, %v453
    %v690 = vpack.c.b16 %v458, %v454
    %v691 = vpack.c.b16 %v463, %v459
    %v692 = vpack.c.b16 %v464, %v460
    %v693 = vpack.c.b16 %v465, %v461
    %v694 = vpack.c.b16 %v466, %v462
    %v695 = vpack.c.b16 %v471, %v467
    %v696 = vpack.c.b16 %v472, %v468
    %v697 = vpack.c.b16 %v473, %v469
    %v698 = vpack.c.b16 %v474, %v470
    %v699 = vpack.c.b16 %v479, %v475
    %v700 = vpack.c.b16 %v480, %v476
    %v701 = vpack.c.b16 %v481, %v477
    %v702 = vpack.c.b16 %v482, %v478
    %v703 = vpack.c.b16 %v487, %v483
    %v704 = vpack.c.b16 %v488, %v484
    %v705 = vpack.c.b16 %v489, %v485
    %v706 = vpack.c.b16 %v490, %v486
    %v707 = vpack.c.b16 %v495, %v491
    %v708 = vpack.c.b16 %v496, %v492
    %v709 = vpack.c.b16 %v497, %v493
    %v710 = vpack.c.b16 %v498, %v494
    %v711 = vpack.c.b16 %v503, %v499
    %v712 = vpack.c.b16 %v504, %v500
    %v713 = vpack.c.b16 %v505, %v501
    %v714 = vpack.c.b16 %v506, %v502
    %v715 = vpack.c.b16 %v511, %v507
    %v716 = vpack.c.b16 %v512, %v508
    %v717 = vpack.c.b16 %v513, %v509
    %v718 = vpack.c.b16 %v514, %v510
    %v719 = vpack.c.b16 %v519, %v515
    %v720 = vpack.c.b16 %v520, %v516
    %v721 = vpack.c.b16 %v521, %v517
    %v722 = vpack.c.b16 %v522, %v518
    %v723 = vpack.c.b16 %v527, %v523
    %v724 = vpack.c.b16 %v528, %v524
    %v725 = vpack.c.b16 %v529, %v525
    %v726 = vpack.c.b16 %v530, %v526
    %v727 = vpack.c.b16 %v535, %v531
    %v728 = vpack.c.b16 %v536, %v532
    %v729 = vpack.c.b16 %v537, %v533
    %v730 = vpack.c.b16 %v538, %v534
    %v731 = vpack.c.b16 %v543, %v539
    %v732 = vpack.c.b16 %v544, %v540
    %v733 = vpack.c.b16 %v545, %v541
    %v734 = vpack.c.b16 %v546, %v542
    %v735 = vpack.c.b16 %v551, %v547
    %v736 = vpack.c.b16 %v552, %v548
    %v737 = vpack.c.b16 %v553, %v549
    %v738 = vpack.c.b16 %v554, %v550
    %v739 = vpack.c.b16 %v559, %v555
    %v740 = vpack.c.b16 %v560, %v556
    %v741 = vpack.c.b16 %v561, %v557
    %v742 = vpack.c.b16 %v562, %v558
    %v743 = vpack.c.b16 %v567, %v563
    %v744 = vpack.c.b16 %v568, %v564
    %v745 = vpack.c.b16 %v569, %v565
    %v746 = vpack.c.b16 %v570, %v566
    %v747 = vpack.c.b16 %v575, %v571
    %v748 = vpack.c.b16 %v576, %v572
    %v749 = vpack.c.b16 %v577, %v573
    %v750 = vpack.c.b16 %v578, %v574
    %v751 = vpack.c.b16 %v583, %v579
    %v752 = vpack.c.b16 %v584, %v580
    %v753 = vpack.c.b16 %v585, %v581
    %v754 = vpack.c.b16 %v586, %v582
    %v755 = vpack.c.b16 %v591, %v587
    %v756 = vpack.c.b16 %v592, %v588
    %v757 = vpack.c.b16 %v593, %v589
    %v758 = vpack.c.b16 %v594, %v590
    %v759 = vpack.c.b16 %v599, %v595
    %v760 = vpack.c.b16 %v600, %v596
    %v761 = vpack.c.b16 %v601, %v597
    %v762 = vpack.c.b16 %v602, %v598
    %v763 = vpack.c.b16 %v607, %v603
    %v764 = vpack.c.b16 %v608, %v604
    %v765 = vpack.c.b16 %v609, %v605
    %v766 = vpack.c.b16 %v610, %v606
    %v767 = vpack.c.b16 %v615, %v611
    %v768 = vpack.c.b16 %v616, %v612
    %v769 = vpack.c.b16 %v617, %v613
    %v770 = vpack.c.b16 %v618, %v614
    %v771 = vpack.c.b16 %v623, %v619
    %v772 = vpack.c.b16 %v624, %v620
    %v773 = vpack.c.b16 %v625, %v621
    %v774 = vpack.c.b16 %v626, %v622
    %v775 = vpack.c.b16 %v631, %v627
    %v776 = vpack.c.b16 %v632, %v628
    %v777 = vpack.c.b16 %v633, %v629
    %v778 = vpack.c.b16 %v634, %v630
    %v779 = vpack.c.b16 %v639, %v635
    %v780 = vpack.c.b16 %v640, %v636
    %v781 = vpack.c.b16 %v641, %v637
    %v782 = vpack.c.b16 %v642, %v638
    %v783 = vpack.c.b16 %v647, %v643
    %v784 = vpack.c.b16 %v648, %v644
    %v785 = vpack.c.b16 %v649, %v645
    %v786 = vpack.c.b16 %v650, %v646
    %v787 = vpack.c.b16 %v655, %v651
    %v788 = vpack.c.b16 %v656, %v652
    %v789 = vpack.c.b16 %v657, %v653
    %v790 = vpack.c.b16 %v658, %v654
    %v791 = vpack.c.b16 %v663, %v659
    %v792 = vpack.c.b16 %v664, %v660
    %v793 = vpack.c.b16 %v665, %v661
    %v794 = vpack.c.b16 %v666, %v662
    %923 = vmatpush.bf16.msra.mxu0 %v695
    %924 = vmatpush.bf16.msra.mxu0 %v691
    %925 = vmatpush.bf16.msra.mxu0 %v687
    %926 = vmatpush.bf16.msra.mxu0 %v683
    %927 = vmatpush.bf16.msra.mxu0 %v679
    %928 = vmatpush.bf16.msra.mxu0 %v675
    %929 = vmatpush.bf16.msra.mxu0 %v671
    %930 = vmatpush.bf16.msra.mxu0 %v667
    %931 = vmatmul.bf16.gmra.mxu0 %v141
    %v932 = vpop.f32.mrf.mxu0
    %v933 = vadd.f32 %v275, %v932
    %v934 = vpop.f32.mrf.mxu0
    %935 = vdwg.mxu0
    %936 = vmatpush.bf16.msra.mxu0 %v727
    %937 = vmatpush.bf16.msra.mxu0 %v723
    %938 = vmatpush.bf16.msra.mxu0 %v719
    %939 = vmatpush.bf16.msra.mxu0 %v715
    %940 = vmatpush.bf16.msra.mxu0 %v711
    %941 = vmatpush.bf16.msra.mxu0 %v707
    %942 = vmatpush.bf16.msra.mxu0 %v703
    %943 = vmatpush.bf16.msra.mxu0 %v699
    %944 = vmatmul.bf16.gmra.mxu0 %v142
    %v945 = vpop.f32.mrf.mxu0
    %v946 = vadd.f32 %v933, %v945
    %v947 = vpop.f32.mrf.mxu0
    %948 = vdwg.mxu0
    %949 = vmatpush.bf16.msra.mxu0 %v759
    %950 = vmatpush.bf16.msra.mxu0 %v755
    %951 = vmatpush.bf16.msra.mxu0 %v751
    %952 = vmatpush.bf16.msra.mxu0 %v747
    %953 = vmatpush.bf16.msra.mxu0 %v743
    %954 = vmatpush.bf16.msra.mxu0 %v739
    %955 = vmatpush.bf16.msra.mxu0 %v735
    %956 = vmatpush.bf16.msra.mxu0 %v731
    %957 = vmatmul.bf16.gmra.mxu0 %v143
    %v958 = vpop.f32.mrf.mxu0
    %v959 = vadd.f32 %v946, %v958
    %v960 = vpop.f32.mrf.mxu0
    %961 = vdwg.mxu0
    %962 = vmatpush.bf16.msra.mxu0 %v791
    %963 = vmatpush.bf16.msra.mxu0 %v787
    %964 = vmatpush.bf16.msra.mxu0 %v783
    %965 = vmatpush.bf16.msra.mxu0 %v779
    %966 = vmatpush.bf16.msra.mxu0 %v775
    %967 = vmatpush.bf16.msra.mxu0 %v771
    %968 = vmatpush.bf16.msra.mxu0 %v767
    %969 = vmatpush.bf16.msra.mxu0 %v763
    %970 = vmatmul.bf16.gmra.mxu0 %v144
    %v971 = vpop.f32.mrf.mxu0
    %v972 = vadd.f32 %v959, %v971
    %v973 = vpop.f32.mrf.mxu0
    %974 = vdwg.mxu0
    %975 = vmatpush.bf16.msra.mxu0 %v696
    %976 = vmatpush.bf16.msra.mxu0 %v692
    %977 = vmatpush.bf16.msra.mxu0 %v688
    %978 = vmatpush.bf16.msra.mxu0 %v684
    %979 = vmatpush.bf16.msra.mxu0 %v680
    %980 = vmatpush.bf16.msra.mxu0 %v676
    %981 = vmatpush.bf16.msra.mxu0 %v672
    %982 = vmatpush.bf16.msra.mxu0 %v668
    %983 = vmatmul.bf16.gmra.mxu0 %v141
    %v984 = vpop.f32.mrf.mxu0
    %v985 = vadd.f32 %v276, %v984
    %v986 = vpop.f32.mrf.mxu0
    %987 = vdwg.mxu0
    %988 = vmatpush.bf16.msra.mxu0 %v728
    %989 = vmatpush.bf16.msra.mxu0 %v724
    %990 = vmatpush.bf16.msra.mxu0 %v720
    %991 = vmatpush.bf16.msra.mxu0 %v716
    %992 = vmatpush.bf16.msra.mxu0 %v712
    %993 = vmatpush.bf16.msra.mxu0 %v708
    %994 = vmatpush.bf16.msra.mxu0 %v704
    %995 = vmatpush.bf16.msra.mxu0 %v700
    %996 = vmatmul.bf16.gmra.mxu0 %v142
    %v997 = vpop.f32.mrf.mxu0
    %v998 = vadd.f32 %v985, %v997
    %v999 = vpop.f32.mrf.mxu0
    %1000 = vdwg.mxu0
    %1001 = vmatpush.bf16.msra.mxu0 %v760
    %1002 = vmatpush.bf16.msra.mxu0 %v756
    %1003 = vmatpush.bf16.msra.mxu0 %v752
    %1004 = vmatpush.bf16.msra.mxu0 %v748
    %1005 = vmatpush.bf16.msra.mxu0 %v744
    %1006 = vmatpush.bf16.msra.mxu0 %v740
    %1007 = vmatpush.bf16.msra.mxu0 %v736
    %1008 = vmatpush.bf16.msra.mxu0 %v732
    %1009 = vmatmul.bf16.gmra.mxu0 %v143
    %v1010 = vpop.f32.mrf.mxu0
    %v1011 = vadd.f32 %v998, %v1010
    %v1012 = vpop.f32.mrf.mxu0
    %1013 = vdwg.mxu0
    %1014 = vmatpush.bf16.msra.mxu0 %v792
    %1015 = vmatpush.bf16.msra.mxu0 %v788
    %1016 = vmatpush.bf16.msra.mxu0 %v784
    %1017 = vmatpush.bf16.msra.mxu0 %v780
    %1018 = vmatpush.bf16.msra.mxu0 %v776
    %1019 = vmatpush.bf16.msra.mxu0 %v772
    %1020 = vmatpush.bf16.msra.mxu0 %v768
    %1021 = vmatpush.bf16.msra.mxu0 %v764
    %1022 = vmatmul.bf16.gmra.mxu0 %v144
    %v1023 = vpop.f32.mrf.mxu0
    %v1024 = vadd.f32 %v1011, %v1023
    %v1025 = vpop.f32.mrf.mxu0
    %1026 = vdwg.mxu0
    %1027 = vmatpush.bf16.msra.mxu0 %v697
    %1028 = vmatpush.bf16.msra.mxu0 %v693
    %1029 = vmatpush.bf16.msra.mxu0 %v689
    %1030 = vmatpush.bf16.msra.mxu0 %v685
    %1031 = vmatpush.bf16.msra.mxu0 %v681
    %1032 = vmatpush.bf16.msra.mxu0 %v677
    %1033 = vmatpush.bf16.msra.mxu0 %v673
    %1034 = vmatpush.bf16.msra.mxu0 %v669
    %1035 = vmatmul.bf16.gmra.mxu0 %v141
    %v1036 = vpop.f32.mrf.mxu0
    %v1037 = vadd.f32 %v277, %v1036
    %v1038 = vpop.f32.mrf.mxu0
    %1039 = vdwg.mxu0
    %1040 = vmatpush.bf16.msra.mxu0 %v729
    %1041 = vmatpush.bf16.msra.mxu0 %v725
    %1042 = vmatpush.bf16.msra.mxu0 %v721
    %1043 = vmatpush.bf16.msra.mxu0 %v717
    %1044 = vmatpush.bf16.msra.mxu0 %v713
    %1045 = vmatpush.bf16.msra.mxu0 %v709
    %1046 = vmatpush.bf16.msra.mxu0 %v705
    %1047 = vmatpush.bf16.msra.mxu0 %v701
    %1048 = vmatmul.bf16.gmra.mxu0 %v142
    %v1049 = vpop.f32.mrf.mxu0
    %v1050 = vadd.f32 %v1037, %v1049
    %v1051 = vpop.f32.mrf.mxu0
    %1052 = vdwg.mxu0
    %1053 = vmatpush.bf16.msra.mxu0 %v761
    %1054 = vmatpush.bf16.msra.mxu0 %v757
    %1055 = vmatpush.bf16.msra.mxu0 %v753
    %1056 = vmatpush.bf16.msra.mxu0 %v749
    %1057 = vmatpush.bf16.msra.mxu0 %v745
    %1058 = vmatpush.bf16.msra.mxu0 %v741
    %1059 = vmatpush.bf16.msra.mxu0 %v737
    %1060 = vmatpush.bf16.msra.mxu0 %v733
    %1061 = vmatmul.bf16.gmra.mxu0 %v143
    %v1062 = vpop.f32.mrf.mxu0
    %v1063 = vadd.f32 %v1050, %v1062
    %v1064 = vpop.f32.mrf.mxu0
    %1065 = vdwg.mxu0
    %1066 = vmatpush.bf16.msra.mxu0 %v793
    %1067 = vmatpush.bf16.msra.mxu0 %v789
    %1068 = vmatpush.bf16.msra.mxu0 %v785
    %1069 = vmatpush.bf16.msra.mxu0 %v781
    %1070 = vmatpush.bf16.msra.mxu0 %v777
    %1071 = vmatpush.bf16.msra.mxu0 %v773
    %1072 = vmatpush.bf16.msra.mxu0 %v769
    %1073 = vmatpush.bf16.msra.mxu0 %v765
    %1074 = vmatmul.bf16.gmra.mxu0 %v144
    %v1075 = vpop.f32.mrf.mxu0
    %v1076 = vadd.f32 %v1063, %v1075
    %v1077 = vpop.f32.mrf.mxu0
    %1078 = vdwg.mxu0
    %1079 = vmatpush.bf16.msra.mxu0 %v698
    %1080 = vmatpush.bf16.msra.mxu0 %v694
    %1081 = vmatpush.bf16.msra.mxu0 %v690
    %1082 = vmatpush.bf16.msra.mxu0 %v686
    %1083 = vmatpush.bf16.msra.mxu0 %v682
    %1084 = vmatpush.bf16.msra.mxu0 %v678
    %1085 = vmatpush.bf16.msra.mxu0 %v674
    %1086 = vmatpush.bf16.msra.mxu0 %v670
    %1087 = vmatmul.bf16.gmra.mxu0 %v141
    %v1088 = vpop.f32.mrf.mxu0
    %v1089 = vadd.f32 %v278, %v1088
    %v1090 = vpop.f32.mrf.mxu0
    %1091 = vdwg.mxu0
    %1092 = vmatpush.bf16.msra.mxu0 %v730
    %1093 = vmatpush.bf16.msra.mxu0 %v726
    %1094 = vmatpush.bf16.msra.mxu0 %v722
    %1095 = vmatpush.bf16.msra.mxu0 %v718
    %1096 = vmatpush.bf16.msra.mxu0 %v714
    %1097 = vmatpush.bf16.msra.mxu0 %v710
    %1098 = vmatpush.bf16.msra.mxu0 %v706
    %1099 = vmatpush.bf16.msra.mxu0 %v702
    %1100 = vmatmul.bf16.gmra.mxu0 %v142
    %v1101 = vpop.f32.mrf.mxu0
    %v1102 = vadd.f32 %v1089, %v1101
    %v1103 = vpop.f32.mrf.mxu0
    %1104 = vdwg.mxu0
    %1105 = vmatpush.bf16.msra.mxu0 %v762
    %1106 = vmatpush.bf16.msra.mxu0 %v758
    %1107 = vmatpush.bf16.msra.mxu0 %v754
    %1108 = vmatpush.bf16.msra.mxu0 %v750
    %1109 = vmatpush.bf16.msra.mxu0 %v746
    %1110 = vmatpush.bf16.msra.mxu0 %v742
    %1111 = vmatpush.bf16.msra.mxu0 %v738
    %1112 = vmatpush.bf16.msra.mxu0 %v734
    %1113 = vmatmul.bf16.gmra.mxu0 %v143
    %v1114 = vpop.f32.mrf.mxu0
    %v1115 = vadd.f32 %v1102, %v1114
    %v1116 = vpop.f32.mrf.mxu0
    %1117 = vdwg.mxu0
    %1118 = vmatpush.bf16.msra.mxu0 %v794
    %1119 = vmatpush.bf16.msra.mxu0 %v790
    %1120 = vmatpush.bf16.msra.mxu0 %v786
    %1121 = vmatpush.bf16.msra.mxu0 %v782
    %1122 = vmatpush.bf16.msra.mxu0 %v778
    %1123 = vmatpush.bf16.msra.mxu0 %v774
    %1124 = vmatpush.bf16.msra.mxu0 %v770
    %1125 = vmatpush.bf16.msra.mxu0 %v766
    %1126 = vmatmul.bf16.gmra.mxu0 %v144
    %v1127 = vpop.f32.mrf.mxu0
    %v1128 = vadd.f32 %v1115, %v1127
    %v1129 = vpop.f32.mrf.mxu0
    %1130 = vdwg.mxu0
    %v1131 = vmul.f32 %v972, 0.5
    %v1132 = vmul.f32 %v1024, 0.5
    %v1133 = vmul.f32 %v1076, 0.5
    %v1134 = vmul.f32 %v1128, 0.5
    %v1135 = vtanh.pop %v1131
    %v1136 = vtanh.pop %v1132
    %v1137 = vtanh.pop %v1133
    %v1138 = vtanh.pop %v1134
    %v1139 = vadd.f32 %v1135, 1.0
    %v1140 = vadd.f32 %v1136, 1.0
    %v1141 = vadd.f32 %v1137, 1.0
    %v1142 = vadd.f32 %v1138, 1.0
    %v1143 = vmul.f32 %v1131, %v1139
    %v1144 = vmul.f32 %v1132, %v1140
    %v1145 = vmul.f32 %v1133, %v1141
    %v1146 = vmul.f32 %v1134, %v1142
    %v1147 = vpack.c.bf16 %v1143, %v1143
    %v1148 = vpack.c.bf16 %v1144, %v1144
    %v1149 = vpack.c.bf16 %v1145, %v1145
    %v1150 = vpack.c.bf16 %v1146, %v1146
    %v1151 = vld [vmem:[%s5] sm:$0xff]
    %v1152 = vld [vmem:[%s5 + $0x8] sm:$0xff]
    %v1153 = vld [vmem:[%s5 + $0x10] sm:$0xff]
    %v1154 = vld [vmem:[%s5 + $0x18] sm:$0xff]
    %v1155 = vld [vmem:[%s5 + $0x20] sm:$0xff]
    %v1156 = vld [vmem:[%s5 + $0x28] sm:$0xff]
    %v1157 = vld [vmem:[%s5 + $0x30] sm:$0xff]
    %v1158 = vld [vmem:[%s5 + $0x38] sm:$0xff]
    %v1159 = vld [vmem:[%s5 + $0x40] sm:$0xff]
    %v1160 = vld [vmem:[%s5 + $0x48] sm:$0xff]
    %v1161 = vld [vmem:[%s5 + $0x50] sm:$0xff]
    %v1162 = vld [vmem:[%s5 + $0x58] sm:$0xff]
    %v1163 = vld [vmem:[%s5 + $0x60] sm:$0xff]
    %v1164 = vld [vmem:[%s5 + $0x68] sm:$0xff]
    %v1165 = vld [vmem:[%s5 + $0x70] sm:$0xff]
    %v1166 = vld [vmem:[%s5 + $0x78] sm:$0xff]
    %v1167 = vld [vmem:[%s5 + $0x80] sm:$0xff]
    %v1168 = vld [vmem:[%s5 + $0x88] sm:$0xff]
    %v1169 = vld [vmem:[%s5 + $0x90] sm:$0xff]
    %v1170 = vld [vmem:[%s5 + $0x98] sm:$0xff]
    %v1171 = vld [vmem:[%s5 + $0xa0] sm:$0xff]
    %v1172 = vld [vmem:[%s5 + $0xa8] sm:$0xff]
    %v1173 = vld [vmem:[%s5 + $0xb0] sm:$0xff]
    %v1174 = vld [vmem:[%s5 + $0xb8] sm:$0xff]
    %v1175 = vld [vmem:[%s5 + $0xc0] sm:$0xff]
    %v1176 = vld [vmem:[%s5 + $0xc8] sm:$0xff]
    %v1177 = vld [vmem:[%s5 + $0xd0] sm:$0xff]
    %v1178 = vld [vmem:[%s5 + $0xd8] sm:$0xff]
    %v1179 = vld [vmem:[%s5 + $0xe0] sm:$0xff]
    %v1180 = vld [vmem:[%s5 + $0xe8] sm:$0xff]
    %v1181 = vld [vmem:[%s5 + $0xf0] sm:$0xff]
    %v1182 = vld [vmem:[%s5 + $0xf8] sm:$0xff]
    %v1183 = vld [vmem:[%s5 + $0x100] sm:$0xff]
    %v1184 = vld [vmem:[%s5 + $0x108] sm:$0xff]
    %v1185 = vld [vmem:[%s5 + $0x110] sm:$0xff]
    %v1186 = vld [vmem:[%s5 + $0x118] sm:$0xff]
    %v1187 = vld [vmem:[%s5 + $0x120] sm:$0xff]
    %v1188 = vld [vmem:[%s5 + $0x128] sm:$0xff]
    %v1189 = vld [vmem:[%s5 + $0x130] sm:$0xff]
    %v1190 = vld [vmem:[%s5 + $0x138] sm:$0xff]
    %v1191 = vld [vmem:[%s5 + $0x140] sm:$0xff]
    %v1192 = vld [vmem:[%s5 + $0x148] sm:$0xff]
    %v1193 = vld [vmem:[%s5 + $0x150] sm:$0xff]
    %v1194 = vld [vmem:[%s5 + $0x158] sm:$0xff]
    %v1195 = vld [vmem:[%s5 + $0x160] sm:$0xff]
    %v1196 = vld [vmem:[%s5 + $0x168] sm:$0xff]
    %v1197 = vld [vmem:[%s5 + $0x170] sm:$0xff]
    %v1198 = vld [vmem:[%s5 + $0x178] sm:$0xff]
    %v1199 = vld [vmem:[%s5 + $0x180] sm:$0xff]
    %v1200 = vld [vmem:[%s5 + $0x188] sm:$0xff]
    %v1201 = vld [vmem:[%s5 + $0x190] sm:$0xff]
    %v1202 = vld [vmem:[%s5 + $0x198] sm:$0xff]
    %v1203 = vld [vmem:[%s5 + $0x1a0] sm:$0xff]
    %v1204 = vld [vmem:[%s5 + $0x1a8] sm:$0xff]
    %v1205 = vld [vmem:[%s5 + $0x1b0] sm:$0xff]
    %v1206 = vld [vmem:[%s5 + $0x1b8] sm:$0xff]
    %v1207 = vld [vmem:[%s5 + $0x1c0] sm:$0xff]
    %v1208 = vld [vmem:[%s5 + $0x1c8] sm:$0xff]
    %v1209 = vld [vmem:[%s5 + $0x1d0] sm:$0xff]
    %v1210 = vld [vmem:[%s5 + $0x1d8] sm:$0xff]
    %v1211 = vld [vmem:[%s5 + $0x1e0] sm:$0xff]
    %v1212 = vld [vmem:[%s5 + $0x1e8] sm:$0xff]
    %v1213 = vld [vmem:[%s5 + $0x1f0] sm:$0xff]
    %v1214 = vld [vmem:[%s5 + $0x1f8] sm:$0xff]
    %v1215 = vld [vmem:[%s5 + $0x200] sm:$0xff]
    %v1216 = vld [vmem:[%s5 + $0x208] sm:$0xff]
    %v1217 = vld [vmem:[%s5 + $0x210] sm:$0xff]
    %v1218 = vld [vmem:[%s5 + $0x218] sm:$0xff]
    %v1219 = vld [vmem:[%s5 + $0x220] sm:$0xff]
    %v1220 = vld [vmem:[%s5 + $0x228] sm:$0xff]
    %v1221 = vld [vmem:[%s5 + $0x230] sm:$0xff]
    %v1222 = vld [vmem:[%s5 + $0x238] sm:$0xff]
    %v1223 = vld [vmem:[%s5 + $0x240] sm:$0xff]
    %v1224 = vld [vmem:[%s5 + $0x248] sm:$0xff]
    %v1225 = vld [vmem:[%s5 + $0x250] sm:$0xff]
    %v1226 = vld [vmem:[%s5 + $0x258] sm:$0xff]
    %v1227 = vld [vmem:[%s5 + $0x260] sm:$0xff]
    %v1228 = vld [vmem:[%s5 + $0x268] sm:$0xff]
    %v1229 = vld [vmem:[%s5 + $0x270] sm:$0xff]
    %v1230 = vld [vmem:[%s5 + $0x278] sm:$0xff]
    %v1231 = vld [vmem:[%s5 + $0x280] sm:$0xff]
    %v1232 = vld [vmem:[%s5 + $0x288] sm:$0xff]
    %v1233 = vld [vmem:[%s5 + $0x290] sm:$0xff]
    %v1234 = vld [vmem:[%s5 + $0x298] sm:$0xff]
    %v1235 = vld [vmem:[%s5 + $0x2a0] sm:$0xff]
    %v1236 = vld [vmem:[%s5 + $0x2a8] sm:$0xff]
    %v1237 = vld [vmem:[%s5 + $0x2b0] sm:$0xff]
    %v1238 = vld [vmem:[%s5 + $0x2b8] sm:$0xff]
    %v1239 = vld [vmem:[%s5 + $0x2c0] sm:$0xff]
    %v1240 = vld [vmem:[%s5 + $0x2c8] sm:$0xff]
    %v1241 = vld [vmem:[%s5 + $0x2d0] sm:$0xff]
    %v1242 = vld [vmem:[%s5 + $0x2d8] sm:$0xff]
    %v1243 = vld [vmem:[%s5 + $0x2e0] sm:$0xff]
    %v1244 = vld [vmem:[%s5 + $0x2e8] sm:$0xff]
    %v1245 = vld [vmem:[%s5 + $0x2f0] sm:$0xff]
    %v1246 = vld [vmem:[%s5 + $0x2f8] sm:$0xff]
    %v1247 = vld [vmem:[%s5 + $0x300] sm:$0xff]
    %v1248 = vld [vmem:[%s5 + $0x308] sm:$0xff]
    %v1249 = vld [vmem:[%s5 + $0x310] sm:$0xff]
    %v1250 = vld [vmem:[%s5 + $0x318] sm:$0xff]
    %v1251 = vld [vmem:[%s5 + $0x320] sm:$0xff]
    %v1252 = vld [vmem:[%s5 + $0x328] sm:$0xff]
    %v1253 = vld [vmem:[%s5 + $0x330] sm:$0xff]
    %v1254 = vld [vmem:[%s5 + $0x338] sm:$0xff]
    %v1255 = vld [vmem:[%s5 + $0x340] sm:$0xff]
    %v1256 = vld [vmem:[%s5 + $0x348] sm:$0xff]
    %v1257 = vld [vmem:[%s5 + $0x350] sm:$0xff]
    %v1258 = vld [vmem:[%s5 + $0x358] sm:$0xff]
    %v1259 = vld [vmem:[%s5 + $0x360] sm:$0xff]
    %v1260 = vld [vmem:[%s5 + $0x368] sm:$0xff]
    %v1261 = vld [vmem:[%s5 + $0x370] sm:$0xff]
    %v1262 = vld [vmem:[%s5 + $0x378] sm:$0xff]
    %v1263 = vld [vmem:[%s5 + $0x380] sm:$0xff]
    %v1264 = vld [vmem:[%s5 + $0x388] sm:$0xff]
    %v1265 = vld [vmem:[%s5 + $0x390] sm:$0xff]
    %v1266 = vld [vmem:[%s5 + $0x398] sm:$0xff]
    %v1267 = vld [vmem:[%s5 + $0x3a0] sm:$0xff]
    %v1268 = vld [vmem:[%s5 + $0x3a8] sm:$0xff]
    %v1269 = vld [vmem:[%s5 + $0x3b0] sm:$0xff]
    %v1270 = vld [vmem:[%s5 + $0x3b8] sm:$0xff]
    %v1271 = vld [vmem:[%s5 + $0x3c0] sm:$0xff]
    %v1272 = vld [vmem:[%s5 + $0x3c8] sm:$0xff]
    %v1273 = vld [vmem:[%s5 + $0x3d0] sm:$0xff]
    %v1274 = vld [vmem:[%s5 + $0x3d8] sm:$0xff]
    %v1275 = vld [vmem:[%s5 + $0x3e0] sm:$0xff]
    %v1276 = vld [vmem:[%s5 + $0x3e8] sm:$0xff]
    %v1277 = vld [vmem:[%s5 + $0x3f0] sm:$0xff]
    %v1278 = vld [vmem:[%s5 + $0x3f8] sm:$0xff]
    %v1279 = vld [vmem:[%s6] sm:$0xf]
    %v1281 = vperm.slane %v1279, 0
    %v1282 = vperm.slane %v1279, 1
    %v1283 = vperm.slane %v1279, 2
    %v1284 = vperm.slane %v1279, 3
    %v1417 = vunpack.c.l.b16 %v1151
    %v1418 = vunpack.c.h.b16 %v1151
    %v1419 = vunpack.c.l.b16 %v1152
    %v1420 = vunpack.c.h.b16 %v1152
    %v1421 = vunpack.c.l.b16 %v1153
    %v1422 = vunpack.c.h.b16 %v1153
    %v1423 = vunpack.c.l.b16 %v1154
    %v1424 = vunpack.c.h.b16 %v1154
    %v1425 = vunpack.c.l.b16 %v1155
    %v1426 = vunpack.c.h.b16 %v1155
    %v1427 = vunpack.c.l.b16 %v1156
    %v1428 = vunpack.c.h.b16 %v1156
    %v1429 = vunpack.c.l.b16 %v1157
    %v1430 = vunpack.c.h.b16 %v1157
    %v1431 = vunpack.c.l.b16 %v1158
    %v1432 = vunpack.c.h.b16 %v1158
    %v1433 = vunpack.c.l.b16 %v1159
    %v1434 = vunpack.c.h.b16 %v1159
    %v1435 = vunpack.c.l.b16 %v1160
    %v1436 = vunpack.c.h.b16 %v1160
    %v1437 = vunpack.c.l.b16 %v1161
    %v1438 = vunpack.c.h.b16 %v1161
    %v1439 = vunpack.c.l.b16 %v1162
    %v1440 = vunpack.c.h.b16 %v1162
    %v1441 = vunpack.c.l.b16 %v1163
    %v1442 = vunpack.c.h.b16 %v1163
    %v1443 = vunpack.c.l.b16 %v1164
    %v1444 = vunpack.c.h.b16 %v1164
    %v1445 = vunpack.c.l.b16 %v1165
    %v1446 = vunpack.c.h.b16 %v1165
    %v1447 = vunpack.c.l.b16 %v1166
    %v1448 = vunpack.c.h.b16 %v1166
    %v1449 = vunpack.c.l.b16 %v1167
    %v1450 = vunpack.c.h.b16 %v1167
    %v1451 = vunpack.c.l.b16 %v1168
    %v1452 = vunpack.c.h.b16 %v1168
    %v1453 = vunpack.c.l.b16 %v1169
    %v1454 = vunpack.c.h.b16 %v1169
    %v1455 = vunpack.c.l.b16 %v1170
    %v1456 = vunpack.c.h.b16 %v1170
    %v1457 = vunpack.c.l.b16 %v1171
    %v1458 = vunpack.c.h.b16 %v1171
    %v1459 = vunpack.c.l.b16 %v1172
    %v1460 = vunpack.c.h.b16 %v1172
    %v1461 = vunpack.c.l.b16 %v1173
    %v1462 = vunpack.c.h.b16 %v1173
    %v1463 = vunpack.c.l.b16 %v1174
    %v1464 = vunpack.c.h.b16 %v1174
    %v1465 = vunpack.c.l.b16 %v1175
    %v1466 = vunpack.c.h.b16 %v1175
    %v1467 = vunpack.c.l.b16 %v1176
    %v1468 = vunpack.c.h.b16 %v1176
    %v1469 = vunpack.c.l.b16 %v1177
    %v1470 = vunpack.c.h.b16 %v1177
    %v1471 = vunpack.c.l.b16 %v1178
    %v1472 = vunpack.c.h.b16 %v1178
    %v1473 = vunpack.c.l.b16 %v1179
    %v1474 = vunpack.c.h.b16 %v1179
    %v1475 = vunpack.c.l.b16 %v1180
    %v1476 = vunpack.c.h.b16 %v1180
    %v1477 = vunpack.c.l.b16 %v1181
    %v1478 = vunpack.c.h.b16 %v1181
    %v1479 = vunpack.c.l.b16 %v1182
    %v1480 = vunpack.c.h.b16 %v1182
    %v1481 = vunpack.c.l.b16 %v1183
    %v1482 = vunpack.c.h.b16 %v1183
    %v1483 = vunpack.c.l.b16 %v1184
    %v1484 = vunpack.c.h.b16 %v1184
    %v1485 = vunpack.c.l.b16 %v1185
    %v1486 = vunpack.c.h.b16 %v1185
    %v1487 = vunpack.c.l.b16 %v1186
    %v1488 = vunpack.c.h.b16 %v1186
    %v1489 = vunpack.c.l.b16 %v1187
    %v1490 = vunpack.c.h.b16 %v1187
    %v1491 = vunpack.c.l.b16 %v1188
    %v1492 = vunpack.c.h.b16 %v1188
    %v1493 = vunpack.c.l.b16 %v1189
    %v1494 = vunpack.c.h.b16 %v1189
    %v1495 = vunpack.c.l.b16 %v1190
    %v1496 = vunpack.c.h.b16 %v1190
    %v1497 = vunpack.c.l.b16 %v1191
    %v1498 = vunpack.c.h.b16 %v1191
    %v1499 = vunpack.c.l.b16 %v1192
    %v1500 = vunpack.c.h.b16 %v1192
    %v1501 = vunpack.c.l.b16 %v1193
    %v1502 = vunpack.c.h.b16 %v1193
    %v1503 = vunpack.c.l.b16 %v1194
    %v1504 = vunpack.c.h.b16 %v1194
    %v1505 = vunpack.c.l.b16 %v1195
    %v1506 = vunpack.c.h.b16 %v1195
    %v1507 = vunpack.c.l.b16 %v1196
    %v1508 = vunpack.c.h.b16 %v1196
    %v1509 = vunpack.c.l.b16 %v1197
    %v1510 = vunpack.c.h.b16 %v1197
    %v1511 = vunpack.c.l.b16 %v1198
    %v1512 = vunpack.c.h.b16 %v1198
    %v1513 = vunpack.c.l.b16 %v1199
    %v1514 = vunpack.c.h.b16 %v1199
    %v1515 = vunpack.c.l.b16 %v1200
    %v1516 = vunpack.c.h.b16 %v1200
    %v1517 = vunpack.c.l.b16 %v1201
    %v1518 = vunpack.c.h.b16 %v1201
    %v1519 = vunpack.c.l.b16 %v1202
    %v1520 = vunpack.c.h.b16 %v1202
    %v1521 = vunpack.c.l.b16 %v1203
    %v1522 = vunpack.c.h.b16 %v1203
    %v1523 = vunpack.c.l.b16 %v1204
    %v1524 = vunpack.c.h.b16 %v1204
    %v1525 = vunpack.c.l.b16 %v1205
    %v1526 = vunpack.c.h.b16 %v1205
    %v1527 = vunpack.c.l.b16 %v1206
    %v1528 = vunpack.c.h.b16 %v1206
    %v1529 = vunpack.c.l.b16 %v1207
    %v1530 = vunpack.c.h.b16 %v1207
    %v1531 = vunpack.c.l.b16 %v1208
    %v1532 = vunpack.c.h.b16 %v1208
    %v1533 = vunpack.c.l.b16 %v1209
    %v1534 = vunpack.c.h.b16 %v1209
    %v1535 = vunpack.c.l.b16 %v1210
    %v1536 = vunpack.c.h.b16 %v1210
    %v1537 = vunpack.c.l.b16 %v1211
    %v1538 = vunpack.c.h.b16 %v1211
    %v1539 = vunpack.c.l.b16 %v1212
    %v1540 = vunpack.c.h.b16 %v1212
    %v1541 = vunpack.c.l.b16 %v1213
    %v1542 = vunpack.c.h.b16 %v1213
    %v1543 = vunpack.c.l.b16 %v1214
    %v1544 = vunpack.c.h.b16 %v1214
    %v1545 = vunpack.c.l.b16 %v1215
    %v1546 = vunpack.c.h.b16 %v1215
    %v1547 = vunpack.c.l.b16 %v1216
    %v1548 = vunpack.c.h.b16 %v1216
    %v1549 = vunpack.c.l.b16 %v1217
    %v1550 = vunpack.c.h.b16 %v1217
    %v1551 = vunpack.c.l.b16 %v1218
    %v1552 = vunpack.c.h.b16 %v1218
    %v1553 = vunpack.c.l.b16 %v1219
    %v1554 = vunpack.c.h.b16 %v1219
    %v1555 = vunpack.c.l.b16 %v1220
    %v1556 = vunpack.c.h.b16 %v1220
    %v1557 = vunpack.c.l.b16 %v1221
    %v1558 = vunpack.c.h.b16 %v1221
    %v1559 = vunpack.c.l.b16 %v1222
    %v1560 = vunpack.c.h.b16 %v1222
    %v1561 = vunpack.c.l.b16 %v1223
    %v1562 = vunpack.c.h.b16 %v1223
    %v1563 = vunpack.c.l.b16 %v1224
    %v1564 = vunpack.c.h.b16 %v1224
    %v1565 = vunpack.c.l.b16 %v1225
    %v1566 = vunpack.c.h.b16 %v1225
    %v1567 = vunpack.c.l.b16 %v1226
    %v1568 = vunpack.c.h.b16 %v1226
    %v1569 = vunpack.c.l.b16 %v1227
    %v1570 = vunpack.c.h.b16 %v1227
    %v1571 = vunpack.c.l.b16 %v1228
    %v1572 = vunpack.c.h.b16 %v1228
    %v1573 = vunpack.c.l.b16 %v1229
    %v1574 = vunpack.c.h.b16 %v1229
    %v1575 = vunpack.c.l.b16 %v1230
    %v1576 = vunpack.c.h.b16 %v1230
    %v1577 = vunpack.c.l.b16 %v1231
    %v1578 = vunpack.c.h.b16 %v1231
    %v1579 = vunpack.c.l.b16 %v1232
    %v1580 = vunpack.c.h.b16 %v1232
    %v1581 = vunpack.c.l.b16 %v1233
    %v1582 = vunpack.c.h.b16 %v1233
    %v1583 = vunpack.c.l.b16 %v1234
    %v1584 = vunpack.c.h.b16 %v1234
    %v1585 = vunpack.c.l.b16 %v1235
    %v1586 = vunpack.c.h.b16 %v1235
    %v1587 = vunpack.c.l.b16 %v1236
    %v1588 = vunpack.c.h.b16 %v1236
    %v1589 = vunpack.c.l.b16 %v1237
    %v1590 = vunpack.c.h.b16 %v1237
    %v1591 = vunpack.c.l.b16 %v1238
    %v1592 = vunpack.c.h.b16 %v1238
    %v1593 = vunpack.c.l.b16 %v1239
    %v1594 = vunpack.c.h.b16 %v1239
    %v1595 = vunpack.c.l.b16 %v1240
    %v1596 = vunpack.c.h.b16 %v1240
    %v1597 = vunpack.c.l.b16 %v1241
    %v1598 = vunpack.c.h.b16 %v1241
    %v1599 = vunpack.c.l.b16 %v1242
    %v1600 = vunpack.c.h.b16 %v1242
    %v1601 = vunpack.c.l.b16 %v1243
    %v1602 = vunpack.c.h.b16 %v1243
    %v1603 = vunpack.c.l.b16 %v1244
    %v1604 = vunpack.c.h.b16 %v1244
    %v1605 = vunpack.c.l.b16 %v1245
    %v1606 = vunpack.c.h.b16 %v1245
    %v1607 = vunpack.c.l.b16 %v1246
    %v1608 = vunpack.c.h.b16 %v1246
    %v1609 = vunpack.c.l.b16 %v1247
    %v1610 = vunpack.c.h.b16 %v1247
    %v1611 = vunpack.c.l.b16 %v1248
    %v1612 = vunpack.c.h.b16 %v1248
    %v1613 = vunpack.c.l.b16 %v1249
    %v1614 = vunpack.c.h.b16 %v1249
    %v1615 = vunpack.c.l.b16 %v1250
    %v1616 = vunpack.c.h.b16 %v1250
    %v1617 = vunpack.c.l.b16 %v1251
    %v1618 = vunpack.c.h.b16 %v1251
    %v1619 = vunpack.c.l.b16 %v1252
    %v1620 = vunpack.c.h.b16 %v1252
    %v1621 = vunpack.c.l.b16 %v1253
    %v1622 = vunpack.c.h.b16 %v1253
    %v1623 = vunpack.c.l.b16 %v1254
    %v1624 = vunpack.c.h.b16 %v1254
    %v1625 = vunpack.c.l.b16 %v1255
    %v1626 = vunpack.c.h.b16 %v1255
    %v1627 = vunpack.c.l.b16 %v1256
    %v1628 = vunpack.c.h.b16 %v1256
    %v1629 = vunpack.c.l.b16 %v1257
    %v1630 = vunpack.c.h.b16 %v1257
    %v1631 = vunpack.c.l.b16 %v1258
    %v1632 = vunpack.c.h.b16 %v1258
    %v1633 = vunpack.c.l.b16 %v1259
    %v1634 = vunpack.c.h.b16 %v1259
    %v1635 = vunpack.c.l.b16 %v1260
    %v1636 = vunpack.c.h.b16 %v1260
    %v1637 = vunpack.c.l.b16 %v1261
    %v1638 = vunpack.c.h.b16 %v1261
    %v1639 = vunpack.c.l.b16 %v1262
    %v1640 = vunpack.c.h.b16 %v1262
    %v1641 = vunpack.c.l.b16 %v1263
    %v1642 = vunpack.c.h.b16 %v1263
    %v1643 = vunpack.c.l.b16 %v1264
    %v1644 = vunpack.c.h.b16 %v1264
    %v1645 = vunpack.c.l.b16 %v1265
    %v1646 = vunpack.c.h.b16 %v1265
    %v1647 = vunpack.c.l.b16 %v1266
    %v1648 = vunpack.c.h.b16 %v1266
    %v1649 = vunpack.c.l.b16 %v1267
    %v1650 = vunpack.c.h.b16 %v1267
    %v1651 = vunpack.c.l.b16 %v1268
    %v1652 = vunpack.c.h.b16 %v1268
    %v1653 = vunpack.c.l.b16 %v1269
    %v1654 = vunpack.c.h.b16 %v1269
    %v1655 = vunpack.c.l.b16 %v1270
    %v1656 = vunpack.c.h.b16 %v1270
    %v1657 = vunpack.c.l.b16 %v1271
    %v1658 = vunpack.c.h.b16 %v1271
    %v1659 = vunpack.c.l.b16 %v1272
    %v1660 = vunpack.c.h.b16 %v1272
    %v1661 = vunpack.c.l.b16 %v1273
    %v1662 = vunpack.c.h.b16 %v1273
    %v1663 = vunpack.c.l.b16 %v1274
    %v1664 = vunpack.c.h.b16 %v1274
    %v1665 = vunpack.c.l.b16 %v1275
    %v1666 = vunpack.c.h.b16 %v1275
    %v1667 = vunpack.c.l.b16 %v1276
    %v1668 = vunpack.c.h.b16 %v1276
    %v1669 = vunpack.c.l.b16 %v1277
    %v1670 = vunpack.c.h.b16 %v1277
    %v1671 = vunpack.c.l.b16 %v1278
    %v1672 = vunpack.c.h.b16 %v1278
    %v1673 = vpack.c.b16 %v1421, %v1417
    %v1674 = vpack.c.b16 %v1422, %v1418
    %v1675 = vpack.c.b16 %v1423, %v1419
    %v1676 = vpack.c.b16 %v1424, %v1420
    %v1677 = vpack.c.b16 %v1429, %v1425
    %v1678 = vpack.c.b16 %v1430, %v1426
    %v1679 = vpack.c.b16 %v1431, %v1427
    %v1680 = vpack.c.b16 %v1432, %v1428
    %v1681 = vpack.c.b16 %v1437, %v1433
    %v1682 = vpack.c.b16 %v1438, %v1434
    %v1683 = vpack.c.b16 %v1439, %v1435
    %v1684 = vpack.c.b16 %v1440, %v1436
    %v1685 = vpack.c.b16 %v1445, %v1441
    %v1686 = vpack.c.b16 %v1446, %v1442
    %v1687 = vpack.c.b16 %v1447, %v1443
    %v1688 = vpack.c.b16 %v1448, %v1444
    %v1689 = vpack.c.b16 %v1453, %v1449
    %v1690 = vpack.c.b16 %v1454, %v1450
    %v1691 = vpack.c.b16 %v1455, %v1451
    %v1692 = vpack.c.b16 %v1456, %v1452
    %v1693 = vpack.c.b16 %v1461, %v1457
    %v1694 = vpack.c.b16 %v1462, %v1458
    %v1695 = vpack.c.b16 %v1463, %v1459
    %v1696 = vpack.c.b16 %v1464, %v1460
    %v1697 = vpack.c.b16 %v1469, %v1465
    %v1698 = vpack.c.b16 %v1470, %v1466
    %v1699 = vpack.c.b16 %v1471, %v1467
    %v1700 = vpack.c.b16 %v1472, %v1468
    %v1701 = vpack.c.b16 %v1477, %v1473
    %v1702 = vpack.c.b16 %v1478, %v1474
    %v1703 = vpack.c.b16 %v1479, %v1475
    %v1704 = vpack.c.b16 %v1480, %v1476
    %v1705 = vpack.c.b16 %v1485, %v1481
    %v1706 = vpack.c.b16 %v1486, %v1482
    %v1707 = vpack.c.b16 %v1487, %v1483
    %v1708 = vpack.c.b16 %v1488, %v1484
    %v1709 = vpack.c.b16 %v1493, %v1489
    %v1710 = vpack.c.b16 %v1494, %v1490
    %v1711 = vpack.c.b16 %v1495, %v1491
    %v1712 = vpack.c.b16 %v1496, %v1492
    %v1713 = vpack.c.b16 %v1501, %v1497
    %v1714 = vpack.c.b16 %v1502, %v1498
    %v1715 = vpack.c.b16 %v1503, %v1499
    %v1716 = vpack.c.b16 %v1504, %v1500
    %v1717 = vpack.c.b16 %v1509, %v1505
    %v1718 = vpack.c.b16 %v1510, %v1506
    %v1719 = vpack.c.b16 %v1511, %v1507
    %v1720 = vpack.c.b16 %v1512, %v1508
    %v1721 = vpack.c.b16 %v1517, %v1513
    %v1722 = vpack.c.b16 %v1518, %v1514
    %v1723 = vpack.c.b16 %v1519, %v1515
    %v1724 = vpack.c.b16 %v1520, %v1516
    %v1725 = vpack.c.b16 %v1525, %v1521
    %v1726 = vpack.c.b16 %v1526, %v1522
    %v1727 = vpack.c.b16 %v1527, %v1523
    %v1728 = vpack.c.b16 %v1528, %v1524
    %v1729 = vpack.c.b16 %v1533, %v1529
    %v1730 = vpack.c.b16 %v1534, %v1530
    %v1731 = vpack.c.b16 %v1535, %v1531
    %v1732 = vpack.c.b16 %v1536, %v1532
    %v1733 = vpack.c.b16 %v1541, %v1537
    %v1734 = vpack.c.b16 %v1542, %v1538
    %v1735 = vpack.c.b16 %v1543, %v1539
    %v1736 = vpack.c.b16 %v1544, %v1540
    %v1737 = vpack.c.b16 %v1549, %v1545
    %v1738 = vpack.c.b16 %v1550, %v1546
    %v1739 = vpack.c.b16 %v1551, %v1547
    %v1740 = vpack.c.b16 %v1552, %v1548
    %v1741 = vpack.c.b16 %v1557, %v1553
    %v1742 = vpack.c.b16 %v1558, %v1554
    %v1743 = vpack.c.b16 %v1559, %v1555
    %v1744 = vpack.c.b16 %v1560, %v1556
    %v1745 = vpack.c.b16 %v1565, %v1561
    %v1746 = vpack.c.b16 %v1566, %v1562
    %v1747 = vpack.c.b16 %v1567, %v1563
    %v1748 = vpack.c.b16 %v1568, %v1564
    %v1749 = vpack.c.b16 %v1573, %v1569
    %v1750 = vpack.c.b16 %v1574, %v1570
    %v1751 = vpack.c.b16 %v1575, %v1571
    %v1752 = vpack.c.b16 %v1576, %v1572
    %v1753 = vpack.c.b16 %v1581, %v1577
    %v1754 = vpack.c.b16 %v1582, %v1578
    %v1755 = vpack.c.b16 %v1583, %v1579
    %v1756 = vpack.c.b16 %v1584, %v1580
    %v1757 = vpack.c.b16 %v1589, %v1585
    %v1758 = vpack.c.b16 %v1590, %v1586
    %v1759 = vpack.c.b16 %v1591, %v1587
    %v1760 = vpack.c.b16 %v1592, %v1588
    %v1761 = vpack.c.b16 %v1597, %v1593
    %v1762 = vpack.c.b16 %v1598, %v1594
    %v1763 = vpack.c.b16 %v1599, %v1595
    %v1764 = vpack.c.b16 %v1600, %v1596
    %v1765 = vpack.c.b16 %v1605, %v1601
    %v1766 = vpack.c.b16 %v1606, %v1602
    %v1767 = vpack.c.b16 %v1607, %v1603
    %v1768 = vpack.c.b16 %v1608, %v1604
    %v1769 = vpack.c.b16 %v1613, %v1609
    %v1770 = vpack.c.b16 %v1614, %v1610
    %v1771 = vpack.c.b16 %v1615, %v1611
    %v1772 = vpack.c.b16 %v1616, %v1612
    %v1773 = vpack.c.b16 %v1621, %v1617
    %v1774 = vpack.c.b16 %v1622, %v1618
    %v1775 = vpack.c.b16 %v1623, %v1619
    %v1776 = vpack.c.b16 %v1624, %v1620
    %v1777 = vpack.c.b16 %v1629, %v1625
    %v1778 = vpack.c.b16 %v1630, %v1626
    %v1779 = vpack.c.b16 %v1631, %v1627
    %v1780 = vpack.c.b16 %v1632, %v1628
    %v1781 = vpack.c.b16 %v1637, %v1633
    %v1782 = vpack.c.b16 %v1638, %v1634
    %v1783 = vpack.c.b16 %v1639, %v1635
    %v1784 = vpack.c.b16 %v1640, %v1636
    %v1785 = vpack.c.b16 %v1645, %v1641
    %v1786 = vpack.c.b16 %v1646, %v1642
    %v1787 = vpack.c.b16 %v1647, %v1643
    %v1788 = vpack.c.b16 %v1648, %v1644
    %v1789 = vpack.c.b16 %v1653, %v1649
    %v1790 = vpack.c.b16 %v1654, %v1650
    %v1791 = vpack.c.b16 %v1655, %v1651
    %v1792 = vpack.c.b16 %v1656, %v1652
    %v1793 = vpack.c.b16 %v1661, %v1657
    %v1794 = vpack.c.b16 %v1662, %v1658
    %v1795 = vpack.c.b16 %v1663, %v1659
    %v1796 = vpack.c.b16 %v1664, %v1660
    %v1797 = vpack.c.b16 %v1669, %v1665
    %v1798 = vpack.c.b16 %v1670, %v1666
    %v1799 = vpack.c.b16 %v1671, %v1667
    %v1800 = vpack.c.b16 %v1672, %v1668
    %1929 = vmatpush.bf16.msra.mxu0 %v1701
    %1930 = vmatpush.bf16.msra.mxu0 %v1697
    %1931 = vmatpush.bf16.msra.mxu0 %v1693
    %1932 = vmatpush.bf16.msra.mxu0 %v1689
    %1933 = vmatpush.bf16.msra.mxu0 %v1685
    %1934 = vmatpush.bf16.msra.mxu0 %v1681
    %1935 = vmatpush.bf16.msra.mxu0 %v1677
    %1936 = vmatpush.bf16.msra.mxu0 %v1673
    %1937 = vmatmul.bf16.gmra.mxu0 %v1147
    %v1938 = vpop.f32.mrf.mxu0
    %v1939 = vadd.f32 %v1281, %v1938
    %v1940 = vpop.f32.mrf.mxu0
    %1941 = vdwg.mxu0
    %1942 = vmatpush.bf16.msra.mxu0 %v1733
    %1943 = vmatpush.bf16.msra.mxu0 %v1729
    %1944 = vmatpush.bf16.msra.mxu0 %v1725
    %1945 = vmatpush.bf16.msra.mxu0 %v1721
    %1946 = vmatpush.bf16.msra.mxu0 %v1717
    %1947 = vmatpush.bf16.msra.mxu0 %v1713
    %1948 = vmatpush.bf16.msra.mxu0 %v1709
    %1949 = vmatpush.bf16.msra.mxu0 %v1705
    %1950 = vmatmul.bf16.gmra.mxu0 %v1148
    %v1951 = vpop.f32.mrf.mxu0
    %v1952 = vadd.f32 %v1939, %v1951
    %v1953 = vpop.f32.mrf.mxu0
    %1954 = vdwg.mxu0
    %1955 = vmatpush.bf16.msra.mxu0 %v1765
    %1956 = vmatpush.bf16.msra.mxu0 %v1761
    %1957 = vmatpush.bf16.msra.mxu0 %v1757
    %1958 = vmatpush.bf16.msra.mxu0 %v1753
    %1959 = vmatpush.bf16.msra.mxu0 %v1749
    %1960 = vmatpush.bf16.msra.mxu0 %v1745
    %1961 = vmatpush.bf16.msra.mxu0 %v1741
    %1962 = vmatpush.bf16.msra.mxu0 %v1737
    %1963 = vmatmul.bf16.gmra.mxu0 %v1149
    %v1964 = vpop.f32.mrf.mxu0
    %v1965 = vadd.f32 %v1952, %v1964
    %v1966 = vpop.f32.mrf.mxu0
    %1967 = vdwg.mxu0
    %1968 = vmatpush.bf16.msra.mxu0 %v1797
    %1969 = vmatpush.bf16.msra.mxu0 %v1793
    %1970 = vmatpush.bf16.msra.mxu0 %v1789
    %1971 = vmatpush.bf16.msra.mxu0 %v1785
    %1972 = vmatpush.bf16.msra.mxu0 %v1781
    %1973 = vmatpush.bf16.msra.mxu0 %v1777
    %1974 = vmatpush.bf16.msra.mxu0 %v1773
    %1975 = vmatpush.bf16.msra.mxu0 %v1769
    %1976 = vmatmul.bf16.gmra.mxu0 %v1150
    %v1977 = vpop.f32.mrf.mxu0
    %v1978 = vadd.f32 %v1965, %v1977
    %v1979 = vpop.f32.mrf.mxu0
    %1980 = vdwg.mxu0
    %1981 = vmatpush.bf16.msra.mxu0 %v1702
    %1982 = vmatpush.bf16.msra.mxu0 %v1698
    %1983 = vmatpush.bf16.msra.mxu0 %v1694
    %1984 = vmatpush.bf16.msra.mxu0 %v1690
    %1985 = vmatpush.bf16.msra.mxu0 %v1686
    %1986 = vmatpush.bf16.msra.mxu0 %v1682
    %1987 = vmatpush.bf16.msra.mxu0 %v1678
    %1988 = vmatpush.bf16.msra.mxu0 %v1674
    %1989 = vmatmul.bf16.gmra.mxu0 %v1147
    %v1990 = vpop.f32.mrf.mxu0
    %v1991 = vadd.f32 %v1282, %v1990
    %v1992 = vpop.f32.mrf.mxu0
    %1993 = vdwg.mxu0
    %1994 = vmatpush.bf16.msra.mxu0 %v1734
    %1995 = vmatpush.bf16.msra.mxu0 %v1730
    %1996 = vmatpush.bf16.msra.mxu0 %v1726
    %1997 = vmatpush.bf16.msra.mxu0 %v1722
    %1998 = vmatpush.bf16.msra.mxu0 %v1718
    %1999 = vmatpush.bf16.msra.mxu0 %v1714
    %2000 = vmatpush.bf16.msra.mxu0 %v1710
    %2001 = vmatpush.bf16.msra.mxu0 %v1706
    %2002 = vmatmul.bf16.gmra.mxu0 %v1148
    %v2003 = vpop.f32.mrf.mxu0
    %v2004 = vadd.f32 %v1991, %v2003
    %v2005 = vpop.f32.mrf.mxu0
    %2006 = vdwg.mxu0
    %2007 = vmatpush.bf16.msra.mxu0 %v1766
    %2008 = vmatpush.bf16.msra.mxu0 %v1762
    %2009 = vmatpush.bf16.msra.mxu0 %v1758
    %2010 = vmatpush.bf16.msra.mxu0 %v1754
    %2011 = vmatpush.bf16.msra.mxu0 %v1750
    %2012 = vmatpush.bf16.msra.mxu0 %v1746
    %2013 = vmatpush.bf16.msra.mxu0 %v1742
    %2014 = vmatpush.bf16.msra.mxu0 %v1738
    %2015 = vmatmul.bf16.gmra.mxu0 %v1149
    %v2016 = vpop.f32.mrf.mxu0
    %v2017 = vadd.f32 %v2004, %v2016
    %v2018 = vpop.f32.mrf.mxu0
    %2019 = vdwg.mxu0
    %2020 = vmatpush.bf16.msra.mxu0 %v1798
    %2021 = vmatpush.bf16.msra.mxu0 %v1794
    %2022 = vmatpush.bf16.msra.mxu0 %v1790
    %2023 = vmatpush.bf16.msra.mxu0 %v1786
    %2024 = vmatpush.bf16.msra.mxu0 %v1782
    %2025 = vmatpush.bf16.msra.mxu0 %v1778
    %2026 = vmatpush.bf16.msra.mxu0 %v1774
    %2027 = vmatpush.bf16.msra.mxu0 %v1770
    %2028 = vmatmul.bf16.gmra.mxu0 %v1150
    %v2029 = vpop.f32.mrf.mxu0
    %v2030 = vadd.f32 %v2017, %v2029
    %v2031 = vpop.f32.mrf.mxu0
    %2032 = vdwg.mxu0
    %2033 = vmatpush.bf16.msra.mxu0 %v1703
    %2034 = vmatpush.bf16.msra.mxu0 %v1699
    %2035 = vmatpush.bf16.msra.mxu0 %v1695
    %2036 = vmatpush.bf16.msra.mxu0 %v1691
    %2037 = vmatpush.bf16.msra.mxu0 %v1687
    %2038 = vmatpush.bf16.msra.mxu0 %v1683
    %2039 = vmatpush.bf16.msra.mxu0 %v1679
    %2040 = vmatpush.bf16.msra.mxu0 %v1675
    %2041 = vmatmul.bf16.gmra.mxu0 %v1147
    %v2042 = vpop.f32.mrf.mxu0
    %v2043 = vadd.f32 %v1283, %v2042
    %v2044 = vpop.f32.mrf.mxu0
    %2045 = vdwg.mxu0
    %2046 = vmatpush.bf16.msra.mxu0 %v1735
    %2047 = vmatpush.bf16.msra.mxu0 %v1731
    %2048 = vmatpush.bf16.msra.mxu0 %v1727
    %2049 = vmatpush.bf16.msra.mxu0 %v1723
    %2050 = vmatpush.bf16.msra.mxu0 %v1719
    %2051 = vmatpush.bf16.msra.mxu0 %v1715
    %2052 = vmatpush.bf16.msra.mxu0 %v1711
    %2053 = vmatpush.bf16.msra.mxu0 %v1707
    %2054 = vmatmul.bf16.gmra.mxu0 %v1148
    %v2055 = vpop.f32.mrf.mxu0
    %v2056 = vadd.f32 %v2043, %v2055
    %v2057 = vpop.f32.mrf.mxu0
    %2058 = vdwg.mxu0
    %2059 = vmatpush.bf16.msra.mxu0 %v1767
    %2060 = vmatpush.bf16.msra.mxu0 %v1763
    %2061 = vmatpush.bf16.msra.mxu0 %v1759
    %2062 = vmatpush.bf16.msra.mxu0 %v1755
    %2063 = vmatpush.bf16.msra.mxu0 %v1751
    %2064 = vmatpush.bf16.msra.mxu0 %v1747
    %2065 = vmatpush.bf16.msra.mxu0 %v1743
    %2066 = vmatpush.bf16.msra.mxu0 %v1739
    %2067 = vmatmul.bf16.gmra.mxu0 %v1149
    %v2068 = vpop.f32.mrf.mxu0
    %v2069 = vadd.f32 %v2056, %v2068
    %v2070 = vpop.f32.mrf.mxu0
    %2071 = vdwg.mxu0
    %2072 = vmatpush.bf16.msra.mxu0 %v1799
    %2073 = vmatpush.bf16.msra.mxu0 %v1795
    %2074 = vmatpush.bf16.msra.mxu0 %v1791
    %2075 = vmatpush.bf16.msra.mxu0 %v1787
    %2076 = vmatpush.bf16.msra.mxu0 %v1783
    %2077 = vmatpush.bf16.msra.mxu0 %v1779
    %2078 = vmatpush.bf16.msra.mxu0 %v1775
    %2079 = vmatpush.bf16.msra.mxu0 %v1771
    %2080 = vmatmul.bf16.gmra.mxu0 %v1150
    %v2081 = vpop.f32.mrf.mxu0
    %v2082 = vadd.f32 %v2069, %v2081
    %v2083 = vpop.f32.mrf.mxu0
    %2084 = vdwg.mxu0
    %2085 = vmatpush.bf16.msra.mxu0 %v1704
    %2086 = vmatpush.bf16.msra.mxu0 %v1700
    %2087 = vmatpush.bf16.msra.mxu0 %v1696
    %2088 = vmatpush.bf16.msra.mxu0 %v1692
    %2089 = vmatpush.bf16.msra.mxu0 %v1688
    %2090 = vmatpush.bf16.msra.mxu0 %v1684
    %2091 = vmatpush.bf16.msra.mxu0 %v1680
    %2092 = vmatpush.bf16.msra.mxu0 %v1676
    %2093 = vmatmul.bf16.gmra.mxu0 %v1147
    %v2094 = vpop.f32.mrf.mxu0
    %v2095 = vadd.f32 %v1284, %v2094
    %v2096 = vpop.f32.mrf.mxu0
    %2097 = vdwg.mxu0
    %2098 = vmatpush.bf16.msra.mxu0 %v1736
    %2099 = vmatpush.bf16.msra.mxu0 %v1732
    %2100 = vmatpush.bf16.msra.mxu0 %v1728
    %2101 = vmatpush.bf16.msra.mxu0 %v1724
    %2102 = vmatpush.bf16.msra.mxu0 %v1720
    %2103 = vmatpush.bf16.msra.mxu0 %v1716
    %2104 = vmatpush.bf16.msra.mxu0 %v1712
    %2105 = vmatpush.bf16.msra.mxu0 %v1708
    %2106 = vmatmul.bf16.gmra.mxu0 %v1148
    %v2107 = vpop.f32.mrf.mxu0
    %v2108 = vadd.f32 %v2095, %v2107
    %v2109 = vpop.f32.mrf.mxu0
    %2110 = vdwg.mxu0
    %2111 = vmatpush.bf16.msra.mxu0 %v1768
    %2112 = vmatpush.bf16.msra.mxu0 %v1764
    %2113 = vmatpush.bf16.msra.mxu0 %v1760
    %2114 = vmatpush.bf16.msra.mxu0 %v1756
    %2115 = vmatpush.bf16.msra.mxu0 %v1752
    %2116 = vmatpush.bf16.msra.mxu0 %v1748
    %2117 = vmatpush.bf16.msra.mxu0 %v1744
    %2118 = vmatpush.bf16.msra.mxu0 %v1740
    %2119 = vmatmul.bf16.gmra.mxu0 %v1149
    %v2120 = vpop.f32.mrf.mxu0
    %v2121 = vadd.f32 %v2108, %v2120
    %v2122 = vpop.f32.mrf.mxu0
    %2123 = vdwg.mxu0
    %2124 = vmatpush.bf16.msra.mxu0 %v1800
    %2125 = vmatpush.bf16.msra.mxu0 %v1796
    %2126 = vmatpush.bf16.msra.mxu0 %v1792
    %2127 = vmatpush.bf16.msra.mxu0 %v1788
    %2128 = vmatpush.bf16.msra.mxu0 %v1784
    %2129 = vmatpush.bf16.msra.mxu0 %v1780
    %2130 = vmatpush.bf16.msra.mxu0 %v1776
    %2131 = vmatpush.bf16.msra.mxu0 %v1772
    %2132 = vmatmul.bf16.gmra.mxu0 %v1150
    %v2133 = vpop.f32.mrf.mxu0
    %v2134 = vadd.f32 %v2121, %v2133
    %v2135 = vpop.f32.mrf.mxu0
    %2136 = vdwg.mxu0
    %v2137 = vmul.f32 %v1978, 0.5
    %v2138 = vmul.f32 %v2030, 0.5
    %v2139 = vmul.f32 %v2082, 0.5
    %v2140 = vmul.f32 %v2134, 0.5
    %v2141 = vtanh.pop %v2137
    %v2142 = vtanh.pop %v2138
    %v2143 = vtanh.pop %v2139
    %v2144 = vtanh.pop %v2140
    %v2145 = vadd.f32 %v2141, 1.0
    %v2146 = vadd.f32 %v2142, 1.0
    %v2147 = vadd.f32 %v2143, 1.0
    %v2148 = vadd.f32 %v2144, 1.0
    %v2149 = vmul.f32 %v2137, %v2145
    %v2150 = vmul.f32 %v2138, %v2146
    %v2151 = vmul.f32 %v2139, %v2147
    %v2152 = vmul.f32 %v2140, %v2148
    %v2153 = vpack.c.bf16 %v2149, %v2149
    %v2154 = vpack.c.bf16 %v2150, %v2150
    %v2155 = vpack.c.bf16 %v2151, %v2151
    %v2156 = vpack.c.bf16 %v2152, %v2152
    %v2157 = vld [vmem:[%s7] sm:$0xff]
    %v2158 = vld [vmem:[%s7 + $0x8] sm:$0xff]
    %v2159 = vld [vmem:[%s7 + $0x10] sm:$0xff]
    %v2160 = vld [vmem:[%s7 + $0x18] sm:$0xf]
    %v2161 = vld [vmem:[%s7 + $0x1c] sm:$0xff]
    %v2162 = vld [vmem:[%s7 + $0x24] sm:$0xff]
    %v2163 = vld [vmem:[%s7 + $0x2c] sm:$0xff]
    %v2164 = vld [vmem:[%s7 + $0x34] sm:$0xf]
    %v2165 = vld [vmem:[%s7 + $0x38] sm:$0xff]
    %v2166 = vld [vmem:[%s7 + $0x40] sm:$0xff]
    %v2167 = vld [vmem:[%s7 + $0x48] sm:$0xff]
    %v2168 = vld [vmem:[%s7 + $0x50] sm:$0xf]
    %v2169 = vld [vmem:[%s7 + $0x54] sm:$0xff]
    %v2170 = vld [vmem:[%s7 + $0x5c] sm:$0xff]
    %v2171 = vld [vmem:[%s7 + $0x64] sm:$0xff]
    %v2172 = vld [vmem:[%s7 + $0x6c] sm:$0xf]
    %v2173 = vld [vmem:[%s7 + $0x70] sm:$0xff]
    %v2174 = vld [vmem:[%s7 + $0x78] sm:$0xff]
    %v2175 = vld [vmem:[%s7 + $0x80] sm:$0xff]
    %v2176 = vld [vmem:[%s7 + $0x88] sm:$0xf]
    %v2177 = vld [vmem:[%s7 + $0x8c] sm:$0xff]
    %v2178 = vld [vmem:[%s7 + $0x94] sm:$0xff]
    %v2179 = vld [vmem:[%s7 + $0x9c] sm:$0xff]
    %v2180 = vld [vmem:[%s7 + $0xa4] sm:$0xf]
    %v2181 = vld [vmem:[%s7 + $0xa8] sm:$0xff]
    %v2182 = vld [vmem:[%s7 + $0xb0] sm:$0xff]
    %v2183 = vld [vmem:[%s7 + $0xb8] sm:$0xff]
    %v2184 = vld [vmem:[%s7 + $0xc0] sm:$0xf]
    %v2185 = vld [vmem:[%s7 + $0xc4] sm:$0xff]
    %v2186 = vld [vmem:[%s7 + $0xcc] sm:$0xff]
    %v2187 = vld [vmem:[%s7 + $0xd4] sm:$0xff]
    %v2188 = vld [vmem:[%s7 + $0xdc] sm:$0xf]
    %v2189 = vld [vmem:[%s7 + $0xe0] sm:$0xff]
    %v2190 = vld [vmem:[%s7 + $0xe8] sm:$0xff]
    %v2191 = vld [vmem:[%s7 + $0xf0] sm:$0xff]
    %v2192 = vld [vmem:[%s7 + $0xf8] sm:$0xf]
    %v2193 = vld [vmem:[%s7 + $0xfc] sm:$0xff]
    %v2194 = vld [vmem:[%s7 + $0x104] sm:$0xff]
    %v2195 = vld [vmem:[%s7 + $0x10c] sm:$0xff]
    %v2196 = vld [vmem:[%s7 + $0x114] sm:$0xf]
    %v2197 = vld [vmem:[%s7 + $0x118] sm:$0xff]
    %v2198 = vld [vmem:[%s7 + $0x120] sm:$0xff]
    %v2199 = vld [vmem:[%s7 + $0x128] sm:$0xff]
    %v2200 = vld [vmem:[%s7 + $0x130] sm:$0xf]
    %v2201 = vld [vmem:[%s7 + $0x134] sm:$0xff]
    %v2202 = vld [vmem:[%s7 + $0x13c] sm:$0xff]
    %v2203 = vld [vmem:[%s7 + $0x144] sm:$0xff]
    %v2204 = vld [vmem:[%s7 + $0x14c] sm:$0xf]
    %v2205 = vld [vmem:[%s7 + $0x150] sm:$0xff]
    %v2206 = vld [vmem:[%s7 + $0x158] sm:$0xff]
    %v2207 = vld [vmem:[%s7 + $0x160] sm:$0xff]
    %v2208 = vld [vmem:[%s7 + $0x168] sm:$0xf]
    %v2209 = vld [vmem:[%s7 + $0x16c] sm:$0xff]
    %v2210 = vld [vmem:[%s7 + $0x174] sm:$0xff]
    %v2211 = vld [vmem:[%s7 + $0x17c] sm:$0xff]
    %v2212 = vld [vmem:[%s7 + $0x184] sm:$0xf]
    %v2213 = vld [vmem:[%s7 + $0x188] sm:$0xff]
    %v2214 = vld [vmem:[%s7 + $0x190] sm:$0xff]
    %v2215 = vld [vmem:[%s7 + $0x198] sm:$0xff]
    %v2216 = vld [vmem:[%s7 + $0x1a0] sm:$0xf]
    %v2217 = vld [vmem:[%s7 + $0x1a4] sm:$0xff]
    %v2218 = vld [vmem:[%s7 + $0x1ac] sm:$0xff]
    %v2219 = vld [vmem:[%s7 + $0x1b4] sm:$0xff]
    %v2220 = vld [vmem:[%s7 + $0x1bc] sm:$0xf]
    %v2221 = vld [vmem:[%s7 + $0x1c0] sm:$0xff]
    %v2222 = vld [vmem:[%s7 + $0x1c8] sm:$0xff]
    %v2223 = vld [vmem:[%s7 + $0x1d0] sm:$0xff]
    %v2224 = vld [vmem:[%s7 + $0x1d8] sm:$0xf]
    %v2225 = vld [vmem:[%s7 + $0x1dc] sm:$0xff]
    %v2226 = vld [vmem:[%s7 + $0x1e4] sm:$0xff]
    %v2227 = vld [vmem:[%s7 + $0x1ec] sm:$0xff]
    %v2228 = vld [vmem:[%s7 + $0x1f4] sm:$0xf]
    %v2229 = vld [vmem:[%s7 + $0x1f8] sm:$0xff]
    %v2230 = vld [vmem:[%s7 + $0x200] sm:$0xff]
    %v2231 = vld [vmem:[%s7 + $0x208] sm:$0xff]
    %v2232 = vld [vmem:[%s7 + $0x210] sm:$0xf]
    %v2233 = vld [vmem:[%s7 + $0x214] sm:$0xff]
    %v2234 = vld [vmem:[%s7 + $0x21c] sm:$0xff]
    %v2235 = vld [vmem:[%s7 + $0x224] sm:$0xff]
    %v2236 = vld [vmem:[%s7 + $0x22c] sm:$0xf]
    %v2237 = vld [vmem:[%s7 + $0x230] sm:$0xff]
    %v2238 = vld [vmem:[%s7 + $0x238] sm:$0xff]
    %v2239 = vld [vmem:[%s7 + $0x240] sm:$0xff]
    %v2240 = vld [vmem:[%s7 + $0x248] sm:$0xf]
    %v2241 = vld [vmem:[%s7 + $0x24c] sm:$0xff]
    %v2242 = vld [vmem:[%s7 + $0x254] sm:$0xff]
    %v2243 = vld [vmem:[%s7 + $0x25c] sm:$0xff]
    %v2244 = vld [vmem:[%s7 + $0x264] sm:$0xf]
    %v2245 = vld [vmem:[%s7 + $0x268] sm:$0xff]
    %v2246 = vld [vmem:[%s7 + $0x270] sm:$0xff]
    %v2247 = vld [vmem:[%s7 + $0x278] sm:$0xff]
    %v2248 = vld [vmem:[%s7 + $0x280] sm:$0xf]
    %v2249 = vld [vmem:[%s7 + $0x284] sm:$0xff]
    %v2250 = vld [vmem:[%s7 + $0x28c] sm:$0xff]
    %v2251 = vld [vmem:[%s7 + $0x294] sm:$0xff]
    %v2252 = vld [vmem:[%s7 + $0x29c] sm:$0xf]
    %v2253 = vld [vmem:[%s7 + $0x2a0] sm:$0xff]
    %v2254 = vld [vmem:[%s7 + $0x2a8] sm:$0xff]
    %v2255 = vld [vmem:[%s7 + $0x2b0] sm:$0xff]
    %v2256 = vld [vmem:[%s7 + $0x2b8] sm:$0xf]
    %v2257 = vld [vmem:[%s7 + $0x2bc] sm:$0xff]
    %v2258 = vld [vmem:[%s7 + $0x2c4] sm:$0xff]
    %v2259 = vld [vmem:[%s7 + $0x2cc] sm:$0xff]
    %v2260 = vld [vmem:[%s7 + $0x2d4] sm:$0xf]
    %v2261 = vld [vmem:[%s7 + $0x2d8] sm:$0xff]
    %v2262 = vld [vmem:[%s7 + $0x2e0] sm:$0xff]
    %v2263 = vld [vmem:[%s7 + $0x2e8] sm:$0xff]
    %v2264 = vld [vmem:[%s7 + $0x2f0] sm:$0xf]
    %v2265 = vld [vmem:[%s7 + $0x2f4] sm:$0xff]
    %v2266 = vld [vmem:[%s7 + $0x2fc] sm:$0xff]
    %v2267 = vld [vmem:[%s7 + $0x304] sm:$0xff]
    %v2268 = vld [vmem:[%s7 + $0x30c] sm:$0xf]
    %v2269 = vld [vmem:[%s7 + $0x310] sm:$0xff]
    %v2270 = vld [vmem:[%s7 + $0x318] sm:$0xff]
    %v2271 = vld [vmem:[%s7 + $0x320] sm:$0xff]
    %v2272 = vld [vmem:[%s7 + $0x328] sm:$0xf]
    %v2273 = vld [vmem:[%s7 + $0x32c] sm:$0xff]
    %v2274 = vld [vmem:[%s7 + $0x334] sm:$0xff]
    %v2275 = vld [vmem:[%s7 + $0x33c] sm:$0xff]
    %v2276 = vld [vmem:[%s7 + $0x344] sm:$0xf]
    %v2277 = vld [vmem:[%s7 + $0x348] sm:$0xff]
    %v2278 = vld [vmem:[%s7 + $0x350] sm:$0xff]
    %v2279 = vld [vmem:[%s7 + $0x358] sm:$0xff]
    %v2280 = vld [vmem:[%s7 + $0x360] sm:$0xf]
    %v2281 = vld [vmem:[%s7 + $0x364] sm:$0xff]
    %v2282 = vld [vmem:[%s7 + $0x36c] sm:$0xff]
    %v2283 = vld [vmem:[%s7 + $0x374] sm:$0xff]
    %v2284 = vld [vmem:[%s7 + $0x37c] sm:$0xf]
    %v2285 = vld [vmem:[%s7 + $0x380] sm:$0xff]
    %v2286 = vld [vmem:[%s7 + $0x388] sm:$0xff]
    %v2287 = vld [vmem:[%s7 + $0x390] sm:$0xff]
    %v2288 = vld [vmem:[%s7 + $0x398] sm:$0xf]
    %v2289 = vld [vmem:[%s7 + $0x39c] sm:$0xff]
    %v2290 = vld [vmem:[%s7 + $0x3a4] sm:$0xff]
    %v2291 = vld [vmem:[%s7 + $0x3ac] sm:$0xff]
    %v2292 = vld [vmem:[%s7 + $0x3b4] sm:$0xf]
    %v2293 = vld [vmem:[%s7 + $0x3b8] sm:$0xff]
    %v2294 = vld [vmem:[%s7 + $0x3c0] sm:$0xff]
    %v2295 = vld [vmem:[%s7 + $0x3c8] sm:$0xff]
    %v2296 = vld [vmem:[%s7 + $0x3d0] sm:$0xf]
    %v2297 = vld [vmem:[%s7 + $0x3d4] sm:$0xff]
    %v2298 = vld [vmem:[%s7 + $0x3dc] sm:$0xff]
    %v2299 = vld [vmem:[%s7 + $0x3e4] sm:$0xff]
    %v2300 = vld [vmem:[%s7 + $0x3ec] sm:$0xf]
    %v2301 = vld [vmem:[%s7 + $0x3f0] sm:$0xff]
    %v2302 = vld [vmem:[%s7 + $0x3f8] sm:$0xff]
    %v2303 = vld [vmem:[%s7 + $0x400] sm:$0xff]
    %v2304 = vld [vmem:[%s7 + $0x408] sm:$0xf]
    %v2305 = vld [vmem:[%s7 + $0x40c] sm:$0xff]
    %v2306 = vld [vmem:[%s7 + $0x414] sm:$0xff]
    %v2307 = vld [vmem:[%s7 + $0x41c] sm:$0xff]
    %v2308 = vld [vmem:[%s7 + $0x424] sm:$0xf]
    %v2309 = vld [vmem:[%s7 + $0x428] sm:$0xff]
    %v2310 = vld [vmem:[%s7 + $0x430] sm:$0xff]
    %v2311 = vld [vmem:[%s7 + $0x438] sm:$0xff]
    %v2312 = vld [vmem:[%s7 + $0x440] sm:$0xf]
    %v2313 = vld [vmem:[%s7 + $0x444] sm:$0xff]
    %v2314 = vld [vmem:[%s7 + $0x44c] sm:$0xff]
    %v2315 = vld [vmem:[%s7 + $0x454] sm:$0xff]
    %v2316 = vld [vmem:[%s7 + $0x45c] sm:$0xf]
    %v2317 = vld [vmem:[%s7 + $0x460] sm:$0xff]
    %v2318 = vld [vmem:[%s7 + $0x468] sm:$0xff]
    %v2319 = vld [vmem:[%s7 + $0x470] sm:$0xff]
    %v2320 = vld [vmem:[%s7 + $0x478] sm:$0xf]
    %v2321 = vld [vmem:[%s7 + $0x47c] sm:$0xff]
    %v2322 = vld [vmem:[%s7 + $0x484] sm:$0xff]
    %v2323 = vld [vmem:[%s7 + $0x48c] sm:$0xff]
    %v2324 = vld [vmem:[%s7 + $0x494] sm:$0xf]
    %v2325 = vld [vmem:[%s7 + $0x498] sm:$0xff]
    %v2326 = vld [vmem:[%s7 + $0x4a0] sm:$0xff]
    %v2327 = vld [vmem:[%s7 + $0x4a8] sm:$0xff]
    %v2328 = vld [vmem:[%s7 + $0x4b0] sm:$0xf]
    %v2329 = vld [vmem:[%s7 + $0x4b4] sm:$0xff]
    %v2330 = vld [vmem:[%s7 + $0x4bc] sm:$0xff]
    %v2331 = vld [vmem:[%s7 + $0x4c4] sm:$0xff]
    %v2332 = vld [vmem:[%s7 + $0x4cc] sm:$0xf]
    %v2333 = vld [vmem:[%s7 + $0x4d0] sm:$0xff]
    %v2334 = vld [vmem:[%s7 + $0x4d8] sm:$0xff]
    %v2335 = vld [vmem:[%s7 + $0x4e0] sm:$0xff]
    %v2336 = vld [vmem:[%s7 + $0x4e8] sm:$0xf]
    %v2337 = vld [vmem:[%s7 + $0x4ec] sm:$0xff]
    %v2338 = vld [vmem:[%s7 + $0x4f4] sm:$0xff]
    %v2339 = vld [vmem:[%s7 + $0x4fc] sm:$0xff]
    %v2340 = vld [vmem:[%s7 + $0x504] sm:$0xf]
    %v2341 = vld [vmem:[%s7 + $0x508] sm:$0xff]
    %v2342 = vld [vmem:[%s7 + $0x510] sm:$0xff]
    %v2343 = vld [vmem:[%s7 + $0x518] sm:$0xff]
    %v2344 = vld [vmem:[%s7 + $0x520] sm:$0xf]
    %v2345 = vld [vmem:[%s7 + $0x524] sm:$0xff]
    %v2346 = vld [vmem:[%s7 + $0x52c] sm:$0xff]
    %v2347 = vld [vmem:[%s7 + $0x534] sm:$0xff]
    %v2348 = vld [vmem:[%s7 + $0x53c] sm:$0xf]
    %v2349 = vld [vmem:[%s7 + $0x540] sm:$0xff]
    %v2350 = vld [vmem:[%s7 + $0x548] sm:$0xff]
    %v2351 = vld [vmem:[%s7 + $0x550] sm:$0xff]
    %v2352 = vld [vmem:[%s7 + $0x558] sm:$0xf]
    %v2353 = vld [vmem:[%s7 + $0x55c] sm:$0xff]
    %v2354 = vld [vmem:[%s7 + $0x564] sm:$0xff]
    %v2355 = vld [vmem:[%s7 + $0x56c] sm:$0xff]
    %v2356 = vld [vmem:[%s7 + $0x574] sm:$0xf]
    %v2357 = vld [vmem:[%s7 + $0x578] sm:$0xff]
    %v2358 = vld [vmem:[%s7 + $0x580] sm:$0xff]
    %v2359 = vld [vmem:[%s7 + $0x588] sm:$0xff]
    %v2360 = vld [vmem:[%s7 + $0x590] sm:$0xf]
    %v2361 = vld [vmem:[%s7 + $0x594] sm:$0xff]
    %v2362 = vld [vmem:[%s7 + $0x59c] sm:$0xff]
    %v2363 = vld [vmem:[%s7 + $0x5a4] sm:$0xff]
    %v2364 = vld [vmem:[%s7 + $0x5ac] sm:$0xf]
    %v2365 = vld [vmem:[%s7 + $0x5b0] sm:$0xff]
    %v2366 = vld [vmem:[%s7 + $0x5b8] sm:$0xff]
    %v2367 = vld [vmem:[%s7 + $0x5c0] sm:$0xff]
    %v2368 = vld [vmem:[%s7 + $0x5c8] sm:$0xf]
    %v2369 = vld [vmem:[%s7 + $0x5cc] sm:$0xff]
    %v2370 = vld [vmem:[%s7 + $0x5d4] sm:$0xff]
    %v2371 = vld [vmem:[%s7 + $0x5dc] sm:$0xff]
    %v2372 = vld [vmem:[%s7 + $0x5e4] sm:$0xf]
    %v2373 = vld [vmem:[%s7 + $0x5e8] sm:$0xff]
    %v2374 = vld [vmem:[%s7 + $0x5f0] sm:$0xff]
    %v2375 = vld [vmem:[%s7 + $0x5f8] sm:$0xff]
    %v2376 = vld [vmem:[%s7 + $0x600] sm:$0xf]
    %v2377 = vld [vmem:[%s7 + $0x604] sm:$0xff]
    %v2378 = vld [vmem:[%s7 + $0x60c] sm:$0xff]
    %v2379 = vld [vmem:[%s7 + $0x614] sm:$0xff]
    %v2380 = vld [vmem:[%s7 + $0x61c] sm:$0xf]
    %v2381 = vld [vmem:[%s7 + $0x620] sm:$0xff]
    %v2382 = vld [vmem:[%s7 + $0x628] sm:$0xff]
    %v2383 = vld [vmem:[%s7 + $0x630] sm:$0xff]
    %v2384 = vld [vmem:[%s7 + $0x638] sm:$0xf]
    %v2385 = vld [vmem:[%s7 + $0x63c] sm:$0xff]
    %v2386 = vld [vmem:[%s7 + $0x644] sm:$0xff]
    %v2387 = vld [vmem:[%s7 + $0x64c] sm:$0xff]
    %v2388 = vld [vmem:[%s7 + $0x654] sm:$0xf]
    %v2389 = vld [vmem:[%s7 + $0x658] sm:$0xff]
    %v2390 = vld [vmem:[%s7 + $0x660] sm:$0xff]
    %v2391 = vld [vmem:[%s7 + $0x668] sm:$0xff]
    %v2392 = vld [vmem:[%s7 + $0x670] sm:$0xf]
    %v2393 = vld [vmem:[%s7 + $0x674] sm:$0xff]
    %v2394 = vld [vmem:[%s7 + $0x67c] sm:$0xff]
    %v2395 = vld [vmem:[%s7 + $0x684] sm:$0xff]
    %v2396 = vld [vmem:[%s7 + $0x68c] sm:$0xf]
    %v2397 = vld [vmem:[%s7 + $0x690] sm:$0xff]
    %v2398 = vld [vmem:[%s7 + $0x698] sm:$0xff]
    %v2399 = vld [vmem:[%s7 + $0x6a0] sm:$0xff]
    %v2400 = vld [vmem:[%s7 + $0x6a8] sm:$0xf]
    %v2401 = vld [vmem:[%s7 + $0x6ac] sm:$0xff]
    %v2402 = vld [vmem:[%s7 + $0x6b4] sm:$0xff]
    %v2403 = vld [vmem:[%s7 + $0x6bc] sm:$0xff]
    %v2404 = vld [vmem:[%s7 + $0x6c4] sm:$0xf]
    %v2405 = vld [vmem:[%s7 + $0x6c8] sm:$0xff]
    %v2406 = vld [vmem:[%s7 + $0x6d0] sm:$0xff]
    %v2407 = vld [vmem:[%s7 + $0x6d8] sm:$0xff]
    %v2408 = vld [vmem:[%s7 + $0x6e0] sm:$0xf]
    %v2409 = vld [vmem:[%s7 + $0x6e4] sm:$0xff]
    %v2410 = vld [vmem:[%s7 + $0x6ec] sm:$0xff]
    %v2411 = vld [vmem:[%s7 + $0x6f4] sm:$0xff]
    %v2412 = vld [vmem:[%s7 + $0x6fc] sm:$0xf]
    %v2413 = vld [vmem:[%s8] sm:$0x7f]
    %v2415 = vperm.slane %v2413, 0
    %v2416 = vperm.slane %v2413, 1
    %v2417 = vperm.slane %v2413, 2
    %v2418 = vperm.slane %v2413, 3
    %v2419 = vperm.slane %v2413, 4
    %v2420 = vperm.slane %v2413, 5
    %v2421 = vperm.slane %v2413, 6
    %v2685 = vunpack.c.l.b16 %v2157
    %v2686 = vunpack.c.h.b16 %v2157
    %v2687 = vunpack.c.l.b16 %v2158
    %v2688 = vunpack.c.h.b16 %v2158
    %v2689 = vunpack.c.l.b16 %v2159
    %v2690 = vunpack.c.h.b16 %v2159
    %v2691 = vunpack.c.l.b16 %v2160
    %v2692 = vunpack.c.l.b16 %v2161
    %v2693 = vunpack.c.h.b16 %v2161
    %v2694 = vunpack.c.l.b16 %v2162
    %v2695 = vunpack.c.h.b16 %v2162
    %v2696 = vunpack.c.l.b16 %v2163
    %v2697 = vunpack.c.h.b16 %v2163
    %v2698 = vunpack.c.l.b16 %v2164
    %v2699 = vunpack.c.l.b16 %v2165
    %v2700 = vunpack.c.h.b16 %v2165
    %v2701 = vunpack.c.l.b16 %v2166
    %v2702 = vunpack.c.h.b16 %v2166
    %v2703 = vunpack.c.l.b16 %v2167
    %v2704 = vunpack.c.h.b16 %v2167
    %v2705 = vunpack.c.l.b16 %v2168
    %v2706 = vunpack.c.l.b16 %v2169
    %v2707 = vunpack.c.h.b16 %v2169
    %v2708 = vunpack.c.l.b16 %v2170
    %v2709 = vunpack.c.h.b16 %v2170
    %v2710 = vunpack.c.l.b16 %v2171
    %v2711 = vunpack.c.h.b16 %v2171
    %v2712 = vunpack.c.l.b16 %v2172
    %v2713 = vunpack.c.l.b16 %v2173
    %v2714 = vunpack.c.h.b16 %v2173
    %v2715 = vunpack.c.l.b16 %v2174
    %v2716 = vunpack.c.h.b16 %v2174
    %v2717 = vunpack.c.l.b16 %v2175
    %v2718 = vunpack.c.h.b16 %v2175
    %v2719 = vunpack.c.l.b16 %v2176
    %v2720 = vunpack.c.l.b16 %v2177
    %v2721 = vunpack.c.h.b16 %v2177
    %v2722 = vunpack.c.l.b16 %v2178
    %v2723 = vunpack.c.h.b16 %v2178
    %v2724 = vunpack.c.l.b16 %v2179
    %v2725 = vunpack.c.h.b16 %v2179
    %v2726 = vunpack.c.l.b16 %v2180
    %v2727 = vunpack.c.l.b16 %v2181
    %v2728 = vunpack.c.h.b16 %v2181
    %v2729 = vunpack.c.l.b16 %v2182
    %v2730 = vunpack.c.h.b16 %v2182
    %v2731 = vunpack.c.l.b16 %v2183
    %v2732 = vunpack.c.h.b16 %v2183
    %v2733 = vunpack.c.l.b16 %v2184
    %v2734 = vunpack.c.l.b16 %v2185
    %v2735 = vunpack.c.h.b16 %v2185
    %v2736 = vunpack.c.l.b16 %v2186
    %v2737 = vunpack.c.h.b16 %v2186
    %v2738 = vunpack.c.l.b16 %v2187
    %v2739 = vunpack.c.h.b16 %v2187
    %v2740 = vunpack.c.l.b16 %v2188
    %v2741 = vunpack.c.l.b16 %v2189
    %v2742 = vunpack.c.h.b16 %v2189
    %v2743 = vunpack.c.l.b16 %v2190
    %v2744 = vunpack.c.h.b16 %v2190
    %v2745 = vunpack.c.l.b16 %v2191
    %v2746 = vunpack.c.h.b16 %v2191
    %v2747 = vunpack.c.l.b16 %v2192
    %v2748 = vunpack.c.l.b16 %v2193
    %v2749 = vunpack.c.h.b16 %v2193
    %v2750 = vunpack.c.l.b16 %v2194
    %v2751 = vunpack.c.h.b16 %v2194
    %v2752 = vunpack.c.l.b16 %v2195
    %v2753 = vunpack.c.h.b16 %v2195
    %v2754 = vunpack.c.l.b16 %v2196
    %v2755 = vunpack.c.l.b16 %v2197
    %v2756 = vunpack.c.h.b16 %v2197
    %v2757 = vunpack.c.l.b16 %v2198
    %v2758 = vunpack.c.h.b16 %v2198
    %v2759 = vunpack.c.l.b16 %v2199
    %v2760 = vunpack.c.h.b16 %v2199
    %v2761 = vunpack.c.l.b16 %v2200
    %v2762 = vunpack.c.l.b16 %v2201
    %v2763 = vunpack.c.h.b16 %v2201
    %v2764 = vunpack.c.l.b16 %v2202
    %v2765 = vunpack.c.h.b16 %v2202
    %v2766 = vunpack.c.l.b16 %v2203
    %v2767 = vunpack.c.h.b16 %v2203
    %v2768 = vunpack.c.l.b16 %v2204
    %v2769 = vunpack.c.l.b16 %v2205
    %v2770 = vunpack.c.h.b16 %v2205
    %v2771 = vunpack.c.l.b16 %v2206
    %v2772 = vunpack.c.h.b16 %v2206
    %v2773 = vunpack.c.l.b16 %v2207
    %v2774 = vunpack.c.h.b16 %v2207
    %v2775 = vunpack.c.l.b16 %v2208
    %v2776 = vunpack.c.l.b16 %v2209
    %v2777 = vunpack.c.h.b16 %v2209
    %v2778 = vunpack.c.l.b16 %v2210
    %v2779 = vunpack.c.h.b16 %v2210
    %v2780 = vunpack.c.l.b16 %v2211
    %v2781 = vunpack.c.h.b16 %v2211
    %v2782 = vunpack.c.l.b16 %v2212
    %v2783 = vunpack.c.l.b16 %v2213
    %v2784 = vunpack.c.h.b16 %v2213
    %v2785 = vunpack.c.l.b16 %v2214
    %v2786 = vunpack.c.h.b16 %v2214
    %v2787 = vunpack.c.l.b16 %v2215
    %v2788 = vunpack.c.h.b16 %v2215
    %v2789 = vunpack.c.l.b16 %v2216
    %v2790 = vunpack.c.l.b16 %v2217
    %v2791 = vunpack.c.h.b16 %v2217
    %v2792 = vunpack.c.l.b16 %v2218
    %v2793 = vunpack.c.h.b16 %v2218
    %v2794 = vunpack.c.l.b16 %v2219
    %v2795 = vunpack.c.h.b16 %v2219
    %v2796 = vunpack.c.l.b16 %v2220
    %v2797 = vunpack.c.l.b16 %v2221
    %v2798 = vunpack.c.h.b16 %v2221
    %v2799 = vunpack.c.l.b16 %v2222
    %v2800 = vunpack.c.h.b16 %v2222
    %v2801 = vunpack.c.l.b16 %v2223
    %v2802 = vunpack.c.h.b16 %v2223
    %v2803 = vunpack.c.l.b16 %v2224
    %v2804 = vunpack.c.l.b16 %v2225
    %v2805 = vunpack.c.h.b16 %v2225
    %v2806 = vunpack.c.l.b16 %v2226
    %v2807 = vunpack.c.h.b16 %v2226
    %v2808 = vunpack.c.l.b16 %v2227
    %v2809 = vunpack.c.h.b16 %v2227
    %v2810 = vunpack.c.l.b16 %v2228
    %v2811 = vunpack.c.l.b16 %v2229
    %v2812 = vunpack.c.h.b16 %v2229
    %v2813 = vunpack.c.l.b16 %v2230
    %v2814 = vunpack.c.h.b16 %v2230
    %v2815 = vunpack.c.l.b16 %v2231
    %v2816 = vunpack.c.h.b16 %v2231
    %v2817 = vunpack.c.l.b16 %v2232
    %v2818 = vunpack.c.l.b16 %v2233
    %v2819 = vunpack.c.h.b16 %v2233
    %v2820 = vunpack.c.l.b16 %v2234
    %v2821 = vunpack.c.h.b16 %v2234
    %v2822 = vunpack.c.l.b16 %v2235
    %v2823 = vunpack.c.h.b16 %v2235
    %v2824 = vunpack.c.l.b16 %v2236
    %v2825 = vunpack.c.l.b16 %v2237
    %v2826 = vunpack.c.h.b16 %v2237
    %v2827 = vunpack.c.l.b16 %v2238
    %v2828 = vunpack.c.h.b16 %v2238
    %v2829 = vunpack.c.l.b16 %v2239
    %v2830 = vunpack.c.h.b16 %v2239
    %v2831 = vunpack.c.l.b16 %v2240
    %v2832 = vunpack.c.l.b16 %v2241
    %v2833 = vunpack.c.h.b16 %v2241
    %v2834 = vunpack.c.l.b16 %v2242
    %v2835 = vunpack.c.h.b16 %v2242
    %v2836 = vunpack.c.l.b16 %v2243
    %v2837 = vunpack.c.h.b16 %v2243
    %v2838 = vunpack.c.l.b16 %v2244
    %v2839 = vunpack.c.l.b16 %v2245
    %v2840 = vunpack.c.h.b16 %v2245
    %v2841 = vunpack.c.l.b16 %v2246
    %v2842 = vunpack.c.h.b16 %v2246
    %v2843 = vunpack.c.l.b16 %v2247
    %v2844 = vunpack.c.h.b16 %v2247
    %v2845 = vunpack.c.l.b16 %v2248
    %v2846 = vunpack.c.l.b16 %v2249
    %v2847 = vunpack.c.h.b16 %v2249
    %v2848 = vunpack.c.l.b16 %v2250
    %v2849 = vunpack.c.h.b16 %v2250
    %v2850 = vunpack.c.l.b16 %v2251
    %v2851 = vunpack.c.h.b16 %v2251
    %v2852 = vunpack.c.l.b16 %v2252
    %v2853 = vunpack.c.l.b16 %v2253
    %v2854 = vunpack.c.h.b16 %v2253
    %v2855 = vunpack.c.l.b16 %v2254
    %v2856 = vunpack.c.h.b16 %v2254
    %v2857 = vunpack.c.l.b16 %v2255
    %v2858 = vunpack.c.h.b16 %v2255
    %v2859 = vunpack.c.l.b16 %v2256
    %v2860 = vunpack.c.l.b16 %v2257
    %v2861 = vunpack.c.h.b16 %v2257
    %v2862 = vunpack.c.l.b16 %v2258
    %v2863 = vunpack.c.h.b16 %v2258
    %v2864 = vunpack.c.l.b16 %v2259
    %v2865 = vunpack.c.h.b16 %v2259
    %v2866 = vunpack.c.l.b16 %v2260
    %v2867 = vunpack.c.l.b16 %v2261
    %v2868 = vunpack.c.h.b16 %v2261
    %v2869 = vunpack.c.l.b16 %v2262
    %v2870 = vunpack.c.h.b16 %v2262
    %v2871 = vunpack.c.l.b16 %v2263
    %v2872 = vunpack.c.h.b16 %v2263
    %v2873 = vunpack.c.l.b16 %v2264
    %v2874 = vunpack.c.l.b16 %v2265
    %v2875 = vunpack.c.h.b16 %v2265
    %v2876 = vunpack.c.l.b16 %v2266
    %v2877 = vunpack.c.h.b16 %v2266
    %v2878 = vunpack.c.l.b16 %v2267
    %v2879 = vunpack.c.h.b16 %v2267
    %v2880 = vunpack.c.l.b16 %v2268
    %v2881 = vunpack.c.l.b16 %v2269
    %v2882 = vunpack.c.h.b16 %v2269
    %v2883 = vunpack.c.l.b16 %v2270
    %v2884 = vunpack.c.h.b16 %v2270
    %v2885 = vunpack.c.l.b16 %v2271
    %v2886 = vunpack.c.h.b16 %v2271
    %v2887 = vunpack.c.l.b16 %v2272
    %v2888 = vunpack.c.l.b16 %v2273
    %v2889 = vunpack.c.h.b16 %v2273
    %v2890 = vunpack.c.l.b16 %v2274
    %v2891 = vunpack.c.h.b16 %v2274
    %v2892 = vunpack.c.l.b16 %v2275
    %v2893 = vunpack.c.h.b16 %v2275
    %v2894 = vunpack.c.l.b16 %v2276
    %v2895 = vunpack.c.l.b16 %v2277
    %v2896 = vunpack.c.h.b16 %v2277
    %v2897 = vunpack.c.l.b16 %v2278
    %v2898 = vunpack.c.h.b16 %v2278
    %v2899 = vunpack.c.l.b16 %v2279
    %v2900 = vunpack.c.h.b16 %v2279
    %v2901 = vunpack.c.l.b16 %v2280
    %v2902 = vunpack.c.l.b16 %v2281
    %v2903 = vunpack.c.h.b16 %v2281
    %v2904 = vunpack.c.l.b16 %v2282
    %v2905 = vunpack.c.h.b16 %v2282
    %v2906 = vunpack.c.l.b16 %v2283
    %v2907 = vunpack.c.h.b16 %v2283
    %v2908 = vunpack.c.l.b16 %v2284
    %v2909 = vunpack.c.l.b16 %v2285
    %v2910 = vunpack.c.h.b16 %v2285
    %v2911 = vunpack.c.l.b16 %v2286
    %v2912 = vunpack.c.h.b16 %v2286
    %v2913 = vunpack.c.l.b16 %v2287
    %v2914 = vunpack.c.h.b16 %v2287
    %v2915 = vunpack.c.l.b16 %v2288
    %v2916 = vunpack.c.l.b16 %v2289
    %v2917 = vunpack.c.h.b16 %v2289
    %v2918 = vunpack.c.l.b16 %v2290
    %v2919 = vunpack.c.h.b16 %v2290
    %v2920 = vunpack.c.l.b16 %v2291
    %v2921 = vunpack.c.h.b16 %v2291
    %v2922 = vunpack.c.l.b16 %v2292
    %v2923 = vunpack.c.l.b16 %v2293
    %v2924 = vunpack.c.h.b16 %v2293
    %v2925 = vunpack.c.l.b16 %v2294
    %v2926 = vunpack.c.h.b16 %v2294
    %v2927 = vunpack.c.l.b16 %v2295
    %v2928 = vunpack.c.h.b16 %v2295
    %v2929 = vunpack.c.l.b16 %v2296
    %v2930 = vunpack.c.l.b16 %v2297
    %v2931 = vunpack.c.h.b16 %v2297
    %v2932 = vunpack.c.l.b16 %v2298
    %v2933 = vunpack.c.h.b16 %v2298
    %v2934 = vunpack.c.l.b16 %v2299
    %v2935 = vunpack.c.h.b16 %v2299
    %v2936 = vunpack.c.l.b16 %v2300
    %v2937 = vunpack.c.l.b16 %v2301
    %v2938 = vunpack.c.h.b16 %v2301
    %v2939 = vunpack.c.l.b16 %v2302
    %v2940 = vunpack.c.h.b16 %v2302
    %v2941 = vunpack.c.l.b16 %v2303
    %v2942 = vunpack.c.h.b16 %v2303
    %v2943 = vunpack.c.l.b16 %v2304
    %v2944 = vunpack.c.l.b16 %v2305
    %v2945 = vunpack.c.h.b16 %v2305
    %v2946 = vunpack.c.l.b16 %v2306
    %v2947 = vunpack.c.h.b16 %v2306
    %v2948 = vunpack.c.l.b16 %v2307
    %v2949 = vunpack.c.h.b16 %v2307
    %v2950 = vunpack.c.l.b16 %v2308
    %v2951 = vunpack.c.l.b16 %v2309
    %v2952 = vunpack.c.h.b16 %v2309
    %v2953 = vunpack.c.l.b16 %v2310
    %v2954 = vunpack.c.h.b16 %v2310
    %v2955 = vunpack.c.l.b16 %v2311
    %v2956 = vunpack.c.h.b16 %v2311
    %v2957 = vunpack.c.l.b16 %v2312
    %v2958 = vunpack.c.l.b16 %v2313
    %v2959 = vunpack.c.h.b16 %v2313
    %v2960 = vunpack.c.l.b16 %v2314
    %v2961 = vunpack.c.h.b16 %v2314
    %v2962 = vunpack.c.l.b16 %v2315
    %v2963 = vunpack.c.h.b16 %v2315
    %v2964 = vunpack.c.l.b16 %v2316
    %v2965 = vunpack.c.l.b16 %v2317
    %v2966 = vunpack.c.h.b16 %v2317
    %v2967 = vunpack.c.l.b16 %v2318
    %v2968 = vunpack.c.h.b16 %v2318
    %v2969 = vunpack.c.l.b16 %v2319
    %v2970 = vunpack.c.h.b16 %v2319
    %v2971 = vunpack.c.l.b16 %v2320
    %v2972 = vunpack.c.l.b16 %v2321
    %v2973 = vunpack.c.h.b16 %v2321
    %v2974 = vunpack.c.l.b16 %v2322
    %v2975 = vunpack.c.h.b16 %v2322
    %v2976 = vunpack.c.l.b16 %v2323
    %v2977 = vunpack.c.h.b16 %v2323
    %v2978 = vunpack.c.l.b16 %v2324
    %v2979 = vunpack.c.l.b16 %v2325
    %v2980 = vunpack.c.h.b16 %v2325
    %v2981 = vunpack.c.l.b16 %v2326
    %v2982 = vunpack.c.h.b16 %v2326
    %v2983 = vunpack.c.l.b16 %v2327
    %v2984 = vunpack.c.h.b16 %v2327
    %v2985 = vunpack.c.l.b16 %v2328
    %v2986 = vunpack.c.l.b16 %v2329
    %v2987 = vunpack.c.h.b16 %v2329
    %v2988 = vunpack.c.l.b16 %v2330
    %v2989 = vunpack.c.h.b16 %v2330
    %v2990 = vunpack.c.l.b16 %v2331
    %v2991 = vunpack.c.h.b16 %v2331
    %v2992 = vunpack.c.l.b16 %v2332
    %v2993 = vunpack.c.l.b16 %v2333
    %v2994 = vunpack.c.h.b16 %v2333
    %v2995 = vunpack.c.l.b16 %v2334
    %v2996 = vunpack.c.h.b16 %v2334
    %v2997 = vunpack.c.l.b16 %v2335
    %v2998 = vunpack.c.h.b16 %v2335
    %v2999 = vunpack.c.l.b16 %v2336
    %v3000 = vunpack.c.l.b16 %v2337
    %v3001 = vunpack.c.h.b16 %v2337
    %v3002 = vunpack.c.l.b16 %v2338
    %v3003 = vunpack.c.h.b16 %v2338
    %v3004 = vunpack.c.l.b16 %v2339
    %v3005 = vunpack.c.h.b16 %v2339
    %v3006 = vunpack.c.l.b16 %v2340
    %v3007 = vunpack.c.l.b16 %v2341
    %v3008 = vunpack.c.h.b16 %v2341
    %v3009 = vunpack.c.l.b16 %v2342
    %v3010 = vunpack.c.h.b16 %v2342
    %v3011 = vunpack.c.l.b16 %v2343
    %v3012 = vunpack.c.h.b16 %v2343
    %v3013 = vunpack.c.l.b16 %v2344
    %v3014 = vunpack.c.l.b16 %v2345
    %v3015 = vunpack.c.h.b16 %v2345
    %v3016 = vunpack.c.l.b16 %v2346
    %v3017 = vunpack.c.h.b16 %v2346
    %v3018 = vunpack.c.l.b16 %v2347
    %v3019 = vunpack.c.h.b16 %v2347
    %v3020 = vunpack.c.l.b16 %v2348
    %v3021 = vunpack.c.l.b16 %v2349
    %v3022 = vunpack.c.h.b16 %v2349
    %v3023 = vunpack.c.l.b16 %v2350
    %v3024 = vunpack.c.h.b16 %v2350
    %v3025 = vunpack.c.l.b16 %v2351
    %v3026 = vunpack.c.h.b16 %v2351
    %v3027 = vunpack.c.l.b16 %v2352
    %v3028 = vunpack.c.l.b16 %v2353
    %v3029 = vunpack.c.h.b16 %v2353
    %v3030 = vunpack.c.l.b16 %v2354
    %v3031 = vunpack.c.h.b16 %v2354
    %v3032 = vunpack.c.l.b16 %v2355
    %v3033 = vunpack.c.h.b16 %v2355
    %v3034 = vunpack.c.l.b16 %v2356
    %v3035 = vunpack.c.l.b16 %v2357
    %v3036 = vunpack.c.h.b16 %v2357
    %v3037 = vunpack.c.l.b16 %v2358
    %v3038 = vunpack.c.h.b16 %v2358
    %v3039 = vunpack.c.l.b16 %v2359
    %v3040 = vunpack.c.h.b16 %v2359
    %v3041 = vunpack.c.l.b16 %v2360
    %v3042 = vunpack.c.l.b16 %v2361
    %v3043 = vunpack.c.h.b16 %v2361
    %v3044 = vunpack.c.l.b16 %v2362
    %v3045 = vunpack.c.h.b16 %v2362
    %v3046 = vunpack.c.l.b16 %v2363
    %v3047 = vunpack.c.h.b16 %v2363
    %v3048 = vunpack.c.l.b16 %v2364
    %v3049 = vunpack.c.l.b16 %v2365
    %v3050 = vunpack.c.h.b16 %v2365
    %v3051 = vunpack.c.l.b16 %v2366
    %v3052 = vunpack.c.h.b16 %v2366
    %v3053 = vunpack.c.l.b16 %v2367
    %v3054 = vunpack.c.h.b16 %v2367
    %v3055 = vunpack.c.l.b16 %v2368
    %v3056 = vunpack.c.l.b16 %v2369
    %v3057 = vunpack.c.h.b16 %v2369
    %v3058 = vunpack.c.l.b16 %v2370
    %v3059 = vunpack.c.h.b16 %v2370
    %v3060 = vunpack.c.l.b16 %v2371
    %v3061 = vunpack.c.h.b16 %v2371
    %v3062 = vunpack.c.l.b16 %v2372
    %v3063 = vunpack.c.l.b16 %v2373
    %v3064 = vunpack.c.h.b16 %v2373
    %v3065 = vunpack.c.l.b16 %v2374
    %v3066 = vunpack.c.h.b16 %v2374
    %v3067 = vunpack.c.l.b16 %v2375
    %v3068 = vunpack.c.h.b16 %v2375
    %v3069 = vunpack.c.l.b16 %v2376
    %v3070 = vunpack.c.l.b16 %v2377
    %v3071 = vunpack.c.h.b16 %v2377
    %v3072 = vunpack.c.l.b16 %v2378
    %v3073 = vunpack.c.h.b16 %v2378
    %v3074 = vunpack.c.l.b16 %v2379
    %v3075 = vunpack.c.h.b16 %v2379
    %v3076 = vunpack.c.l.b16 %v2380
    %v3077 = vunpack.c.l.b16 %v2381
    %v3078 = vunpack.c.h.b16 %v2381
    %v3079 = vunpack.c.l.b16 %v2382
    %v3080 = vunpack.c.h.b16 %v2382
    %v3081 = vunpack.c.l.b16 %v2383
    %v3082 = vunpack.c.h.b16 %v2383
    %v3083 = vunpack.c.l.b16 %v2384
    %v3084 = vunpack.c.l.b16 %v2385
    %v3085 = vunpack.c.h.b16 %v2385
    %v3086 = vunpack.c.l.b16 %v2386
    %v3087 = vunpack.c.h.b16 %v2386
    %v3088 = vunpack.c.l.b16 %v2387
    %v3089 = vunpack.c.h.b16 %v2387
    %v3090 = vunpack.c.l.b16 %v2388
    %v3091 = vunpack.c.l.b16 %v2389
    %v3092 = vunpack.c.h.b16 %v2389
    %v3093 = vunpack.c.l.b16 %v2390
    %v3094 = vunpack.c.h.b16 %v2390
    %v3095 = vunpack.c.l.b16 %v2391
    %v3096 = vunpack.c.h.b16 %v2391
    %v3097 = vunpack.c.l.b16 %v2392
    %v3098 = vunpack.c.l.b16 %v2393
    %v3099 = vunpack.c.h.b16 %v2393
    %v3100 = vunpack.c.l.b16 %v2394
    %v3101 = vunpack.c.h.b16 %v2394
    %v3102 = vunpack.c.l.b16 %v2395
    %v3103 = vunpack.c.h.b16 %v2395
    %v3104 = vunpack.c.l.b16 %v2396
    %v3105 = vunpack.c.l.b16 %v2397
    %v3106 = vunpack.c.h.b16 %v2397
    %v3107 = vunpack.c.l.b16 %v2398
    %v3108 = vunpack.c.h.b16 %v2398
    %v3109 = vunpack.c.l.b16 %v2399
    %v3110 = vunpack.c.h.b16 %v2399
    %v3111 = vunpack.c.l.b16 %v2400
    %v3112 = vunpack.c.l.b16 %v2401
    %v3113 = vunpack.c.h.b16 %v2401
    %v3114 = vunpack.c.l.b16 %v2402
    %v3115 = vunpack.c.h.b16 %v2402
    %v3116 = vunpack.c.l.b16 %v2403
    %v3117 = vunpack.c.h.b16 %v2403
    %v3118 = vunpack.c.l.b16 %v2404
    %v3119 = vunpack.c.l.b16 %v2405
    %v3120 = vunpack.c.h.b16 %v2405
    %v3121 = vunpack.c.l.b16 %v2406
    %v3122 = vunpack.c.h.b16 %v2406
    %v3123 = vunpack.c.l.b16 %v2407
    %v3124 = vunpack.c.h.b16 %v2407
    %v3125 = vunpack.c.l.b16 %v2408
    %v3126 = vunpack.c.l.b16 %v2409
    %v3127 = vunpack.c.h.b16 %v2409
    %v3128 = vunpack.c.l.b16 %v2410
    %v3129 = vunpack.c.h.b16 %v2410
    %v3130 = vunpack.c.l.b16 %v2411
    %v3131 = vunpack.c.h.b16 %v2411
    %v3132 = vunpack.c.l.b16 %v2412
    %v3133 = vpack.c.b16 %v2692, %v2685
    %v3134 = vpack.c.b16 %v2693, %v2686
    %v3135 = vpack.c.b16 %v2694, %v2687
    %v3136 = vpack.c.b16 %v2695, %v2688
    %v3137 = vpack.c.b16 %v2696, %v2689
    %v3138 = vpack.c.b16 %v2697, %v2690
    %v3139 = vpack.c.b16 %v2698, %v2691
    %v3140 = vpack.c.b16 %v2706, %v2699
    %v3141 = vpack.c.b16 %v2707, %v2700
    %v3142 = vpack.c.b16 %v2708, %v2701
    %v3143 = vpack.c.b16 %v2709, %v2702
    %v3144 = vpack.c.b16 %v2710, %v2703
    %v3145 = vpack.c.b16 %v2711, %v2704
    %v3146 = vpack.c.b16 %v2712, %v2705
    %v3147 = vpack.c.b16 %v2720, %v2713
    %v3148 = vpack.c.b16 %v2721, %v2714
    %v3149 = vpack.c.b16 %v2722, %v2715
    %v3150 = vpack.c.b16 %v2723, %v2716
    %v3151 = vpack.c.b16 %v2724, %v2717
    %v3152 = vpack.c.b16 %v2725, %v2718
    %v3153 = vpack.c.b16 %v2726, %v2719
    %v3154 = vpack.c.b16 %v2734, %v2727
    %v3155 = vpack.c.b16 %v2735, %v2728
    %v3156 = vpack.c.b16 %v2736, %v2729
    %v3157 = vpack.c.b16 %v2737, %v2730
    %v3158 = vpack.c.b16 %v2738, %v2731
    %v3159 = vpack.c.b16 %v2739, %v2732
    %v3160 = vpack.c.b16 %v2740, %v2733
    %v3161 = vpack.c.b16 %v2748, %v2741
    %v3162 = vpack.c.b16 %v2749, %v2742
    %v3163 = vpack.c.b16 %v2750, %v2743
    %v3164 = vpack.c.b16 %v2751, %v2744
    %v3165 = vpack.c.b16 %v2752, %v2745
    %v3166 = vpack.c.b16 %v2753, %v2746
    %v3167 = vpack.c.b16 %v2754, %v2747
    %v3168 = vpack.c.b16 %v2762, %v2755
    %v3169 = vpack.c.b16 %v2763, %v2756
    %v3170 = vpack.c.b16 %v2764, %v2757
    %v3171 = vpack.c.b16 %v2765, %v2758
    %v3172 = vpack.c.b16 %v2766, %v2759
    %v3173 = vpack.c.b16 %v2767, %v2760
    %v3174 = vpack.c.b16 %v2768, %v2761
    %v3175 = vpack.c.b16 %v2776, %v2769
    %v3176 = vpack.c.b16 %v2777, %v2770
    %v3177 = vpack.c.b16 %v2778, %v2771
    %v3178 = vpack.c.b16 %v2779, %v2772
    %v3179 = vpack.c.b16 %v2780, %v2773
    %v3180 = vpack.c.b16 %v2781, %v2774
    %v3181 = vpack.c.b16 %v2782, %v2775
    %v3182 = vpack.c.b16 %v2790, %v2783
    %v3183 = vpack.c.b16 %v2791, %v2784
    %v3184 = vpack.c.b16 %v2792, %v2785
    %v3185 = vpack.c.b16 %v2793, %v2786
    %v3186 = vpack.c.b16 %v2794, %v2787
    %v3187 = vpack.c.b16 %v2795, %v2788
    %v3188 = vpack.c.b16 %v2796, %v2789
    %v3189 = vpack.c.b16 %v2804, %v2797
    %v3190 = vpack.c.b16 %v2805, %v2798
    %v3191 = vpack.c.b16 %v2806, %v2799
    %v3192 = vpack.c.b16 %v2807, %v2800
    %v3193 = vpack.c.b16 %v2808, %v2801
    %v3194 = vpack.c.b16 %v2809, %v2802
    %v3195 = vpack.c.b16 %v2810, %v2803
    %v3196 = vpack.c.b16 %v2818, %v2811
    %v3197 = vpack.c.b16 %v2819, %v2812
    %v3198 = vpack.c.b16 %v2820, %v2813
    %v3199 = vpack.c.b16 %v2821, %v2814
    %v3200 = vpack.c.b16 %v2822, %v2815
    %v3201 = vpack.c.b16 %v2823, %v2816
    %v3202 = vpack.c.b16 %v2824, %v2817
    %v3203 = vpack.c.b16 %v2832, %v2825
    %v3204 = vpack.c.b16 %v2833, %v2826
    %v3205 = vpack.c.b16 %v2834, %v2827
    %v3206 = vpack.c.b16 %v2835, %v2828
    %v3207 = vpack.c.b16 %v2836, %v2829
    %v3208 = vpack.c.b16 %v2837, %v2830
    %v3209 = vpack.c.b16 %v2838, %v2831
    %v3210 = vpack.c.b16 %v2846, %v2839
    %v3211 = vpack.c.b16 %v2847, %v2840
    %v3212 = vpack.c.b16 %v2848, %v2841
    %v3213 = vpack.c.b16 %v2849, %v2842
    %v3214 = vpack.c.b16 %v2850, %v2843
    %v3215 = vpack.c.b16 %v2851, %v2844
    %v3216 = vpack.c.b16 %v2852, %v2845
    %v3217 = vpack.c.b16 %v2860, %v2853
    %v3218 = vpack.c.b16 %v2861, %v2854
    %v3219 = vpack.c.b16 %v2862, %v2855
    %v3220 = vpack.c.b16 %v2863, %v2856
    %v3221 = vpack.c.b16 %v2864, %v2857
    %v3222 = vpack.c.b16 %v2865, %v2858
    %v3223 = vpack.c.b16 %v2866, %v2859
    %v3224 = vpack.c.b16 %v2874, %v2867
    %v3225 = vpack.c.b16 %v2875, %v2868
    %v3226 = vpack.c.b16 %v2876, %v2869
    %v3227 = vpack.c.b16 %v2877, %v2870
    %v3228 = vpack.c.b16 %v2878, %v2871
    %v3229 = vpack.c.b16 %v2879, %v2872
    %v3230 = vpack.c.b16 %v2880, %v2873
    %v3231 = vpack.c.b16 %v2888, %v2881
    %v3232 = vpack.c.b16 %v2889, %v2882
    %v3233 = vpack.c.b16 %v2890, %v2883
    %v3234 = vpack.c.b16 %v2891, %v2884
    %v3235 = vpack.c.b16 %v2892, %v2885
    %v3236 = vpack.c.b16 %v2893, %v2886
    %v3237 = vpack.c.b16 %v2894, %v2887
    %v3238 = vpack.c.b16 %v2902, %v2895
    %v3239 = vpack.c.b16 %v2903, %v2896
    %v3240 = vpack.c.b16 %v2904, %v2897
    %v3241 = vpack.c.b16 %v2905, %v2898
    %v3242 = vpack.c.b16 %v2906, %v2899
    %v3243 = vpack.c.b16 %v2907, %v2900
    %v3244 = vpack.c.b16 %v2908, %v2901
    %v3245 = vpack.c.b16 %v2916, %v2909
    %v3246 = vpack.c.b16 %v2917, %v2910
    %v3247 = vpack.c.b16 %v2918, %v2911
    %v3248 = vpack.c.b16 %v2919, %v2912
    %v3249 = vpack.c.b16 %v2920, %v2913
    %v3250 = vpack.c.b16 %v2921, %v2914
    %v3251 = vpack.c.b16 %v2922, %v2915
    %v3252 = vpack.c.b16 %v2930, %v2923
    %v3253 = vpack.c.b16 %v2931, %v2924
    %v3254 = vpack.c.b16 %v2932, %v2925
    %v3255 = vpack.c.b16 %v2933, %v2926
    %v3256 = vpack.c.b16 %v2934, %v2927
    %v3257 = vpack.c.b16 %v2935, %v2928
    %v3258 = vpack.c.b16 %v2936, %v2929
    %v3259 = vpack.c.b16 %v2944, %v2937
    %v3260 = vpack.c.b16 %v2945, %v2938
    %v3261 = vpack.c.b16 %v2946, %v2939
    %v3262 = vpack.c.b16 %v2947, %v2940
    %v3263 = vpack.c.b16 %v2948, %v2941
    %v3264 = vpack.c.b16 %v2949, %v2942
    %v3265 = vpack.c.b16 %v2950, %v2943
    %v3266 = vpack.c.b16 %v2958, %v2951
    %v3267 = vpack.c.b16 %v2959, %v2952
    %v3268 = vpack.c.b16 %v2960, %v2953
    %v3269 = vpack.c.b16 %v2961, %v2954
    %v3270 = vpack.c.b16 %v2962, %v2955
    %v3271 = vpack.c.b16 %v2963, %v2956
    %v3272 = vpack.c.b16 %v2964, %v2957
    %v3273 = vpack.c.b16 %v2972, %v2965
    %v3274 = vpack.c.b16 %v2973, %v2966
    %v3275 = vpack.c.b16 %v2974, %v2967
    %v3276 = vpack.c.b16 %v2975, %v2968
    %v3277 = vpack.c.b16 %v2976, %v2969
    %v3278 = vpack.c.b16 %v2977, %v2970
    %v3279 = vpack.c.b16 %v2978, %v2971
    %v3280 = vpack.c.b16 %v2986, %v2979
    %v3281 = vpack.c.b16 %v2987, %v2980
    %v3282 = vpack.c.b16 %v2988, %v2981
    %v3283 = vpack.c.b16 %v2989, %v2982
    %v3284 = vpack.c.b16 %v2990, %v2983
    %v3285 = vpack.c.b16 %v2991, %v2984
    %v3286 = vpack.c.b16 %v2992, %v2985
    %v3287 = vpack.c.b16 %v3000, %v2993
    %v3288 = vpack.c.b16 %v3001, %v2994
    %v3289 = vpack.c.b16 %v3002, %v2995
    %v3290 = vpack.c.b16 %v3003, %v2996
    %v3291 = vpack.c.b16 %v3004, %v2997
    %v3292 = vpack.c.b16 %v3005, %v2998
    %v3293 = vpack.c.b16 %v3006, %v2999
    %v3294 = vpack.c.b16 %v3014, %v3007
    %v3295 = vpack.c.b16 %v3015, %v3008
    %v3296 = vpack.c.b16 %v3016, %v3009
    %v3297 = vpack.c.b16 %v3017, %v3010
    %v3298 = vpack.c.b16 %v3018, %v3011
    %v3299 = vpack.c.b16 %v3019, %v3012
    %v3300 = vpack.c.b16 %v3020, %v3013
    %v3301 = vpack.c.b16 %v3028, %v3021
    %v3302 = vpack.c.b16 %v3029, %v3022
    %v3303 = vpack.c.b16 %v3030, %v3023
    %v3304 = vpack.c.b16 %v3031, %v3024
    %v3305 = vpack.c.b16 %v3032, %v3025
    %v3306 = vpack.c.b16 %v3033, %v3026
    %v3307 = vpack.c.b16 %v3034, %v3027
    %v3308 = vpack.c.b16 %v3042, %v3035
    %v3309 = vpack.c.b16 %v3043, %v3036
    %v3310 = vpack.c.b16 %v3044, %v3037
    %v3311 = vpack.c.b16 %v3045, %v3038
    %v3312 = vpack.c.b16 %v3046, %v3039
    %v3313 = vpack.c.b16 %v3047, %v3040
    %v3314 = vpack.c.b16 %v3048, %v3041
    %v3315 = vpack.c.b16 %v3056, %v3049
    %v3316 = vpack.c.b16 %v3057, %v3050
    %v3317 = vpack.c.b16 %v3058, %v3051
    %v3318 = vpack.c.b16 %v3059, %v3052
    %v3319 = vpack.c.b16 %v3060, %v3053
    %v3320 = vpack.c.b16 %v3061, %v3054
    %v3321 = vpack.c.b16 %v3062, %v3055
    %v3322 = vpack.c.b16 %v3070, %v3063
    %v3323 = vpack.c.b16 %v3071, %v3064
    %v3324 = vpack.c.b16 %v3072, %v3065
    %v3325 = vpack.c.b16 %v3073, %v3066
    %v3326 = vpack.c.b16 %v3074, %v3067
    %v3327 = vpack.c.b16 %v3075, %v3068
    %v3328 = vpack.c.b16 %v3076, %v3069
    %v3329 = vpack.c.b16 %v3084, %v3077
    %v3330 = vpack.c.b16 %v3085, %v3078
    %v3331 = vpack.c.b16 %v3086, %v3079
    %v3332 = vpack.c.b16 %v3087, %v3080
    %v3333 = vpack.c.b16 %v3088, %v3081
    %v3334 = vpack.c.b16 %v3089, %v3082
    %v3335 = vpack.c.b16 %v3090, %v3083
    %v3336 = vpack.c.b16 %v3098, %v3091
    %v3337 = vpack.c.b16 %v3099, %v3092
    %v3338 = vpack.c.b16 %v3100, %v3093
    %v3339 = vpack.c.b16 %v3101, %v3094
    %v3340 = vpack.c.b16 %v3102, %v3095
    %v3341 = vpack.c.b16 %v3103, %v3096
    %v3342 = vpack.c.b16 %v3104, %v3097
    %v3343 = vpack.c.b16 %v3112, %v3105
    %v3344 = vpack.c.b16 %v3113, %v3106
    %v3345 = vpack.c.b16 %v3114, %v3107
    %v3346 = vpack.c.b16 %v3115, %v3108
    %v3347 = vpack.c.b16 %v3116, %v3109
    %v3348 = vpack.c.b16 %v3117, %v3110
    %v3349 = vpack.c.b16 %v3118, %v3111
    %v3350 = vpack.c.b16 %v3126, %v3119
    %v3351 = vpack.c.b16 %v3127, %v3120
    %v3352 = vpack.c.b16 %v3128, %v3121
    %v3353 = vpack.c.b16 %v3129, %v3122
    %v3354 = vpack.c.b16 %v3130, %v3123
    %v3355 = vpack.c.b16 %v3131, %v3124
    %v3356 = vpack.c.b16 %v3132, %v3125
    %3581 = vmatpush.bf16.msra.mxu0 %v3182
    %3582 = vmatpush.bf16.msra.mxu0 %v3175
    %3583 = vmatpush.bf16.msra.mxu0 %v3168
    %3584 = vmatpush.bf16.msra.mxu0 %v3161
    %3585 = vmatpush.bf16.msra.mxu0 %v3154
    %3586 = vmatpush.bf16.msra.mxu0 %v3147
    %3587 = vmatpush.bf16.msra.mxu0 %v3140
    %3588 = vmatpush.bf16.msra.mxu0 %v3133
    %3589 = vmatmul.bf16.gmra.mxu0 %v2153
    %v3590 = vpop.f32.mrf.mxu0
    %v3591 = vadd.f32 %v2415, %v3590
    %v3592 = vpop.f32.mrf.mxu0
    %3593 = vdwg.mxu0
    %3594 = vmatpush.bf16.msra.mxu0 %v3238
    %3595 = vmatpush.bf16.msra.mxu0 %v3231
    %3596 = vmatpush.bf16.msra.mxu0 %v3224
    %3597 = vmatpush.bf16.msra.mxu0 %v3217
    %3598 = vmatpush.bf16.msra.mxu0 %v3210
    %3599 = vmatpush.bf16.msra.mxu0 %v3203
    %3600 = vmatpush.bf16.msra.mxu0 %v3196
    %3601 = vmatpush.bf16.msra.mxu0 %v3189
    %3602 = vmatmul.bf16.gmra.mxu0 %v2154
    %v3603 = vpop.f32.mrf.mxu0
    %v3604 = vadd.f32 %v3591, %v3603
    %v3605 = vpop.f32.mrf.mxu0
    %3606 = vdwg.mxu0
    %3607 = vmatpush.bf16.msra.mxu0 %v3294
    %3608 = vmatpush.bf16.msra.mxu0 %v3287
    %3609 = vmatpush.bf16.msra.mxu0 %v3280
    %3610 = vmatpush.bf16.msra.mxu0 %v3273
    %3611 = vmatpush.bf16.msra.mxu0 %v3266
    %3612 = vmatpush.bf16.msra.mxu0 %v3259
    %3613 = vmatpush.bf16.msra.mxu0 %v3252
    %3614 = vmatpush.bf16.msra.mxu0 %v3245
    %3615 = vmatmul.bf16.gmra.mxu0 %v2155
    %v3616 = vpop.f32.mrf.mxu0
    %v3617 = vadd.f32 %v3604, %v3616
    %v3618 = vpop.f32.mrf.mxu0
    %3619 = vdwg.mxu0
    %3620 = vmatpush.bf16.msra.mxu0 %v3350
    %3621 = vmatpush.bf16.msra.mxu0 %v3343
    %3622 = vmatpush.bf16.msra.mxu0 %v3336
    %3623 = vmatpush.bf16.msra.mxu0 %v3329
    %3624 = vmatpush.bf16.msra.mxu0 %v3322
    %3625 = vmatpush.bf16.msra.mxu0 %v3315
    %3626 = vmatpush.bf16.msra.mxu0 %v3308
    %3627 = vmatpush.bf16.msra.mxu0 %v3301
    %3628 = vmatmul.bf16.gmra.mxu0 %v2156
    %v3629 = vpop.f32.mrf.mxu0
    %v3630 = vadd.f32 %v3617, %v3629
    %v3631 = vpop.f32.mrf.mxu0
    %3632 = vdwg.mxu0
    %3633 = vmatpush.bf16.msra.mxu0 %v3183
    %3634 = vmatpush.bf16.msra.mxu0 %v3176
    %3635 = vmatpush.bf16.msra.mxu0 %v3169
    %3636 = vmatpush.bf16.msra.mxu0 %v3162
    %3637 = vmatpush.bf16.msra.mxu0 %v3155
    %3638 = vmatpush.bf16.msra.mxu0 %v3148
    %3639 = vmatpush.bf16.msra.mxu0 %v3141
    %3640 = vmatpush.bf16.msra.mxu0 %v3134
    %3641 = vmatmul.bf16.gmra.mxu0 %v2153
    %v3642 = vpop.f32.mrf.mxu0
    %v3643 = vadd.f32 %v2416, %v3642
    %v3644 = vpop.f32.mrf.mxu0
    %3645 = vdwg.mxu0
    %3646 = vmatpush.bf16.msra.mxu0 %v3239
    %3647 = vmatpush.bf16.msra.mxu0 %v3232
    %3648 = vmatpush.bf16.msra.mxu0 %v3225
    %3649 = vmatpush.bf16.msra.mxu0 %v3218
    %3650 = vmatpush.bf16.msra.mxu0 %v3211
    %3651 = vmatpush.bf16.msra.mxu0 %v3204
    %3652 = vmatpush.bf16.msra.mxu0 %v3197
    %3653 = vmatpush.bf16.msra.mxu0 %v3190
    %3654 = vmatmul.bf16.gmra.mxu0 %v2154
    %v3655 = vpop.f32.mrf.mxu0
    %v3656 = vadd.f32 %v3643, %v3655
    %v3657 = vpop.f32.mrf.mxu0
    %3658 = vdwg.mxu0
    %3659 = vmatpush.bf16.msra.mxu0 %v3295
    %3660 = vmatpush.bf16.msra.mxu0 %v3288
    %3661 = vmatpush.bf16.msra.mxu0 %v3281
    %3662 = vmatpush.bf16.msra.mxu0 %v3274
    %3663 = vmatpush.bf16.msra.mxu0 %v3267
    %3664 = vmatpush.bf16.msra.mxu0 %v3260
    %3665 = vmatpush.bf16.msra.mxu0 %v3253
    %3666 = vmatpush.bf16.msra.mxu0 %v3246
    %3667 = vmatmul.bf16.gmra.mxu0 %v2155
    %v3668 = vpop.f32.mrf.mxu0
    %v3669 = vadd.f32 %v3656, %v3668
    %v3670 = vpop.f32.mrf.mxu0
    %3671 = vdwg.mxu0
    %3672 = vmatpush.bf16.msra.mxu0 %v3351
    %3673 = vmatpush.bf16.msra.mxu0 %v3344
    %3674 = vmatpush.bf16.msra.mxu0 %v3337
    %3675 = vmatpush.bf16.msra.mxu0 %v3330
    %3676 = vmatpush.bf16.msra.mxu0 %v3323
    %3677 = vmatpush.bf16.msra.mxu0 %v3316
    %3678 = vmatpush.bf16.msra.mxu0 %v3309
    %3679 = vmatpush.bf16.msra.mxu0 %v3302
    %3680 = vmatmul.bf16.gmra.mxu0 %v2156
    %v3681 = vpop.f32.mrf.mxu0
    %v3682 = vadd.f32 %v3669, %v3681
    %v3683 = vpop.f32.mrf.mxu0
    %3684 = vdwg.mxu0
    %3685 = vmatpush.bf16.msra.mxu0 %v3184
    %3686 = vmatpush.bf16.msra.mxu0 %v3177
    %3687 = vmatpush.bf16.msra.mxu0 %v3170
    %3688 = vmatpush.bf16.msra.mxu0 %v3163
    %3689 = vmatpush.bf16.msra.mxu0 %v3156
    %3690 = vmatpush.bf16.msra.mxu0 %v3149
    %3691 = vmatpush.bf16.msra.mxu0 %v3142
    %3692 = vmatpush.bf16.msra.mxu0 %v3135
    %3693 = vmatmul.bf16.gmra.mxu0 %v2153
    %v3694 = vpop.f32.mrf.mxu0
    %v3695 = vadd.f32 %v2417, %v3694
    %v3696 = vpop.f32.mrf.mxu0
    %3697 = vdwg.mxu0
    %3698 = vmatpush.bf16.msra.mxu0 %v3240
    %3699 = vmatpush.bf16.msra.mxu0 %v3233
    %3700 = vmatpush.bf16.msra.mxu0 %v3226
    %3701 = vmatpush.bf16.msra.mxu0 %v3219
    %3702 = vmatpush.bf16.msra.mxu0 %v3212
    %3703 = vmatpush.bf16.msra.mxu0 %v3205
    %3704 = vmatpush.bf16.msra.mxu0 %v3198
    %3705 = vmatpush.bf16.msra.mxu0 %v3191
    %3706 = vmatmul.bf16.gmra.mxu0 %v2154
    %v3707 = vpop.f32.mrf.mxu0
    %v3708 = vadd.f32 %v3695, %v3707
    %v3709 = vpop.f32.mrf.mxu0
    %3710 = vdwg.mxu0
    %3711 = vmatpush.bf16.msra.mxu0 %v3296
    %3712 = vmatpush.bf16.msra.mxu0 %v3289
    %3713 = vmatpush.bf16.msra.mxu0 %v3282
    %3714 = vmatpush.bf16.msra.mxu0 %v3275
    %3715 = vmatpush.bf16.msra.mxu0 %v3268
    %3716 = vmatpush.bf16.msra.mxu0 %v3261
    %3717 = vmatpush.bf16.msra.mxu0 %v3254
    %3718 = vmatpush.bf16.msra.mxu0 %v3247
    %3719 = vmatmul.bf16.gmra.mxu0 %v2155
    %v3720 = vpop.f32.mrf.mxu0
    %v3721 = vadd.f32 %v3708, %v3720
    %v3722 = vpop.f32.mrf.mxu0
    %3723 = vdwg.mxu0
    %3724 = vmatpush.bf16.msra.mxu0 %v3352
    %3725 = vmatpush.bf16.msra.mxu0 %v3345
    %3726 = vmatpush.bf16.msra.mxu0 %v3338
    %3727 = vmatpush.bf16.msra.mxu0 %v3331
    %3728 = vmatpush.bf16.msra.mxu0 %v3324
    %3729 = vmatpush.bf16.msra.mxu0 %v3317
    %3730 = vmatpush.bf16.msra.mxu0 %v3310
    %3731 = vmatpush.bf16.msra.mxu0 %v3303
    %3732 = vmatmul.bf16.gmra.mxu0 %v2156
    %v3733 = vpop.f32.mrf.mxu0
    %v3734 = vadd.f32 %v3721, %v3733
    %v3735 = vpop.f32.mrf.mxu0
    %3736 = vdwg.mxu0
    %3737 = vmatpush.bf16.msra.mxu0 %v3185
    %3738 = vmatpush.bf16.msra.mxu0 %v3178
    %3739 = vmatpush.bf16.msra.mxu0 %v3171
    %3740 = vmatpush.bf16.msra.mxu0 %v3164
    %3741 = vmatpush.bf16.msra.mxu0 %v3157
    %3742 = vmatpush.bf16.msra.mxu0 %v3150
    %3743 = vmatpush.bf16.msra.mxu0 %v3143
    %3744 = vmatpush.bf16.msra.mxu0 %v3136
    %3745 = vmatmul.bf16.gmra.mxu0 %v2153
    %v3746 = vpop.f32.mrf.mxu0
    %v3747 = vadd.f32 %v2418, %v3746
    %v3748 = vpop.f32.mrf.mxu0
    %3749 = vdwg.mxu0
    %3750 = vmatpush.bf16.msra.mxu0 %v3241
    %3751 = vmatpush.bf16.msra.mxu0 %v3234
    %3752 = vmatpush.bf16.msra.mxu0 %v3227
    %3753 = vmatpush.bf16.msra.mxu0 %v3220
    %3754 = vmatpush.bf16.msra.mxu0 %v3213
    %3755 = vmatpush.bf16.msra.mxu0 %v3206
    %3756 = vmatpush.bf16.msra.mxu0 %v3199
    %3757 = vmatpush.bf16.msra.mxu0 %v3192
    %3758 = vmatmul.bf16.gmra.mxu0 %v2154
    %v3759 = vpop.f32.mrf.mxu0
    %v3760 = vadd.f32 %v3747, %v3759
    %v3761 = vpop.f32.mrf.mxu0
    %3762 = vdwg.mxu0
    %3763 = vmatpush.bf16.msra.mxu0 %v3297
    %3764 = vmatpush.bf16.msra.mxu0 %v3290
    %3765 = vmatpush.bf16.msra.mxu0 %v3283
    %3766 = vmatpush.bf16.msra.mxu0 %v3276
    %3767 = vmatpush.bf16.msra.mxu0 %v3269
    %3768 = vmatpush.bf16.msra.mxu0 %v3262
    %3769 = vmatpush.bf16.msra.mxu0 %v3255
    %3770 = vmatpush.bf16.msra.mxu0 %v3248
    %3771 = vmatmul.bf16.gmra.mxu0 %v2155
    %v3772 = vpop.f32.mrf.mxu0
    %v3773 = vadd.f32 %v3760, %v3772
    %v3774 = vpop.f32.mrf.mxu0
    %3775 = vdwg.mxu0
    %3776 = vmatpush.bf16.msra.mxu0 %v3353
    %3777 = vmatpush.bf16.msra.mxu0 %v3346
    %3778 = vmatpush.bf16.msra.mxu0 %v3339
    %3779 = vmatpush.bf16.msra.mxu0 %v3332
    %3780 = vmatpush.bf16.msra.mxu0 %v3325
    %3781 = vmatpush.bf16.msra.mxu0 %v3318
    %3782 = vmatpush.bf16.msra.mxu0 %v3311
    %3783 = vmatpush.bf16.msra.mxu0 %v3304
    %3784 = vmatmul.bf16.gmra.mxu0 %v2156
    %v3785 = vpop.f32.mrf.mxu0
    %v3786 = vadd.f32 %v3773, %v3785
    %v3787 = vpop.f32.mrf.mxu0
    %3788 = vdwg.mxu0
    %3789 = vmatpush.bf16.msra.mxu0 %v3186
    %3790 = vmatpush.bf16.msra.mxu0 %v3179
    %3791 = vmatpush.bf16.msra.mxu0 %v3172
    %3792 = vmatpush.bf16.msra.mxu0 %v3165
    %3793 = vmatpush.bf16.msra.mxu0 %v3158
    %3794 = vmatpush.bf16.msra.mxu0 %v3151
    %3795 = vmatpush.bf16.msra.mxu0 %v3144
    %3796 = vmatpush.bf16.msra.mxu0 %v3137
    %3797 = vmatmul.bf16.gmra.mxu0 %v2153
    %v3798 = vpop.f32.mrf.mxu0
    %v3799 = vadd.f32 %v2419, %v3798
    %v3800 = vpop.f32.mrf.mxu0
    %3801 = vdwg.mxu0
    %3802 = vmatpush.bf16.msra.mxu0 %v3242
    %3803 = vmatpush.bf16.msra.mxu0 %v3235
    %3804 = vmatpush.bf16.msra.mxu0 %v3228
    %3805 = vmatpush.bf16.msra.mxu0 %v3221
    %3806 = vmatpush.bf16.msra.mxu0 %v3214
    %3807 = vmatpush.bf16.msra.mxu0 %v3207
    %3808 = vmatpush.bf16.msra.mxu0 %v3200
    %3809 = vmatpush.bf16.msra.mxu0 %v3193
    %3810 = vmatmul.bf16.gmra.mxu0 %v2154
    %v3811 = vpop.f32.mrf.mxu0
    %v3812 = vadd.f32 %v3799, %v3811
    %v3813 = vpop.f32.mrf.mxu0
    %3814 = vdwg.mxu0
    %3815 = vmatpush.bf16.msra.mxu0 %v3298
    %3816 = vmatpush.bf16.msra.mxu0 %v3291
    %3817 = vmatpush.bf16.msra.mxu0 %v3284
    %3818 = vmatpush.bf16.msra.mxu0 %v3277
    %3819 = vmatpush.bf16.msra.mxu0 %v3270
    %3820 = vmatpush.bf16.msra.mxu0 %v3263
    %3821 = vmatpush.bf16.msra.mxu0 %v3256
    %3822 = vmatpush.bf16.msra.mxu0 %v3249
    %3823 = vmatmul.bf16.gmra.mxu0 %v2155
    %v3824 = vpop.f32.mrf.mxu0
    %v3825 = vadd.f32 %v3812, %v3824
    %v3826 = vpop.f32.mrf.mxu0
    %3827 = vdwg.mxu0
    %3828 = vmatpush.bf16.msra.mxu0 %v3354
    %3829 = vmatpush.bf16.msra.mxu0 %v3347
    %3830 = vmatpush.bf16.msra.mxu0 %v3340
    %3831 = vmatpush.bf16.msra.mxu0 %v3333
    %3832 = vmatpush.bf16.msra.mxu0 %v3326
    %3833 = vmatpush.bf16.msra.mxu0 %v3319
    %3834 = vmatpush.bf16.msra.mxu0 %v3312
    %3835 = vmatpush.bf16.msra.mxu0 %v3305
    %3836 = vmatmul.bf16.gmra.mxu0 %v2156
    %v3837 = vpop.f32.mrf.mxu0
    %v3838 = vadd.f32 %v3825, %v3837
    %v3839 = vpop.f32.mrf.mxu0
    %3840 = vdwg.mxu0
    %3841 = vmatpush.bf16.msra.mxu0 %v3187
    %3842 = vmatpush.bf16.msra.mxu0 %v3180
    %3843 = vmatpush.bf16.msra.mxu0 %v3173
    %3844 = vmatpush.bf16.msra.mxu0 %v3166
    %3845 = vmatpush.bf16.msra.mxu0 %v3159
    %3846 = vmatpush.bf16.msra.mxu0 %v3152
    %3847 = vmatpush.bf16.msra.mxu0 %v3145
    %3848 = vmatpush.bf16.msra.mxu0 %v3138
    %3849 = vmatmul.bf16.gmra.mxu0 %v2153
    %v3850 = vpop.f32.mrf.mxu0
    %v3851 = vadd.f32 %v2420, %v3850
    %v3852 = vpop.f32.mrf.mxu0
    %3853 = vdwg.mxu0
    %3854 = vmatpush.bf16.msra.mxu0 %v3243
    %3855 = vmatpush.bf16.msra.mxu0 %v3236
    %3856 = vmatpush.bf16.msra.mxu0 %v3229
    %3857 = vmatpush.bf16.msra.mxu0 %v3222
    %3858 = vmatpush.bf16.msra.mxu0 %v3215
    %3859 = vmatpush.bf16.msra.mxu0 %v3208
    %3860 = vmatpush.bf16.msra.mxu0 %v3201
    %3861 = vmatpush.bf16.msra.mxu0 %v3194
    %3862 = vmatmul.bf16.gmra.mxu0 %v2154
    %v3863 = vpop.f32.mrf.mxu0
    %v3864 = vadd.f32 %v3851, %v3863
    %v3865 = vpop.f32.mrf.mxu0
    %3866 = vdwg.mxu0
    %3867 = vmatpush.bf16.msra.mxu0 %v3299
    %3868 = vmatpush.bf16.msra.mxu0 %v3292
    %3869 = vmatpush.bf16.msra.mxu0 %v3285
    %3870 = vmatpush.bf16.msra.mxu0 %v3278
    %3871 = vmatpush.bf16.msra.mxu0 %v3271
    %3872 = vmatpush.bf16.msra.mxu0 %v3264
    %3873 = vmatpush.bf16.msra.mxu0 %v3257
    %3874 = vmatpush.bf16.msra.mxu0 %v3250
    %3875 = vmatmul.bf16.gmra.mxu0 %v2155
    %v3876 = vpop.f32.mrf.mxu0
    %v3877 = vadd.f32 %v3864, %v3876
    %v3878 = vpop.f32.mrf.mxu0
    %3879 = vdwg.mxu0
    %3880 = vmatpush.bf16.msra.mxu0 %v3355
    %3881 = vmatpush.bf16.msra.mxu0 %v3348
    %3882 = vmatpush.bf16.msra.mxu0 %v3341
    %3883 = vmatpush.bf16.msra.mxu0 %v3334
    %3884 = vmatpush.bf16.msra.mxu0 %v3327
    %3885 = vmatpush.bf16.msra.mxu0 %v3320
    %3886 = vmatpush.bf16.msra.mxu0 %v3313
    %3887 = vmatpush.bf16.msra.mxu0 %v3306
    %3888 = vmatmul.bf16.gmra.mxu0 %v2156
    %v3889 = vpop.f32.mrf.mxu0
    %v3890 = vadd.f32 %v3877, %v3889
    %v3891 = vpop.f32.mrf.mxu0
    %3892 = vdwg.mxu0
    %3893 = vmatpush.bf16.msra.mxu0 %v3188
    %3894 = vmatpush.bf16.msra.mxu0 %v3181
    %3895 = vmatpush.bf16.msra.mxu0 %v3174
    %3896 = vmatpush.bf16.msra.mxu0 %v3167
    %3897 = vmatpush.bf16.msra.mxu0 %v3160
    %3898 = vmatpush.bf16.msra.mxu0 %v3153
    %3899 = vmatpush.bf16.msra.mxu0 %v3146
    %3900 = vmatpush.bf16.msra.mxu0 %v3139
    %3901 = vmatmul.bf16.gmra.mxu0 %v2153
    %v3902 = vpop.f32.mrf.mxu0
    %v3903 = vadd.f32 %v2421, %v3902
    %v3904 = vpop.f32.mrf.mxu0
    %3905 = vdwg.mxu0
    %3906 = vmatpush.bf16.msra.mxu0 %v3244
    %3907 = vmatpush.bf16.msra.mxu0 %v3237
    %3908 = vmatpush.bf16.msra.mxu0 %v3230
    %3909 = vmatpush.bf16.msra.mxu0 %v3223
    %3910 = vmatpush.bf16.msra.mxu0 %v3216
    %3911 = vmatpush.bf16.msra.mxu0 %v3209
    %3912 = vmatpush.bf16.msra.mxu0 %v3202
    %3913 = vmatpush.bf16.msra.mxu0 %v3195
    %3914 = vmatmul.bf16.gmra.mxu0 %v2154
    %v3915 = vpop.f32.mrf.mxu0
    %v3916 = vadd.f32 %v3903, %v3915
    %v3917 = vpop.f32.mrf.mxu0
    %3918 = vdwg.mxu0
    %3919 = vmatpush.bf16.msra.mxu0 %v3300
    %3920 = vmatpush.bf16.msra.mxu0 %v3293
    %3921 = vmatpush.bf16.msra.mxu0 %v3286
    %3922 = vmatpush.bf16.msra.mxu0 %v3279
    %3923 = vmatpush.bf16.msra.mxu0 %v3272
    %3924 = vmatpush.bf16.msra.mxu0 %v3265
    %3925 = vmatpush.bf16.msra.mxu0 %v3258
    %3926 = vmatpush.bf16.msra.mxu0 %v3251
    %3927 = vmatmul.bf16.gmra.mxu0 %v2155
    %v3928 = vpop.f32.mrf.mxu0
    %v3929 = vadd.f32 %v3916, %v3928
    %v3930 = vpop.f32.mrf.mxu0
    %3931 = vdwg.mxu0
    %3932 = vmatpush.bf16.msra.mxu0 %v3356
    %3933 = vmatpush.bf16.msra.mxu0 %v3349
    %3934 = vmatpush.bf16.msra.mxu0 %v3342
    %3935 = vmatpush.bf16.msra.mxu0 %v3335
    %3936 = vmatpush.bf16.msra.mxu0 %v3328
    %3937 = vmatpush.bf16.msra.mxu0 %v3321
    %3938 = vmatpush.bf16.msra.mxu0 %v3314
    %3939 = vmatpush.bf16.msra.mxu0 %v3307
    %3940 = vmatmul.bf16.gmra.mxu0 %v2156
    %v3941 = vpop.f32.mrf.mxu0
    %v3942 = vadd.f32 %v3929, %v3941
    %v3943 = vpop.f32.mrf.mxu0
    %3944 = vdwg.mxu0
    %3945 = vst [vmem:[#allocation2] sm:$0xff] %v3630
    %3946 = vst [vmem:[#allocation2 + $0x8] sm:$0xff] %v3682
    %3947 = vst [vmem:[#allocation2 + $0x10] sm:$0xff] %v3734
    %3948 = vst [vmem:[#allocation2 + $0x18] sm:$0xff] %v3786
    %3949 = vst [vmem:[#allocation2 + $0x20] sm:$0xff] %v3838
    %3950 = vst [vmem:[#allocation2 + $0x28] sm:$0xff] %v3890
    %3951 = vst.msk [vmem:[#allocation2 + $0x30] sm:$0xff] %vm69, %v3942
    // Predicated region
    $region38: #{tpu_custom_call.1} parent=1 // pred_check
      _
    $region39: #{tpu_custom_call.1} parent=1 // pred_check_branch
      %3953 = sbr.rel (0) target = $region41
    $region40: #{tpu_custom_call.1} parent=1 // pred_region
      %3955 = vsyncadd [#allocation3], 0
      %s3957 = sshll.u32 [#allocation2], 4
      %s3958 = int_to_ptr.vmem [resolvable:$true] %s3957
      %s3959 = sshll.u32 %s9, 4
      %s3960 = int_to_ptr.hbm [resolvable:$true] %s3959
      %3962 = dma.vmem_to_hbm [thread:$0]  %s3958, 896, %s3960, [#allocation3]
    $region41: #{tpu_custom_call.1} parent=1 // pred_fallthru
      _
    // Predicated region
    $region42: #{tpu_custom_call.1} parent=1 // pred_check
      _
    $region43: #{tpu_custom_call.1} parent=1 // pred_check_branch
      %3964 = sbr.rel (0) target = $region45
    $region44: #{tpu_custom_call.1} parent=1 // pred_region
      %3966 = dma.done [#allocation3], 896
    $region45: #{tpu_custom_call.1} parent=1 // pred_fallthru
      _
    %3967 = vsyncpa [#allocation3], 1

</llo_original>
